<compile_context>
chip_gen: v5e
topology: v5e:2x2
jax: 0.10.0
libtpu: 0.0.40
codegen_flags: <defaults>
</compile_context>

<pallas_src>
import functools

import jax
import jax.numpy as jnp
import numpy as np
from jax.experimental import pallas as pl
from jax.experimental.pallas import tpu as pltpu


_VMEM = pl.BlockSpec(memory_space=pltpu.MemorySpace.VMEM)
_N_INPUTS = 5


# ----------------------------------------------------------------------------
# Fused Pallas kernel
# ----------------------------------------------------------------------------
def _aca_fused_kernel(*refs):
    """Fully fused ACA forward.

    refs = (t1..t5, w1..w5, b, out)
      t_i : (B, C_i, H_i, W_i) NCHW input tile (whole array, VMEM)
      w_i : (5, C_i, S)        folded weights (reduce_dim composed with att heads);
                               slab k=0 -> global-mean rows, k=1..4 -> quadrant rows
                               (k-1 = 2*hq + wq)
      b   : (1, S)             folded bias (b_reduce @ Wa + b_att)
      out : (B, S)             sigmoid of all 5 attention heads, concatenated
    """
    t_refs = refs[:_N_INPUTS]
    w_refs = refs[_N_INPUTS:2 * _N_INPUTS]
    b_ref = refs[2 * _N_INPUTS]
    o_ref = refs[2 * _N_INPUTS + 1]

    acc = jnp.zeros(o_ref.shape, jnp.float32)
    for t_ref, w_ref in zip(t_refs, w_refs):
        x = t_ref[...].astype(jnp.float32)
        _, _, H, W = x.shape
        hh, ww = H // 2, W // 2

        # Quadrant sums: reduce W halves first (lane reduction), then H halves.
        left = jnp.sum(x[:, :, :, :ww], axis=3)       # (B, C, H)
        right = jnp.sum(x[:, :, :, ww:], axis=3)      # (B, C, H)
        q00 = jnp.sum(left[:, :, :hh], axis=2)        # (B, C)  hq=0, wq=0
        q10 = jnp.sum(left[:, :, hh:], axis=2)        # (B, C)  hq=1, wq=0
        q01 = jnp.sum(right[:, :, :hh], axis=2)       # (B, C)  hq=0, wq=1
        q11 = jnp.sum(right[:, :, hh:], axis=2)       # (B, C)  hq=1, wq=1

        inv_q = 1.0 / (hh * ww)
        p1 = (q00 + q01 + q10 + q11) * (1.0 / (H * W))   # global mean from quadrant sums

        pooled = (p1, q00 * inv_q, q01 * inv_q, q10 * inv_q, q11 * inv_q)
        for k, pk in enumerate(pooled):
            acc = acc + jnp.dot(pk, w_ref[k], preferred_element_type=jnp.float32)

    logits = acc + b_ref[...]
    # sigmoid via EUP exp + approximate reciprocal (idle slot; no VALU divide).
    o_ref[...] = pl.reciprocal(1.0 + jnp.exp(-logits), approx=True)


# ----------------------------------------------------------------------------
# One-time parameter packing (hoisted out of the forward pass)
# ----------------------------------------------------------------------------
def pack_params(params, c_list):
    """Fold reduce_dim (grouped 1x1 conv) and the 5 Linear heads into one matmul.

    Returns (w_splits, b_comb):
      w_splits[i] : (5, C_i, S) float32 — rows permuted from torch feature order
                    [p1(ch) for ch] + [q(ch, 2*hq+wq) for ch for (hq,wq)]
                    into kernel slabs (p1, q00, q01, q10, q11).
      b_comb      : (1, S) float32
    """
    S = sum(c_list)
    w_reduce, b_reduce, att_ws, att_bs = params
    groups = 4
    in_pg, out_pg = 5 * S // groups, S // groups
    wr = np.asarray(w_reduce, np.float32)

    # Grouped conv weight (S, 5S/4) -> dense block-diagonal (5S, S) acting on the
    # torch-ordered (B, 5S) feature row.
    wd = np.zeros((5 * S, S), np.float32)
    for g in range(groups):
        wd[g * in_pg:(g + 1) * in_pg, g * out_pg:(g + 1) * out_pg] = \
            wr[g * out_pg:(g + 1) * out_pg, :].T

    wa = np.concatenate([np.asarray(w, np.float32).T for w in att_ws], axis=1)  # (S, S)
    ba = np.concatenate([np.asarray(b, np.float32) for b in att_bs], axis=0)    # (S,)

    # Exact fold: no nonlinearity between the grouped conv and the heads.
    w_comb = wd @ wa                                              # (5S, S)
    b_comb = np.asarray(b_reduce, np.float32) @ wa + ba           # (S,)

    w_splits = []
    off = 0
    for c in c_list:
        wt = w_comb[off:off + 5 * c, :]                           # torch-order rows
        off += 5 * c
        wk = np.empty((5, c, S), np.float32)
        wk[0] = wt[:c, :]                                         # p1 rows
        for k in range(4):                                        # quadrant k = 2*hq + wq
            wk[k + 1] = wt[c + 4 * np.arange(c) + k, :]
        w_splits.append(jnp.asarray(wk))
    return tuple(w_splits), jnp.asarray(b_comb.reshape(1, S))


def init_params(key, c_list):
    """Deterministic synthetic parameters (same shapes as the PyTorch module)."""
    S = sum(c_list)
    keys = jax.random.split(key, 2 + 2 * len(c_list))
    w_reduce = jax.random.normal(keys[0], (S, 5 * S // 4), jnp.float32) * 0.05
    b_reduce = jax.random.normal(keys[1], (S,), jnp.float32) * 0.05
    att_ws, att_bs = [], []
    for i, c in enumerate(c_list):
        att_ws.append(jax.random.normal(keys[2 + 2 * i], (c, S), jnp.float32) * 0.05)
        att_bs.append(jax.random.normal(keys[3 + 2 * i], (c,), jnp.float32) * 0.05)
    return w_reduce, b_reduce, att_ws, att_bs


# ----------------------------------------------------------------------------
# Forward (jitted; single pallas_call + zero-compute output broadcast)
# ----------------------------------------------------------------------------
@functools.partial(jax.jit, static_argnames=("c_list",))
def aca_forward(ts, w_splits, b_comb, *, c_list):
    B = ts[0].shape[0]
    S = sum(c_list)
    for t in ts:
        assert t.shape[2] % 2 == 0 and t.shape[3] % 2 == 0, \
            "AdaptiveAvgPool2d(2) path assumes even H/W"

    # TODO(synk): at production feature-map sizes, grid the pooling over B*C / spatial
    # blocks with an accumulator scratch (v7x has only 64 MiB VMEM and 2 TCs); at these
    # sizes a single whole-array block (~120 KB total) is the fastest option.
    att_all = pl.pallas_call(
        _aca_fused_kernel,
        out_shape=jax.ShapeDtypeStruct((B, S), jnp.float32),
        in_specs=[_VMEM] * (2 * _N_INPUTS + 1),
        out_specs=_VMEM,
    )(*ts, *w_splits, b_comb)

    # expand_as: kept only to match the PyTorch module's return signature.  Consumers
    # should multiply with the (B, C) attention maps directly so XLA fuses the broadcast.
    outs = []
    off = 0
    for t, c in zip(ts, c_list):
        a = att_all[:, off:off + c]
        off += c
        outs.append(jnp.broadcast_to(a[:, :, None, None], t.shape))
    return tuple(outs)


# ----------------------------------------------------------------------------
# Pure-JAX reference (mirrors the PyTorch forward exactly)
# ----------------------------------------------------------------------------
def aca_reference(ts, params, c_list):
    S = sum(c_list)
    w_reduce, b_reduce, att_ws, att_bs = params
    feats = []
    for t in ts:
        B, C, H, W = t.shape
        p1 = jnp.mean(t, axis=(2, 3))
        p2 = jnp.mean(t.reshape(B, C, 2, H // 2, 2, W // 2), axis=(3, 5)).reshape(B, C * 4)
        feats.append(jnp.concatenate([p1, p2], axis=1))
    att_feat = jnp.concatenate(feats, axis=1)                      # (B, 5S)

    in_pg, out_pg = 5 * S // 4, S // 4
    group_outs = []
    for g in range(4):
        xg = att_feat[:, g * in_pg:(g + 1) * in_pg]
        wg = w_reduce[g * out_pg:(g + 1) * out_pg, :]
        group_outs.append(xg @ wg.T)
    reduced = jnp.concatenate(group_outs, axis=1) + b_reduce[None, :]

    outs = []
    for w, b, t in zip(att_ws, att_bs, ts):
        a = jax.nn.sigmoid(reduced @ w.T + b[None, :])
        outs.append(jnp.broadcast_to(a[:, :, None, None], t.shape))
    return tuple(outs)


# ----------------------------------------------------------------------------
if __name__ == "__main__":
    c_list = (4, 8, 12, 16, 24)                       # sum = 64, divisible by groups=4
    shapes = [(2, 4, 16, 16), (2, 8, 16, 16), (2, 12, 8, 8), (2, 16, 8, 8), (2, 24, 4, 4)]

    key = jax.random.PRNGKey(0)
    k_in, k_par = jax.random.split(key)
    in_keys = jax.random.split(k_in, 5)
    ts = tuple(jax.random.normal(k, s, jnp.float32) for k, s in zip(in_keys, shapes))
    params = init_params(k_par, c_list)

    w_splits, b_comb = pack_params(params, c_list)    # one-time weight fold

    outs = aca_forward(ts, w_splits, b_comb, c_list=c_list)
    outs = jax.block_until_ready(outs)

    refs = aca_reference(ts, params, c_list)
    for o, r in zip(outs, refs):
        np.testing.assert_allclose(np.asarray(o), np.asarray(r), atol=2e-2, rtol=2e-2)

    print("KERNEL_OK")
</pallas_src>

<mosaic_0001>
module attributes {stable_mosaic.version = 11 : i64} {
  func.func @_aca_fused_kernel(%arg0: memref<2x4x16x16xf32, #tpu.memory_space<vmem>>, %arg1: memref<2x8x16x16xf32, #tpu.memory_space<vmem>>, %arg2: memref<2x12x8x8xf32, #tpu.memory_space<vmem>>, %arg3: memref<2x16x8x8xf32, #tpu.memory_space<vmem>>, %arg4: memref<2x24x4x4xf32, #tpu.memory_space<vmem>>, %arg5: memref<5x4x64xf32, #tpu.memory_space<vmem>>, %arg6: memref<5x8x64xf32, #tpu.memory_space<vmem>>, %arg7: memref<5x12x64xf32, #tpu.memory_space<vmem>>, %arg8: memref<5x16x64xf32, #tpu.memory_space<vmem>>, %arg9: memref<5x24x64xf32, #tpu.memory_space<vmem>>, %arg10: memref<1x64xf32, #tpu.memory_space<vmem>>, %arg11: memref<2x64xf32, #tpu.memory_space<vmem>>) attributes {dimension_semantics = [], scalar_prefetch = 0 : i64, scratch_operands = 0 : i64, tpu.core_type = #tpu.core_type<tc>} {
    %cst = arith.constant 0.000000e+00 : f32
    %0 = vector.broadcast %cst : f32 to vector<2x64xf32>
    %c0 = arith.constant 0 : index
    %c0_0 = arith.constant 0 : index
    %c0_1 = arith.constant 0 : index
    %c0_2 = arith.constant 0 : index
    %1 = vector.load %arg0[%c0, %c0_0, %c0_1, %c0_2] : memref<2x4x16x16xf32, #tpu.memory_space<vmem>>, vector<2x4x16x16xf32>
    %2 = vector.extract_strided_slice %1 {offsets = [0, 0, 0, 0], sizes = [2, 4, 16, 8], strides = [1, 1, 1, 1]} : vector<2x4x16x16xf32> to vector<2x4x16x8xf32>
    %cst_3 = arith.constant dense<0.000000e+00> : vector<2x4x16xf32>
    %3 = vector.multi_reduction <add>, %2, %cst_3 [3] : vector<2x4x16x8xf32> to vector<2x4x16xf32>
    %4 = vector.extract_strided_slice %1 {offsets = [0, 0, 0, 8], sizes = [2, 4, 16, 8], strides = [1, 1, 1, 1]} : vector<2x4x16x16xf32> to vector<2x4x16x8xf32>
    %cst_4 = arith.constant dense<0.000000e+00> : vector<2x4x16xf32>
    %5 = vector.multi_reduction <add>, %4, %cst_4 [3] : vector<2x4x16x8xf32> to vector<2x4x16xf32>
    %6 = vector.extract_strided_slice %3 {offsets = [0, 0, 0], sizes = [2, 4, 8], strides = [1, 1, 1]} : vector<2x4x16xf32> to vector<2x4x8xf32>
    %cst_5 = arith.constant dense<0.000000e+00> : vector<2x4xf32>
    %7 = vector.multi_reduction <add>, %6, %cst_5 [2] : vector<2x4x8xf32> to vector<2x4xf32>
    %8 = vector.extract_strided_slice %3 {offsets = [0, 0, 8], sizes = [2, 4, 8], strides = [1, 1, 1]} : vector<2x4x16xf32> to vector<2x4x8xf32>
    %cst_6 = arith.constant dense<0.000000e+00> : vector<2x4xf32>
    %9 = vector.multi_reduction <add>, %8, %cst_6 [2] : vector<2x4x8xf32> to vector<2x4xf32>
    %10 = vector.extract_strided_slice %5 {offsets = [0, 0, 0], sizes = [2, 4, 8], strides = [1, 1, 1]} : vector<2x4x16xf32> to vector<2x4x8xf32>
    %cst_7 = arith.constant dense<0.000000e+00> : vector<2x4xf32>
    %11 = vector.multi_reduction <add>, %10, %cst_7 [2] : vector<2x4x8xf32> to vector<2x4xf32>
    %12 = vector.extract_strided_slice %5 {offsets = [0, 0, 8], sizes = [2, 4, 8], strides = [1, 1, 1]} : vector<2x4x16xf32> to vector<2x4x8xf32>
    %cst_8 = arith.constant dense<0.000000e+00> : vector<2x4xf32>
    %13 = vector.multi_reduction <add>, %12, %cst_8 [2] : vector<2x4x8xf32> to vector<2x4xf32>
    %14 = arith.addf %7, %11 : vector<2x4xf32>
    %15 = arith.addf %14, %9 : vector<2x4xf32>
    %16 = arith.addf %15, %13 : vector<2x4xf32>
    %cst_9 = arith.constant 3.906250e-03 : f32
    %17 = vector.broadcast %cst_9 : f32 to vector<2x4xf32>
    %18 = arith.mulf %16, %17 : vector<2x4xf32>
    %cst_10 = arith.constant 1.562500e-02 : f32
    %19 = vector.broadcast %cst_10 : f32 to vector<2x4xf32>
    %20 = arith.mulf %7, %19 : vector<2x4xf32>
    %cst_11 = arith.constant 1.562500e-02 : f32
    %21 = vector.broadcast %cst_11 : f32 to vector<2x4xf32>
    %22 = arith.mulf %11, %21 : vector<2x4xf32>
    %cst_12 = arith.constant 1.562500e-02 : f32
    %23 = vector.broadcast %cst_12 : f32 to vector<2x4xf32>
    %24 = arith.mulf %9, %23 : vector<2x4xf32>
    %cst_13 = arith.constant 1.562500e-02 : f32
    %25 = vector.broadcast %cst_13 : f32 to vector<2x4xf32>
    %26 = arith.mulf %13, %25 : vector<2x4xf32>
    %c0_14 = arith.constant 0 : index
    %c0_15 = arith.constant 0 : index
    %c0_16 = arith.constant 0 : index
    %27 = vector.load %arg5[%c0_14, %c0_15, %c0_16] : memref<5x4x64xf32, #tpu.memory_space<vmem>>, vector<1x4x64xf32>
    %28 = vector.shape_cast %27 : vector<1x4x64xf32> to vector<4x64xf32>
    %cst_17 = arith.constant dense<0.000000e+00> : vector<2x64xf32>
    %29 = tpu.matmul %18, %28, %cst_17 {dimension_numbers = #tpu.dot_dimension_numbers<[1], [0], [0], [1], [0, 0, 1, 1], [], []>} : vector<2x4xf32>, vector<4x64xf32>, vector<2x64xf32> -> vector<2x64xf32>
    %30 = arith.addf %0, %29 : vector<2x64xf32>
    %c1 = arith.constant 1 : index
    %c0_18 = arith.constant 0 : index
    %c0_19 = arith.constant 0 : index
    %31 = vector.load %arg5[%c1, %c0_18, %c0_19] : memref<5x4x64xf32, #tpu.memory_space<vmem>>, vector<1x4x64xf32>
    %32 = vector.shape_cast %31 : vector<1x4x64xf32> to vector<4x64xf32>
    %cst_20 = arith.constant dense<0.000000e+00> : vector<2x64xf32>
    %33 = tpu.matmul %20, %32, %cst_20 {dimension_numbers = #tpu.dot_dimension_numbers<[1], [0], [0], [1], [0, 0, 1, 1], [], []>} : vector<2x4xf32>, vector<4x64xf32>, vector<2x64xf32> -> vector<2x64xf32>
    %34 = arith.addf %30, %33 : vector<2x64xf32>
    %c2 = arith.constant 2 : index
    %c0_21 = arith.constant 0 : index
    %c0_22 = arith.constant 0 : index
    %35 = vector.load %arg5[%c2, %c0_21, %c0_22] : memref<5x4x64xf32, #tpu.memory_space<vmem>>, vector<1x4x64xf32>
    %36 = vector.shape_cast %35 : vector<1x4x64xf32> to vector<4x64xf32>
    %cst_23 = arith.constant dense<0.000000e+00> : vector<2x64xf32>
    %37 = tpu.matmul %22, %36, %cst_23 {dimension_numbers = #tpu.dot_dimension_numbers<[1], [0], [0], [1], [0, 0, 1, 1], [], []>} : vector<2x4xf32>, vector<4x64xf32>, vector<2x64xf32> -> vector<2x64xf32>
    %38 = arith.addf %34, %37 : vector<2x64xf32>
    %c3 = arith.constant 3 : index
    %c0_24 = arith.constant 0 : index
    %c0_25 = arith.constant 0 : index
    %39 = vector.load %arg5[%c3, %c0_24, %c0_25] : memref<5x4x64xf32, #tpu.memory_space<vmem>>, vector<1x4x64xf32>
    %40 = vector.shape_cast %39 : vector<1x4x64xf32> to vector<4x64xf32>
    %cst_26 = arith.constant dense<0.000000e+00> : vector<2x64xf32>
    %41 = tpu.matmul %24, %40, %cst_26 {dimension_numbers = #tpu.dot_dimension_numbers<[1], [0], [0], [1], [0, 0, 1, 1], [], []>} : vector<2x4xf32>, vector<4x64xf32>, vector<2x64xf32> -> vector<2x64xf32>
    %42 = arith.addf %38, %41 : vector<2x64xf32>
    %c4 = arith.constant 4 : index
    %c0_27 = arith.constant 0 : index
    %c0_28 = arith.constant 0 : index
    %43 = vector.load %arg5[%c4, %c0_27, %c0_28] : memref<5x4x64xf32, #tpu.memory_space<vmem>>, vector<1x4x64xf32>
    %44 = vector.shape_cast %43 : vector<1x4x64xf32> to vector<4x64xf32>
    %cst_29 = arith.constant dense<0.000000e+00> : vector<2x64xf32>
    %45 = tpu.matmul %26, %44, %cst_29 {dimension_numbers = #tpu.dot_dimension_numbers<[1], [0], [0], [1], [0, 0, 1, 1], [], []>} : vector<2x4xf32>, vector<4x64xf32>, vector<2x64xf32> -> vector<2x64xf32>
    %46 = arith.addf %42, %45 : vector<2x64xf32>
    %c0_30 = arith.constant 0 : index
    %c0_31 = arith.constant 0 : index
    %c0_32 = arith.constant 0 : index
    %c0_33 = arith.constant 0 : index
    %47 = vector.load %arg1[%c0_30, %c0_31, %c0_32, %c0_33] : memref<2x8x16x16xf32, #tpu.memory_space<vmem>>, vector<2x8x16x16xf32>
    %48 = vector.extract_strided_slice %47 {offsets = [0, 0, 0, 0], sizes = [2, 8, 16, 8], strides = [1, 1, 1, 1]} : vector<2x8x16x16xf32> to vector<2x8x16x8xf32>
    %cst_34 = arith.constant dense<0.000000e+00> : vector<2x8x16xf32>
    %49 = vector.multi_reduction <add>, %48, %cst_34 [3] : vector<2x8x16x8xf32> to vector<2x8x16xf32>
    %50 = vector.extract_strided_slice %47 {offsets = [0, 0, 0, 8], sizes = [2, 8, 16, 8], strides = [1, 1, 1, 1]} : vector<2x8x16x16xf32> to vector<2x8x16x8xf32>
    %cst_35 = arith.constant dense<0.000000e+00> : vector<2x8x16xf32>
    %51 = vector.multi_reduction <add>, %50, %cst_35 [3] : vector<2x8x16x8xf32> to vector<2x8x16xf32>
    %52 = vector.extract_strided_slice %49 {offsets = [0, 0, 0], sizes = [2, 8, 8], strides = [1, 1, 1]} : vector<2x8x16xf32> to vector<2x8x8xf32>
    %cst_36 = arith.constant dense<0.000000e+00> : vector<2x8xf32>
    %53 = vector.multi_reduction <add>, %52, %cst_36 [2] : vector<2x8x8xf32> to vector<2x8xf32>
    %54 = vector.extract_strided_slice %49 {offsets = [0, 0, 8], sizes = [2, 8, 8], strides = [1, 1, 1]} : vector<2x8x16xf32> to vector<2x8x8xf32>
    %cst_37 = arith.constant dense<0.000000e+00> : vector<2x8xf32>
    %55 = vector.multi_reduction <add>, %54, %cst_37 [2] : vector<2x8x8xf32> to vector<2x8xf32>
    %56 = vector.extract_strided_slice %51 {offsets = [0, 0, 0], sizes = [2, 8, 8], strides = [1, 1, 1]} : vector<2x8x16xf32> to vector<2x8x8xf32>
    %cst_38 = arith.constant dense<0.000000e+00> : vector<2x8xf32>
    %57 = vector.multi_reduction <add>, %56, %cst_38 [2] : vector<2x8x8xf32> to vector<2x8xf32>
    %58 = vector.extract_strided_slice %51 {offsets = [0, 0, 8], sizes = [2, 8, 8], strides = [1, 1, 1]} : vector<2x8x16xf32> to vector<2x8x8xf32>
    %cst_39 = arith.constant dense<0.000000e+00> : vector<2x8xf32>
    %59 = vector.multi_reduction <add>, %58, %cst_39 [2] : vector<2x8x8xf32> to vector<2x8xf32>
    %60 = arith.addf %53, %57 : vector<2x8xf32>
    %61 = arith.addf %60, %55 : vector<2x8xf32>
    %62 = arith.addf %61, %59 : vector<2x8xf32>
    %cst_40 = arith.constant 3.906250e-03 : f32
    %63 = vector.broadcast %cst_40 : f32 to vector<2x8xf32>
    %64 = arith.mulf %62, %63 : vector<2x8xf32>
    %cst_41 = arith.constant 1.562500e-02 : f32
    %65 = vector.broadcast %cst_41 : f32 to vector<2x8xf32>
    %66 = arith.mulf %53, %65 : vector<2x8xf32>
    %cst_42 = arith.constant 1.562500e-02 : f32
    %67 = vector.broadcast %cst_42 : f32 to vector<2x8xf32>
    %68 = arith.mulf %57, %67 : vector<2x8xf32>
    %cst_43 = arith.constant 1.562500e-02 : f32
    %69 = vector.broadcast %cst_43 : f32 to vector<2x8xf32>
    %70 = arith.mulf %55, %69 : vector<2x8xf32>
    %cst_44 = arith.constant 1.562500e-02 : f32
    %71 = vector.broadcast %cst_44 : f32 to vector<2x8xf32>
    %72 = arith.mulf %59, %71 : vector<2x8xf32>
    %c0_45 = arith.constant 0 : index
    %c0_46 = arith.constant 0 : index
    %c0_47 = arith.constant 0 : index
    %73 = vector.load %arg6[%c0_45, %c0_46, %c0_47] : memref<5x8x64xf32, #tpu.memory_space<vmem>>, vector<1x8x64xf32>
    %74 = vector.shape_cast %73 : vector<1x8x64xf32> to vector<8x64xf32>
    %cst_48 = arith.constant dense<0.000000e+00> : vector<2x64xf32>
    %75 = tpu.matmul %64, %74, %cst_48 {dimension_numbers = #tpu.dot_dimension_numbers<[1], [0], [0], [1], [0, 0, 1, 1], [], []>} : vector<2x8xf32>, vector<8x64xf32>, vector<2x64xf32> -> vector<2x64xf32>
    %76 = arith.addf %46, %75 : vector<2x64xf32>
    %c1_49 = arith.constant 1 : index
    %c0_50 = arith.constant 0 : index
    %c0_51 = arith.constant 0 : index
    %77 = vector.load %arg6[%c1_49, %c0_50, %c0_51] : memref<5x8x64xf32, #tpu.memory_space<vmem>>, vector<1x8x64xf32>
    %78 = vector.shape_cast %77 : vector<1x8x64xf32> to vector<8x64xf32>
    %cst_52 = arith.constant dense<0.000000e+00> : vector<2x64xf32>
    %79 = tpu.matmul %66, %78, %cst_52 {dimension_numbers = #tpu.dot_dimension_numbers<[1], [0], [0], [1], [0, 0, 1, 1], [], []>} : vector<2x8xf32>, vector<8x64xf32>, vector<2x64xf32> -> vector<2x64xf32>
    %80 = arith.addf %76, %79 : vector<2x64xf32>
    %c2_53 = arith.constant 2 : index
    %c0_54 = arith.constant 0 : index
    %c0_55 = arith.constant 0 : index
    %81 = vector.load %arg6[%c2_53, %c0_54, %c0_55] : memref<5x8x64xf32, #tpu.memory_space<vmem>>, vector<1x8x64xf32>
    %82 = vector.shape_cast %81 : vector<1x8x64xf32> to vector<8x64xf32>
    %cst_56 = arith.constant dense<0.000000e+00> : vector<2x64xf32>
    %83 = tpu.matmul %68, %82, %cst_56 {dimension_numbers = #tpu.dot_dimension_numbers<[1], [0], [0], [1], [0, 0, 1, 1], [], []>} : vector<2x8xf32>, vector<8x64xf32>, vector<2x64xf32> -> vector<2x64xf32>
    %84 = arith.addf %80, %83 : vector<2x64xf32>
    %c3_57 = arith.constant 3 : index
    %c0_58 = arith.constant 0 : index
    %c0_59 = arith.constant 0 : index
    %85 = vector.load %arg6[%c3_57, %c0_58, %c0_59] : memref<5x8x64xf32, #tpu.memory_space<vmem>>, vector<1x8x64xf32>
    %86 = vector.shape_cast %85 : vector<1x8x64xf32> to vector<8x64xf32>
    %cst_60 = arith.constant dense<0.000000e+00> : vector<2x64xf32>
    %87 = tpu.matmul %70, %86, %cst_60 {dimension_numbers = #tpu.dot_dimension_numbers<[1], [0], [0], [1], [0, 0, 1, 1], [], []>} : vector<2x8xf32>, vector<8x64xf32>, vector<2x64xf32> -> vector<2x64xf32>
    %88 = arith.addf %84, %87 : vector<2x64xf32>
    %c4_61 = arith.constant 4 : index
    %c0_62 = arith.constant 0 : index
    %c0_63 = arith.constant 0 : index
    %89 = vector.load %arg6[%c4_61, %c0_62, %c0_63] : memref<5x8x64xf32, #tpu.memory_space<vmem>>, vector<1x8x64xf32>
    %90 = vector.shape_cast %89 : vector<1x8x64xf32> to vector<8x64xf32>
    %cst_64 = arith.constant dense<0.000000e+00> : vector<2x64xf32>
    %91 = tpu.matmul %72, %90, %cst_64 {dimension_numbers = #tpu.dot_dimension_numbers<[1], [0], [0], [1], [0, 0, 1, 1], [], []>} : vector<2x8xf32>, vector<8x64xf32>, vector<2x64xf32> -> vector<2x64xf32>
    %92 = arith.addf %88, %91 : vector<2x64xf32>
    %c0_65 = arith.constant 0 : index
    %c0_66 = arith.constant 0 : index
    %c0_67 = arith.constant 0 : index
    %c0_68 = arith.constant 0 : index
    %93 = vector.load %arg2[%c0_65, %c0_66, %c0_67, %c0_68] : memref<2x12x8x8xf32, #tpu.memory_space<vmem>>, vector<2x12x8x8xf32>
    %94 = vector.extract_strided_slice %93 {offsets = [0, 0, 0, 0], sizes = [2, 12, 8, 4], strides = [1, 1, 1, 1]} : vector<2x12x8x8xf32> to vector<2x12x8x4xf32>
    %cst_69 = arith.constant dense<0.000000e+00> : vector<2x12x8xf32>
    %95 = vector.multi_reduction <add>, %94, %cst_69 [3] : vector<2x12x8x4xf32> to vector<2x12x8xf32>
    %96 = vector.extract_strided_slice %93 {offsets = [0, 0, 0, 4], sizes = [2, 12, 8, 4], strides = [1, 1, 1, 1]} : vector<2x12x8x8xf32> to vector<2x12x8x4xf32>
    %cst_70 = arith.constant dense<0.000000e+00> : vector<2x12x8xf32>
    %97 = vector.multi_reduction <add>, %96, %cst_70 [3] : vector<2x12x8x4xf32> to vector<2x12x8xf32>
    %98 = vector.extract_strided_slice %95 {offsets = [0, 0, 0], sizes = [2, 12, 4], strides = [1, 1, 1]} : vector<2x12x8xf32> to vector<2x12x4xf32>
    %cst_71 = arith.constant dense<0.000000e+00> : vector<2x12xf32>
    %99 = vector.multi_reduction <add>, %98, %cst_71 [2] : vector<2x12x4xf32> to vector<2x12xf32>
    %100 = vector.extract_strided_slice %95 {offsets = [0, 0, 4], sizes = [2, 12, 4], strides = [1, 1, 1]} : vector<2x12x8xf32> to vector<2x12x4xf32>
    %cst_72 = arith.constant dense<0.000000e+00> : vector<2x12xf32>
    %101 = vector.multi_reduction <add>, %100, %cst_72 [2] : vector<2x12x4xf32> to vector<2x12xf32>
    %102 = vector.extract_strided_slice %97 {offsets = [0, 0, 0], sizes = [2, 12, 4], strides = [1, 1, 1]} : vector<2x12x8xf32> to vector<2x12x4xf32>
    %cst_73 = arith.constant dense<0.000000e+00> : vector<2x12xf32>
    %103 = vector.multi_reduction <add>, %102, %cst_73 [2] : vector<2x12x4xf32> to vector<2x12xf32>
    %104 = vector.extract_strided_slice %97 {offsets = [0, 0, 4], sizes = [2, 12, 4], strides = [1, 1, 1]} : vector<2x12x8xf32> to vector<2x12x4xf32>
    %cst_74 = arith.constant dense<0.000000e+00> : vector<2x12xf32>
    %105 = vector.multi_reduction <add>, %104, %cst_74 [2] : vector<2x12x4xf32> to vector<2x12xf32>
    %106 = arith.addf %99, %103 : vector<2x12xf32>
    %107 = arith.addf %106, %101 : vector<2x12xf32>
    %108 = arith.addf %107, %105 : vector<2x12xf32>
    %cst_75 = arith.constant 1.562500e-02 : f32
    %109 = vector.broadcast %cst_75 : f32 to vector<2x12xf32>
    %110 = arith.mulf %108, %109 : vector<2x12xf32>
    %cst_76 = arith.constant 6.250000e-02 : f32
    %111 = vector.broadcast %cst_76 : f32 to vector<2x12xf32>
    %112 = arith.mulf %99, %111 : vector<2x12xf32>
    %cst_77 = arith.constant 6.250000e-02 : f32
    %113 = vector.broadcast %cst_77 : f32 to vector<2x12xf32>
    %114 = arith.mulf %103, %113 : vector<2x12xf32>
    %cst_78 = arith.constant 6.250000e-02 : f32
    %115 = vector.broadcast %cst_78 : f32 to vector<2x12xf32>
    %116 = arith.mulf %101, %115 : vector<2x12xf32>
    %cst_79 = arith.constant 6.250000e-02 : f32
    %117 = vector.broadcast %cst_79 : f32 to vector<2x12xf32>
    %118 = arith.mulf %105, %117 : vector<2x12xf32>
    %c0_80 = arith.constant 0 : index
    %c0_81 = arith.constant 0 : index
    %c0_82 = arith.constant 0 : index
    %119 = vector.load %arg7[%c0_80, %c0_81, %c0_82] : memref<5x12x64xf32, #tpu.memory_space<vmem>>, vector<1x12x64xf32>
    %120 = vector.shape_cast %119 : vector<1x12x64xf32> to vector<12x64xf32>
    %cst_83 = arith.constant dense<0.000000e+00> : vector<2x64xf32>
    %121 = tpu.matmul %110, %120, %cst_83 {dimension_numbers = #tpu.dot_dimension_numbers<[1], [0], [0], [1], [0, 0, 1, 1], [], []>} : vector<2x12xf32>, vector<12x64xf32>, vector<2x64xf32> -> vector<2x64xf32>
    %122 = arith.addf %92, %121 : vector<2x64xf32>
    %c1_84 = arith.constant 1 : index
    %c0_85 = arith.constant 0 : index
    %c0_86 = arith.constant 0 : index
    %123 = vector.load %arg7[%c1_84, %c0_85, %c0_86] : memref<5x12x64xf32, #tpu.memory_space<vmem>>, vector<1x12x64xf32>
    %124 = vector.shape_cast %123 : vector<1x12x64xf32> to vector<12x64xf32>
    %cst_87 = arith.constant dense<0.000000e+00> : vector<2x64xf32>
    %125 = tpu.matmul %112, %124, %cst_87 {dimension_numbers = #tpu.dot_dimension_numbers<[1], [0], [0], [1], [0, 0, 1, 1], [], []>} : vector<2x12xf32>, vector<12x64xf32>, vector<2x64xf32> -> vector<2x64xf32>
    %126 = arith.addf %122, %125 : vector<2x64xf32>
    %c2_88 = arith.constant 2 : index
    %c0_89 = arith.constant 0 : index
    %c0_90 = arith.constant 0 : index
    %127 = vector.load %arg7[%c2_88, %c0_89, %c0_90] : memref<5x12x64xf32, #tpu.memory_space<vmem>>, vector<1x12x64xf32>
    %128 = vector.shape_cast %127 : vector<1x12x64xf32> to vector<12x64xf32>
    %cst_91 = arith.constant dense<0.000000e+00> : vector<2x64xf32>
    %129 = tpu.matmul %114, %128, %cst_91 {dimension_numbers = #tpu.dot_dimension_numbers<[1], [0], [0], [1], [0, 0, 1, 1], [], []>} : vector<2x12xf32>, vector<12x64xf32>, vector<2x64xf32> -> vector<2x64xf32>
    %130 = arith.addf %126, %129 : vector<2x64xf32>
    %c3_92 = arith.constant 3 : index
    %c0_93 = arith.constant 0 : index
    %c0_94 = arith.constant 0 : index
    %131 = vector.load %arg7[%c3_92, %c0_93, %c0_94] : memref<5x12x64xf32, #tpu.memory_space<vmem>>, vector<1x12x64xf32>
    %132 = vector.shape_cast %131 : vector<1x12x64xf32> to vector<12x64xf32>
    %cst_95 = arith.constant dense<0.000000e+00> : vector<2x64xf32>
    %133 = tpu.matmul %116, %132, %cst_95 {dimension_numbers = #tpu.dot_dimension_numbers<[1], [0], [0], [1], [0, 0, 1, 1], [], []>} : vector<2x12xf32>, vector<12x64xf32>, vector<2x64xf32> -> vector<2x64xf32>
    %134 = arith.addf %130, %133 : vector<2x64xf32>
    %c4_96 = arith.constant 4 : index
    %c0_97 = arith.constant 0 : index
    %c0_98 = arith.constant 0 : index
    %135 = vector.load %arg7[%c4_96, %c0_97, %c0_98] : memref<5x12x64xf32, #tpu.memory_space<vmem>>, vector<1x12x64xf32>
    %136 = vector.shape_cast %135 : vector<1x12x64xf32> to vector<12x64xf32>
    %cst_99 = arith.constant dense<0.000000e+00> : vector<2x64xf32>
    %137 = tpu.matmul %118, %136, %cst_99 {dimension_numbers = #tpu.dot_dimension_numbers<[1], [0], [0], [1], [0, 0, 1, 1], [], []>} : vector<2x12xf32>, vector<12x64xf32>, vector<2x64xf32> -> vector<2x64xf32>
    %138 = arith.addf %134, %137 : vector<2x64xf32>
    %c0_100 = arith.constant 0 : index
    %c0_101 = arith.constant 0 : index
    %c0_102 = arith.constant 0 : index
    %c0_103 = arith.constant 0 : index
    %139 = vector.load %arg3[%c0_100, %c0_101, %c0_102, %c0_103] : memref<2x16x8x8xf32, #tpu.memory_space<vmem>>, vector<2x16x8x8xf32>
    %140 = vector.extract_strided_slice %139 {offsets = [0, 0, 0, 0], sizes = [2, 16, 8, 4], strides = [1, 1, 1, 1]} : vector<2x16x8x8xf32> to vector<2x16x8x4xf32>
    %cst_104 = arith.constant dense<0.000000e+00> : vector<2x16x8xf32>
    %141 = vector.multi_reduction <add>, %140, %cst_104 [3] : vector<2x16x8x4xf32> to vector<2x16x8xf32>
    %142 = vector.extract_strided_slice %139 {offsets = [0, 0, 0, 4], sizes = [2, 16, 8, 4], strides = [1, 1, 1, 1]} : vector<2x16x8x8xf32> to vector<2x16x8x4xf32>
    %cst_105 = arith.constant dense<0.000000e+00> : vector<2x16x8xf32>
    %143 = vector.multi_reduction <add>, %142, %cst_105 [3] : vector<2x16x8x4xf32> to vector<2x16x8xf32>
    %144 = vector.extract_strided_slice %141 {offsets = [0, 0, 0], sizes = [2, 16, 4], strides = [1, 1, 1]} : vector<2x16x8xf32> to vector<2x16x4xf32>
    %cst_106 = arith.constant dense<0.000000e+00> : vector<2x16xf32>
    %145 = vector.multi_reduction <add>, %144, %cst_106 [2] : vector<2x16x4xf32> to vector<2x16xf32>
    %146 = vector.extract_strided_slice %141 {offsets = [0, 0, 4], sizes = [2, 16, 4], strides = [1, 1, 1]} : vector<2x16x8xf32> to vector<2x16x4xf32>
    %cst_107 = arith.constant dense<0.000000e+00> : vector<2x16xf32>
    %147 = vector.multi_reduction <add>, %146, %cst_107 [2] : vector<2x16x4xf32> to vector<2x16xf32>
    %148 = vector.extract_strided_slice %143 {offsets = [0, 0, 0], sizes = [2, 16, 4], strides = [1, 1, 1]} : vector<2x16x8xf32> to vector<2x16x4xf32>
    %cst_108 = arith.constant dense<0.000000e+00> : vector<2x16xf32>
    %149 = vector.multi_reduction <add>, %148, %cst_108 [2] : vector<2x16x4xf32> to vector<2x16xf32>
    %150 = vector.extract_strided_slice %143 {offsets = [0, 0, 4], sizes = [2, 16, 4], strides = [1, 1, 1]} : vector<2x16x8xf32> to vector<2x16x4xf32>
    %cst_109 = arith.constant dense<0.000000e+00> : vector<2x16xf32>
    %151 = vector.multi_reduction <add>, %150, %cst_109 [2] : vector<2x16x4xf32> to vector<2x16xf32>
    %152 = arith.addf %145, %149 : vector<2x16xf32>
    %153 = arith.addf %152, %147 : vector<2x16xf32>
    %154 = arith.addf %153, %151 : vector<2x16xf32>
    %cst_110 = arith.constant 1.562500e-02 : f32
    %155 = vector.broadcast %cst_110 : f32 to vector<2x16xf32>
    %156 = arith.mulf %154, %155 : vector<2x16xf32>
    %cst_111 = arith.constant 6.250000e-02 : f32
    %157 = vector.broadcast %cst_111 : f32 to vector<2x16xf32>
    %158 = arith.mulf %145, %157 : vector<2x16xf32>
    %cst_112 = arith.constant 6.250000e-02 : f32
    %159 = vector.broadcast %cst_112 : f32 to vector<2x16xf32>
    %160 = arith.mulf %149, %159 : vector<2x16xf32>
    %cst_113 = arith.constant 6.250000e-02 : f32
    %161 = vector.broadcast %cst_113 : f32 to vector<2x16xf32>
    %162 = arith.mulf %147, %161 : vector<2x16xf32>
    %cst_114 = arith.constant 6.250000e-02 : f32
    %163 = vector.broadcast %cst_114 : f32 to vector<2x16xf32>
    %164 = arith.mulf %151, %163 : vector<2x16xf32>
    %c0_115 = arith.constant 0 : index
    %c0_116 = arith.constant 0 : index
    %c0_117 = arith.constant 0 : index
    %165 = vector.load %arg8[%c0_115, %c0_116, %c0_117] : memref<5x16x64xf32, #tpu.memory_space<vmem>>, vector<1x16x64xf32>
    %166 = vector.shape_cast %165 : vector<1x16x64xf32> to vector<16x64xf32>
    %cst_118 = arith.constant dense<0.000000e+00> : vector<2x64xf32>
    %167 = tpu.matmul %156, %166, %cst_118 {dimension_numbers = #tpu.dot_dimension_numbers<[1], [0], [0], [1], [0, 0, 1, 1], [], []>} : vector<2x16xf32>, vector<16x64xf32>, vector<2x64xf32> -> vector<2x64xf32>
    %168 = arith.addf %138, %167 : vector<2x64xf32>
    %c1_119 = arith.constant 1 : index
    %c0_120 = arith.constant 0 : index
    %c0_121 = arith.constant 0 : index
    %169 = vector.load %arg8[%c1_119, %c0_120, %c0_121] : memref<5x16x64xf32, #tpu.memory_space<vmem>>, vector<1x16x64xf32>
    %170 = vector.shape_cast %169 : vector<1x16x64xf32> to vector<16x64xf32>
    %cst_122 = arith.constant dense<0.000000e+00> : vector<2x64xf32>
    %171 = tpu.matmul %158, %170, %cst_122 {dimension_numbers = #tpu.dot_dimension_numbers<[1], [0], [0], [1], [0, 0, 1, 1], [], []>} : vector<2x16xf32>, vector<16x64xf32>, vector<2x64xf32> -> vector<2x64xf32>
    %172 = arith.addf %168, %171 : vector<2x64xf32>
    %c2_123 = arith.constant 2 : index
    %c0_124 = arith.constant 0 : index
    %c0_125 = arith.constant 0 : index
    %173 = vector.load %arg8[%c2_123, %c0_124, %c0_125] : memref<5x16x64xf32, #tpu.memory_space<vmem>>, vector<1x16x64xf32>
    %174 = vector.shape_cast %173 : vector<1x16x64xf32> to vector<16x64xf32>
    %cst_126 = arith.constant dense<0.000000e+00> : vector<2x64xf32>
    %175 = tpu.matmul %160, %174, %cst_126 {dimension_numbers = #tpu.dot_dimension_numbers<[1], [0], [0], [1], [0, 0, 1, 1], [], []>} : vector<2x16xf32>, vector<16x64xf32>, vector<2x64xf32> -> vector<2x64xf32>
    %176 = arith.addf %172, %175 : vector<2x64xf32>
    %c3_127 = arith.constant 3 : index
    %c0_128 = arith.constant 0 : index
    %c0_129 = arith.constant 0 : index
    %177 = vector.load %arg8[%c3_127, %c0_128, %c0_129] : memref<5x16x64xf32, #tpu.memory_space<vmem>>, vector<1x16x64xf32>
    %178 = vector.shape_cast %177 : vector<1x16x64xf32> to vector<16x64xf32>
    %cst_130 = arith.constant dense<0.000000e+00> : vector<2x64xf32>
    %179 = tpu.matmul %162, %178, %cst_130 {dimension_numbers = #tpu.dot_dimension_numbers<[1], [0], [0], [1], [0, 0, 1, 1], [], []>} : vector<2x16xf32>, vector<16x64xf32>, vector<2x64xf32> -> vector<2x64xf32>
    %180 = arith.addf %176, %179 : vector<2x64xf32>
    %c4_131 = arith.constant 4 : index
    %c0_132 = arith.constant 0 : index
    %c0_133 = arith.constant 0 : index
    %181 = vector.load %arg8[%c4_131, %c0_132, %c0_133] : memref<5x16x64xf32, #tpu.memory_space<vmem>>, vector<1x16x64xf32>
    %182 = vector.shape_cast %181 : vector<1x16x64xf32> to vector<16x64xf32>
    %cst_134 = arith.constant dense<0.000000e+00> : vector<2x64xf32>
    %183 = tpu.matmul %164, %182, %cst_134 {dimension_numbers = #tpu.dot_dimension_numbers<[1], [0], [0], [1], [0, 0, 1, 1], [], []>} : vector<2x16xf32>, vector<16x64xf32>, vector<2x64xf32> -> vector<2x64xf32>
    %184 = arith.addf %180, %183 : vector<2x64xf32>
    %c0_135 = arith.constant 0 : index
    %c0_136 = arith.constant 0 : index
    %c0_137 = arith.constant 0 : index
    %c0_138 = arith.constant 0 : index
    %185 = vector.load %arg4[%c0_135, %c0_136, %c0_137, %c0_138] : memref<2x24x4x4xf32, #tpu.memory_space<vmem>>, vector<2x24x4x4xf32>
    %186 = vector.extract_strided_slice %185 {offsets = [0, 0, 0, 0], sizes = [2, 24, 4, 2], strides = [1, 1, 1, 1]} : vector<2x24x4x4xf32> to vector<2x24x4x2xf32>
    %cst_139 = arith.constant dense<0.000000e+00> : vector<2x24x4xf32>
    %187 = vector.multi_reduction <add>, %186, %cst_139 [3] : vector<2x24x4x2xf32> to vector<2x24x4xf32>
    %188 = vector.extract_strided_slice %185 {offsets = [0, 0, 0, 2], sizes = [2, 24, 4, 2], strides = [1, 1, 1, 1]} : vector<2x24x4x4xf32> to vector<2x24x4x2xf32>
    %cst_140 = arith.constant dense<0.000000e+00> : vector<2x24x4xf32>
    %189 = vector.multi_reduction <add>, %188, %cst_140 [3] : vector<2x24x4x2xf32> to vector<2x24x4xf32>
    %190 = vector.extract_strided_slice %187 {offsets = [0, 0, 0], sizes = [2, 24, 2], strides = [1, 1, 1]} : vector<2x24x4xf32> to vector<2x24x2xf32>
    %cst_141 = arith.constant dense<0.000000e+00> : vector<2x24xf32>
    %191 = vector.multi_reduction <add>, %190, %cst_141 [2] : vector<2x24x2xf32> to vector<2x24xf32>
    %192 = vector.extract_strided_slice %187 {offsets = [0, 0, 2], sizes = [2, 24, 2], strides = [1, 1, 1]} : vector<2x24x4xf32> to vector<2x24x2xf32>
    %cst_142 = arith.constant dense<0.000000e+00> : vector<2x24xf32>
    %193 = vector.multi_reduction <add>, %192, %cst_142 [2] : vector<2x24x2xf32> to vector<2x24xf32>
    %194 = vector.extract_strided_slice %189 {offsets = [0, 0, 0], sizes = [2, 24, 2], strides = [1, 1, 1]} : vector<2x24x4xf32> to vector<2x24x2xf32>
    %cst_143 = arith.constant dense<0.000000e+00> : vector<2x24xf32>
    %195 = vector.multi_reduction <add>, %194, %cst_143 [2] : vector<2x24x2xf32> to vector<2x24xf32>
    %196 = vector.extract_strided_slice %189 {offsets = [0, 0, 2], sizes = [2, 24, 2], strides = [1, 1, 1]} : vector<2x24x4xf32> to vector<2x24x2xf32>
    %cst_144 = arith.constant dense<0.000000e+00> : vector<2x24xf32>
    %197 = vector.multi_reduction <add>, %196, %cst_144 [2] : vector<2x24x2xf32> to vector<2x24xf32>
    %198 = arith.addf %191, %195 : vector<2x24xf32>
    %199 = arith.addf %198, %193 : vector<2x24xf32>
    %200 = arith.addf %199, %197 : vector<2x24xf32>
    %cst_145 = arith.constant 6.250000e-02 : f32
    %201 = vector.broadcast %cst_145 : f32 to vector<2x24xf32>
    %202 = arith.mulf %200, %201 : vector<2x24xf32>
    %cst_146 = arith.constant 2.500000e-01 : f32
    %203 = vector.broadcast %cst_146 : f32 to vector<2x24xf32>
    %204 = arith.mulf %191, %203 : vector<2x24xf32>
    %cst_147 = arith.constant 2.500000e-01 : f32
    %205 = vector.broadcast %cst_147 : f32 to vector<2x24xf32>
    %206 = arith.mulf %195, %205 : vector<2x24xf32>
    %cst_148 = arith.constant 2.500000e-01 : f32
    %207 = vector.broadcast %cst_148 : f32 to vector<2x24xf32>
    %208 = arith.mulf %193, %207 : vector<2x24xf32>
    %cst_149 = arith.constant 2.500000e-01 : f32
    %209 = vector.broadcast %cst_149 : f32 to vector<2x24xf32>
    %210 = arith.mulf %197, %209 : vector<2x24xf32>
    %c0_150 = arith.constant 0 : index
    %c0_151 = arith.constant 0 : index
    %c0_152 = arith.constant 0 : index
    %211 = vector.load %arg9[%c0_150, %c0_151, %c0_152] : memref<5x24x64xf32, #tpu.memory_space<vmem>>, vector<1x24x64xf32>
    %212 = vector.shape_cast %211 : vector<1x24x64xf32> to vector<24x64xf32>
    %cst_153 = arith.constant dense<0.000000e+00> : vector<2x64xf32>
    %213 = tpu.matmul %202, %212, %cst_153 {dimension_numbers = #tpu.dot_dimension_numbers<[1], [0], [0], [1], [0, 0, 1, 1], [], []>} : vector<2x24xf32>, vector<24x64xf32>, vector<2x64xf32> -> vector<2x64xf32>
    %214 = arith.addf %184, %213 : vector<2x64xf32>
    %c1_154 = arith.constant 1 : index
    %c0_155 = arith.constant 0 : index
    %c0_156 = arith.constant 0 : index
    %215 = vector.load %arg9[%c1_154, %c0_155, %c0_156] : memref<5x24x64xf32, #tpu.memory_space<vmem>>, vector<1x24x64xf32>
    %216 = vector.shape_cast %215 : vector<1x24x64xf32> to vector<24x64xf32>
    %cst_157 = arith.constant dense<0.000000e+00> : vector<2x64xf32>
    %217 = tpu.matmul %204, %216, %cst_157 {dimension_numbers = #tpu.dot_dimension_numbers<[1], [0], [0], [1], [0, 0, 1, 1], [], []>} : vector<2x24xf32>, vector<24x64xf32>, vector<2x64xf32> -> vector<2x64xf32>
    %218 = arith.addf %214, %217 : vector<2x64xf32>
    %c2_158 = arith.constant 2 : index
    %c0_159 = arith.constant 0 : index
    %c0_160 = arith.constant 0 : index
    %219 = vector.load %arg9[%c2_158, %c0_159, %c0_160] : memref<5x24x64xf32, #tpu.memory_space<vmem>>, vector<1x24x64xf32>
    %220 = vector.shape_cast %219 : vector<1x24x64xf32> to vector<24x64xf32>
    %cst_161 = arith.constant dense<0.000000e+00> : vector<2x64xf32>
    %221 = tpu.matmul %206, %220, %cst_161 {dimension_numbers = #tpu.dot_dimension_numbers<[1], [0], [0], [1], [0, 0, 1, 1], [], []>} : vector<2x24xf32>, vector<24x64xf32>, vector<2x64xf32> -> vector<2x64xf32>
    %222 = arith.addf %218, %221 : vector<2x64xf32>
    %c3_162 = arith.constant 3 : index
    %c0_163 = arith.constant 0 : index
    %c0_164 = arith.constant 0 : index
    %223 = vector.load %arg9[%c3_162, %c0_163, %c0_164] : memref<5x24x64xf32, #tpu.memory_space<vmem>>, vector<1x24x64xf32>
    %224 = vector.shape_cast %223 : vector<1x24x64xf32> to vector<24x64xf32>
    %cst_165 = arith.constant dense<0.000000e+00> : vector<2x64xf32>
    %225 = tpu.matmul %208, %224, %cst_165 {dimension_numbers = #tpu.dot_dimension_numbers<[1], [0], [0], [1], [0, 0, 1, 1], [], []>} : vector<2x24xf32>, vector<24x64xf32>, vector<2x64xf32> -> vector<2x64xf32>
    %226 = arith.addf %222, %225 : vector<2x64xf32>
    %c4_166 = arith.constant 4 : index
    %c0_167 = arith.constant 0 : index
    %c0_168 = arith.constant 0 : index
    %227 = vector.load %arg9[%c4_166, %c0_167, %c0_168] : memref<5x24x64xf32, #tpu.memory_space<vmem>>, vector<1x24x64xf32>
    %228 = vector.shape_cast %227 : vector<1x24x64xf32> to vector<24x64xf32>
    %cst_169 = arith.constant dense<0.000000e+00> : vector<2x64xf32>
    %229 = tpu.matmul %210, %228, %cst_169 {dimension_numbers = #tpu.dot_dimension_numbers<[1], [0], [0], [1], [0, 0, 1, 1], [], []>} : vector<2x24xf32>, vector<24x64xf32>, vector<2x64xf32> -> vector<2x64xf32>
    %230 = arith.addf %226, %229 : vector<2x64xf32>
    %c0_170 = arith.constant 0 : index
    %c0_171 = arith.constant 0 : index
    %231 = vector.load %arg10[%c0_170, %c0_171] : memref<1x64xf32, #tpu.memory_space<vmem>>, vector<1x64xf32>
    %232 = vector.broadcast %231 : vector<1x64xf32> to vector<2x64xf32>
    %233 = arith.addf %230, %232 : vector<2x64xf32>
    %cst_172 = arith.constant 0.000000e+00 : f32
    %234 = vector.broadcast %cst_172 : f32 to vector<2x64xf32>
    %235 = arith.subf %234, %233 : vector<2x64xf32>
    %236 = math.exp %235 : vector<2x64xf32>
    %cst_173 = arith.constant 1.000000e+00 : f32
    %237 = vector.broadcast %cst_173 : f32 to vector<2x64xf32>
    %238 = arith.addf %237, %236 : vector<2x64xf32>
    %239 = tpu.reciprocal %238 {approx = true} : vector<2x64xf32> -> vector<2x64xf32>
    %c0_174 = arith.constant 0 : index
    %c0_175 = arith.constant 0 : index
    %240 = vector.load %arg11[%c0_174, %c0_175] : memref<2x64xf32, #tpu.memory_space<vmem>>, vector<2x64xf32>
    tpu.vector_store %arg11[%c0_174, %c0_175], %239 {strides = array<i32>} : memref<2x64xf32, #tpu.memory_space<vmem>>, vector<2x64xf32>,
    return
  }
}

</mosaic_0001>

<llo_original>
// kernel: aca_forward.1
$region0: #{aca_forward.1}
  #allocation0 [shape = 'u32[]', space=smem, size = 0x4, offset = 0x4, fixed_abs, tag = 'smem constant byte address 0x4 - core index']
  #allocation1 [shape = 'u32[72,128]{1,0:T(1,128)}', space=vmem, size = 0x9000, scoped, tag = 'internal scratch']
  %s0 = inlined_call_operand.vmem [shape: f32[2,4,16,16], index: 0, kind: input, shape index: {}]
  %s1 = inlined_call_operand.vmem [shape: f32[2,8,16,16], index: 1, kind: input, shape index: {}]
  %s2 = inlined_call_operand.vmem [shape: f32[2,12,8,8], index: 2, kind: input, shape index: {}]
  %s3 = inlined_call_operand.vmem [shape: f32[2,16,8,8], index: 3, kind: input, shape index: {}]
  %s4 = inlined_call_operand.vmem [shape: f32[2,24,4,4], index: 4, kind: input, shape index: {}]
  %s5 = inlined_call_operand.vmem [shape: f32[5,4,64], index: 5, kind: input, shape index: {}]
  %s6 = inlined_call_operand.vmem [shape: f32[5,8,64], index: 6, kind: input, shape index: {}]
  %s7 = inlined_call_operand.vmem [shape: f32[5,12,64], index: 7, kind: input, shape index: {}]
  %s8 = inlined_call_operand.vmem [shape: f32[5,16,64], index: 8, kind: input, shape index: {}]
  %s9 = inlined_call_operand.vmem [shape: f32[5,24,64], index: 9, kind: input, shape index: {}]
  %s10 = inlined_call_operand.vmem [shape: f32[1,64], index: 10, kind: input, shape index: {}]
  %s11 = inlined_call_operand.vmem [shape: f32[2,64], index: 11, kind: output, shape index: {}]
  %s12 = sld [smem:[#allocation0]]
  $region54: #{aca_forward.1} parent=0
    _
  %s14 = ssub.s32 1, %s12
  %s15 = scalar_select 0, %s14, %s12
  // Predicated region
  $region2: #{aca_forward.1} parent=0 // pred_check
    _
  $region3: #{aca_forward.1} parent=0 // pred_check_branch
    %17 = sbr.rel (0) target = $region5
  $region4: #{aca_forward.1} parent=0 // pred_region
    _
  $region5: #{aca_forward.1} parent=0 // pred_fallthru
    _
  // Predicated region
  $region6: #{aca_forward.1} parent=0 // pred_check
    _
  $region7: #{aca_forward.1} parent=0 // pred_check_branch
    %19 = sbr.rel (0) target = $region9
  $region8: #{aca_forward.1} parent=0 // pred_region
    _
  $region9: #{aca_forward.1} parent=0 // pred_fallthru
    _
  // Predicated region
  $region10: #{aca_forward.1} parent=0 // pred_check
    _
  $region11: #{aca_forward.1} parent=0 // pred_check_branch
    %21 = sbr.rel (0) target = $region13
  $region12: #{aca_forward.1} parent=0 // pred_region
    _
  $region13: #{aca_forward.1} parent=0 // pred_fallthru
    _
  // Predicated region
  $region14: #{aca_forward.1} parent=0 // pred_check
    _
  $region15: #{aca_forward.1} parent=0 // pred_check_branch
    %23 = sbr.rel (0) target = $region17
  $region16: #{aca_forward.1} parent=0 // pred_region
    _
  $region17: #{aca_forward.1} parent=0 // pred_fallthru
    _
  // Predicated region
  $region18: #{aca_forward.1} parent=0 // pred_check
    _
  $region19: #{aca_forward.1} parent=0 // pred_check_branch
    %25 = sbr.rel (0) target = $region21
  $region20: #{aca_forward.1} parent=0 // pred_region
    _
  $region21: #{aca_forward.1} parent=0 // pred_fallthru
    _
  // Predicated region
  $region22: #{aca_forward.1} parent=0 // pred_check
    _
  $region23: #{aca_forward.1} parent=0 // pred_check_branch
    %27 = sbr.rel (0) target = $region25
  $region24: #{aca_forward.1} parent=0 // pred_region
    _
  $region25: #{aca_forward.1} parent=0 // pred_fallthru
    _
  // Predicated region
  $region26: #{aca_forward.1} parent=0 // pred_check
    _
  $region27: #{aca_forward.1} parent=0 // pred_check_branch
    %29 = sbr.rel (0) target = $region29
  $region28: #{aca_forward.1} parent=0 // pred_region
    _
  $region29: #{aca_forward.1} parent=0 // pred_fallthru
    _
  // Predicated region
  $region30: #{aca_forward.1} parent=0 // pred_check
    _
  $region31: #{aca_forward.1} parent=0 // pred_check_branch
    %31 = sbr.rel (0) target = $region33
  $region32: #{aca_forward.1} parent=0 // pred_region
    _
  $region33: #{aca_forward.1} parent=0 // pred_fallthru
    _
  // Predicated region
  $region34: #{aca_forward.1} parent=0 // pred_check
    _
  $region35: #{aca_forward.1} parent=0 // pred_check_branch
    %33 = sbr.rel (0) target = $region37
  $region36: #{aca_forward.1} parent=0 // pred_region
    _
  $region37: #{aca_forward.1} parent=0 // pred_fallthru
    _
  // Predicated region
  $region38: #{aca_forward.1} parent=0 // pred_check
    _
  $region39: #{aca_forward.1} parent=0 // pred_check_branch
    %35 = sbr.rel (0) target = $region41
  $region40: #{aca_forward.1} parent=0 // pred_region
    _
  $region41: #{aca_forward.1} parent=0 // pred_fallthru
    _
  // Predicated region
  $region42: #{aca_forward.1} parent=0 // pred_check
    _
  $region43: #{aca_forward.1} parent=0 // pred_check_branch
    %37 = sbr.rel (0) target = $region45
  $region44: #{aca_forward.1} parent=0 // pred_region
    _
  $region45: #{aca_forward.1} parent=0 // pred_fallthru
    _
  %v38 = vld [vmem:[%s0] sm:$0xff]
  %v39 = vld [vmem:[%s0 + $0x8] sm:$0xff]
  %v40 = vld [vmem:[%s0 + $0x10] sm:$0xff]
  %v41 = vld [vmem:[%s0 + $0x18] sm:$0xff]
  %v42 = vld [vmem:[%s0 + $0x20] sm:$0xff]
  %v43 = vld [vmem:[%s0 + $0x28] sm:$0xff]
  %v44 = vld [vmem:[%s0 + $0x30] sm:$0xff]
  %v45 = vld [vmem:[%s0 + $0x38] sm:$0xff]
  %v46 = vld [vmem:[%s0 + $0x40] sm:$0xff]
  %v47 = vld [vmem:[%s0 + $0x48] sm:$0xff]
  %v48 = vld [vmem:[%s0 + $0x50] sm:$0xff]
  %v49 = vld [vmem:[%s0 + $0x58] sm:$0xff]
  %v50 = vld [vmem:[%s0 + $0x60] sm:$0xff]
  %v51 = vld [vmem:[%s0 + $0x68] sm:$0xff]
  %v52 = vld [vmem:[%s0 + $0x70] sm:$0xff]
  %v53 = vld [vmem:[%s0 + $0x78] sm:$0xff]
  %vm54 = vcmask 64512
  %v55 = vsel %vm54, %v38, 0.0
  %56 = vadd.xlane.f32.xlu0 %v55
  %v57 = vpop.xlane.xlu0 %56
  %v58 = vsel %vm54, %v39, 0.0
  %59 = vadd.xlane.f32.xlu0 %v58
  %v60 = vpop.xlane.xlu0 %59
  %v61 = vsel %vm54, %v40, 0.0
  %62 = vadd.xlane.f32.xlu0 %v61
  %v63 = vpop.xlane.xlu0 %62
  %v64 = vsel %vm54, %v41, 0.0
  %65 = vadd.xlane.f32.xlu0 %v64
  %v66 = vpop.xlane.xlu0 %65
  %v67 = vsel %vm54, %v42, 0.0
  %68 = vadd.xlane.f32.xlu0 %v67
  %v69 = vpop.xlane.xlu0 %68
  %v70 = vsel %vm54, %v43, 0.0
  %71 = vadd.xlane.f32.xlu0 %v70
  %v72 = vpop.xlane.xlu0 %71
  %v73 = vsel %vm54, %v44, 0.0
  %74 = vadd.xlane.f32.xlu0 %v73
  %v75 = vpop.xlane.xlu0 %74
  %v76 = vsel %vm54, %v45, 0.0
  %77 = vadd.xlane.f32.xlu0 %v76
  %v78 = vpop.xlane.xlu0 %77
  %v79 = vsel %vm54, %v46, 0.0
  %80 = vadd.xlane.f32.xlu0 %v79
  %v81 = vpop.xlane.xlu0 %80
  %v82 = vsel %vm54, %v47, 0.0
  %83 = vadd.xlane.f32.xlu0 %v82
  %v84 = vpop.xlane.xlu0 %83
  %v85 = vsel %vm54, %v48, 0.0
  %86 = vadd.xlane.f32.xlu0 %v85
  %v87 = vpop.xlane.xlu0 %86
  %v88 = vsel %vm54, %v49, 0.0
  %89 = vadd.xlane.f32.xlu0 %v88
  %v90 = vpop.xlane.xlu0 %89
  %v91 = vsel %vm54, %v50, 0.0
  %92 = vadd.xlane.f32.xlu0 %v91
  %v93 = vpop.xlane.xlu0 %92
  %v94 = vsel %vm54, %v51, 0.0
  %95 = vadd.xlane.f32.xlu0 %v94
  %v96 = vpop.xlane.xlu0 %95
  %v97 = vsel %vm54, %v52, 0.0
  %98 = vadd.xlane.f32.xlu0 %v97
  %v99 = vpop.xlane.xlu0 %98
  %v100 = vsel %vm54, %v53, 0.0
  %101 = vadd.xlane.f32.xlu0 %v100
  %v102 = vpop.xlane.xlu0 %101
  %119 = vrot.lane.b32.xlu0 %v38, 120
  %v120 = vpop.permute.xlu0 %119
  %121 = vrot.lane.b32.xlu0 %v39, 120
  %v122 = vpop.permute.xlu0 %121
  %123 = vrot.lane.b32.xlu0 %v40, 120
  %v124 = vpop.permute.xlu0 %123
  %125 = vrot.lane.b32.xlu0 %v41, 120
  %v126 = vpop.permute.xlu0 %125
  %127 = vrot.lane.b32.xlu0 %v42, 120
  %v128 = vpop.permute.xlu0 %127
  %129 = vrot.lane.b32.xlu0 %v43, 120
  %v130 = vpop.permute.xlu0 %129
  %131 = vrot.lane.b32.xlu0 %v44, 120
  %v132 = vpop.permute.xlu0 %131
  %133 = vrot.lane.b32.xlu0 %v45, 120
  %v134 = vpop.permute.xlu0 %133
  %135 = vrot.lane.b32.xlu0 %v46, 120
  %v136 = vpop.permute.xlu0 %135
  %137 = vrot.lane.b32.xlu0 %v47, 120
  %v138 = vpop.permute.xlu0 %137
  %139 = vrot.lane.b32.xlu0 %v48, 120
  %v140 = vpop.permute.xlu0 %139
  %141 = vrot.lane.b32.xlu0 %v49, 120
  %v142 = vpop.permute.xlu0 %141
  %143 = vrot.lane.b32.xlu0 %v50, 120
  %v144 = vpop.permute.xlu0 %143
  %145 = vrot.lane.b32.xlu0 %v51, 120
  %v146 = vpop.permute.xlu0 %145
  %147 = vrot.lane.b32.xlu0 %v52, 120
  %v148 = vpop.permute.xlu0 %147
  %149 = vrot.lane.b32.xlu0 %v53, 120
  %v150 = vpop.permute.xlu0 %149
  %v167 = vsel %vm54, %v120, 0.0
  %168 = vadd.xlane.f32.xlu0 %v167
  %v169 = vpop.xlane.xlu0 %168
  %v170 = vsel %vm54, %v122, 0.0
  %171 = vadd.xlane.f32.xlu0 %v170
  %v172 = vpop.xlane.xlu0 %171
  %v173 = vsel %vm54, %v124, 0.0
  %174 = vadd.xlane.f32.xlu0 %v173
  %v175 = vpop.xlane.xlu0 %174
  %v176 = vsel %vm54, %v126, 0.0
  %177 = vadd.xlane.f32.xlu0 %v176
  %v178 = vpop.xlane.xlu0 %177
  %v179 = vsel %vm54, %v128, 0.0
  %180 = vadd.xlane.f32.xlu0 %v179
  %v181 = vpop.xlane.xlu0 %180
  %v182 = vsel %vm54, %v130, 0.0
  %183 = vadd.xlane.f32.xlu0 %v182
  %v184 = vpop.xlane.xlu0 %183
  %v185 = vsel %vm54, %v132, 0.0
  %186 = vadd.xlane.f32.xlu0 %v185
  %v187 = vpop.xlane.xlu0 %186
  %v188 = vsel %vm54, %v134, 0.0
  %189 = vadd.xlane.f32.xlu0 %v188
  %v190 = vpop.xlane.xlu0 %189
  %v191 = vsel %vm54, %v136, 0.0
  %192 = vadd.xlane.f32.xlu0 %v191
  %v193 = vpop.xlane.xlu0 %192
  %v194 = vsel %vm54, %v138, 0.0
  %195 = vadd.xlane.f32.xlu0 %v194
  %v196 = vpop.xlane.xlu0 %195
  %v197 = vsel %vm54, %v140, 0.0
  %198 = vadd.xlane.f32.xlu0 %v197
  %v199 = vpop.xlane.xlu0 %198
  %v200 = vsel %vm54, %v142, 0.0
  %201 = vadd.xlane.f32.xlu0 %v200
  %v202 = vpop.xlane.xlu0 %201
  %v203 = vsel %vm54, %v144, 0.0
  %204 = vadd.xlane.f32.xlu0 %v203
  %v205 = vpop.xlane.xlu0 %204
  %v206 = vsel %vm54, %v146, 0.0
  %207 = vadd.xlane.f32.xlu0 %v206
  %v208 = vpop.xlane.xlu0 %207
  %v209 = vsel %vm54, %v148, 0.0
  %210 = vadd.xlane.f32.xlu0 %v209
  %v211 = vpop.xlane.xlu0 %210
  %v212 = vsel %vm54, %v150, 0.0
  %213 = vadd.xlane.f32.xlu0 %v212
  %v214 = vpop.xlane.xlu0 %213
  %v223 = vlaneseq
  %v224 = vand.u32 %v223, 127
  %v225 = vperm.slane %v57, %v224
  %v226 = vperm.slane %v63, %v224
  %v227 = vperm.slane %v69, %v224
  %v228 = vperm.slane %v75, %v224
  %v229 = vperm.slane %v81, %v224
  %v230 = vperm.slane %v87, %v224
  %v231 = vperm.slane %v93, %v224
  %v232 = vperm.slane %v99, %v224
  %vm233 = vcmask 1041409
  %v234 = vsel %vm233, %v226, %v225
  %vm235 = vcmask 1042434
  %v236 = vsel %vm235, %v227, %v234
  %vm237 = vcmask 1043459
  %v238 = vsel %vm237, %v228, %v236
  %v239 = vsel %vm233, %v230, %v229
  %v240 = vsel %vm235, %v231, %v239
  %v241 = vsel %vm237, %v232, %v240
  %vm244 = vcmask 60416
  %v245 = vsel %vm244, %v238, 0.0
  %246 = vadd.xlane.f32.xlu0 %v245
  %v247 = vpop.xlane.xlu0 %246
  %v248 = vsel %vm244, %v241, 0.0
  %249 = vadd.xlane.f32.xlu0 %v248
  %v250 = vpop.xlane.xlu0 %249
  %v259 = vperm.slane %v60, %v224
  %v260 = vperm.slane %v66, %v224
  %v261 = vperm.slane %v72, %v224
  %v262 = vperm.slane %v78, %v224
  %v263 = vperm.slane %v84, %v224
  %v264 = vperm.slane %v90, %v224
  %v265 = vperm.slane %v96, %v224
  %v266 = vperm.slane %v102, %v224
  %v267 = vsel %vm233, %v260, %v259
  %v268 = vsel %vm235, %v261, %v267
  %v269 = vsel %vm237, %v262, %v268
  %v270 = vsel %vm233, %v264, %v263
  %v271 = vsel %vm235, %v265, %v270
  %v272 = vsel %vm237, %v266, %v271
  %v275 = vsel %vm244, %v269, 0.0
  %276 = vadd.xlane.f32.xlu0 %v275
  %v277 = vpop.xlane.xlu0 %276
  %v278 = vsel %vm244, %v272, 0.0
  %279 = vadd.xlane.f32.xlu0 %v278
  %v280 = vpop.xlane.xlu0 %279
  %v289 = vperm.slane %v169, %v224
  %v290 = vperm.slane %v175, %v224
  %v291 = vperm.slane %v181, %v224
  %v292 = vperm.slane %v187, %v224
  %v293 = vperm.slane %v193, %v224
  %v294 = vperm.slane %v199, %v224
  %v295 = vperm.slane %v205, %v224
  %v296 = vperm.slane %v211, %v224
  %v297 = vsel %vm233, %v290, %v289
  %v298 = vsel %vm235, %v291, %v297
  %v299 = vsel %vm237, %v292, %v298
  %v300 = vsel %vm233, %v294, %v293
  %v301 = vsel %vm235, %v295, %v300
  %v302 = vsel %vm237, %v296, %v301
  %v305 = vsel %vm244, %v299, 0.0
  %306 = vadd.xlane.f32.xlu0 %v305
  %v307 = vpop.xlane.xlu0 %306
  %v308 = vsel %vm244, %v302, 0.0
  %309 = vadd.xlane.f32.xlu0 %v308
  %v310 = vpop.xlane.xlu0 %309
  %v319 = vperm.slane %v172, %v224
  %v320 = vperm.slane %v178, %v224
  %v321 = vperm.slane %v184, %v224
  %v322 = vperm.slane %v190, %v224
  %v323 = vperm.slane %v196, %v224
  %v324 = vperm.slane %v202, %v224
  %v325 = vperm.slane %v208, %v224
  %v326 = vperm.slane %v214, %v224
  %v327 = vsel %vm233, %v320, %v319
  %v328 = vsel %vm235, %v321, %v327
  %v329 = vsel %vm237, %v322, %v328
  %v330 = vsel %vm233, %v324, %v323
  %v331 = vsel %vm235, %v325, %v330
  %v332 = vsel %vm237, %v326, %v331
  %v335 = vsel %vm244, %v329, 0.0
  %336 = vadd.xlane.f32.xlu0 %v335
  %v337 = vpop.xlane.xlu0 %336
  %v338 = vsel %vm244, %v332, 0.0
  %339 = vadd.xlane.f32.xlu0 %v338
  %v340 = vpop.xlane.xlu0 %339
  %v341 = vadd.f32 %v247, %v307
  %v342 = vadd.f32 %v250, %v310
  %v343 = vadd.f32 %v341, %v277
  %v344 = vadd.f32 %v342, %v280
  %v345 = vadd.f32 %v343, %v337
  %v346 = vadd.f32 %v344, %v340
  %v347 = vmul.f32 %v345, 0.00390625
  %v348 = vmul.f32 %v346, 0.00390625
  %v349 = vmul.f32 %v247, 0.015625
  %v350 = vmul.f32 %v250, 0.015625
  %v351 = vmul.f32 %v307, 0.015625
  %v352 = vmul.f32 %v310, 0.015625
  %v353 = vmul.f32 %v277, 0.015625
  %v354 = vmul.f32 %v280, 0.015625
  %v355 = vmul.f32 %v337, 0.015625
  %v356 = vmul.f32 %v340, 0.015625
  %v357 = vld [vmem:[%s5] sm:$0xf]
  %s358 = scalar_lea.vmem %s5, 4
  %v359 = vld [vmem:[%s358] sm:$0xf]
  %v362 = vperm.slane %v349, %v224
  %v363 = vperm.slane %v350, %v224
  %v364 = vsel %vm233, %v363, %v362
  %vm365 = vcmask 31744
  %v366 = vsel %vm365, %v364, 0
  %vm368 = vcmask 1043456
  %v370 = vsel %vm368, %v359, 0
  %372 = vmatpush.msra.mxu0 0.0
  %373 = vmatpush.msra.mxu0 0.0
  %374 = vmatpush.msra.mxu0 0.0
  %375 = vmatpush.msra.mxu0 0.0
  %376 = vmatpush.msra.mxu0 0.0
  %377 = vmatpush.msra.mxu0 0.0
  %378 = vmatpush.msra.mxu0 0.0
  %379 = vmatpush.msra.mxu0 0.0
  %380 = vmatpush.msra.mxu0 0.0
  %381 = vmatpush.msra.mxu0 0.0
  %382 = vmatpush.msra.mxu0 0.0
  %383 = vmatpush.msra.mxu0 0.0
  %384 = vmatpush.msra.mxu0 0.0
  %385 = vmatpush.msra.mxu0 0.0
  %386 = vmatpush.msra.mxu0 0.0
  %387 = vmatpush.msra.mxu0 %v370
  %388 = vmatmul.f32.gmra.mxu0 %v366
  %v389 = vpop.f32.mrf.mxu0
  %v390 = vadd.f32 0.0, %v389
  %391 = vdwg.mxu0
  %v394 = vperm.slane %v347, %v224
  %v395 = vperm.slane %v348, %v224
  %v396 = vsel %vm233, %v395, %v394
  %v397 = vsel %vm365, %v396, 0
  %v400 = vsel %vm368, %v357, 0
  %402 = vmatpush.msra.mxu0 0.0
  %403 = vmatpush.msra.mxu0 0.0
  %404 = vmatpush.msra.mxu0 0.0
  %405 = vmatpush.msra.mxu0 0.0
  %406 = vmatpush.msra.mxu0 0.0
  %407 = vmatpush.msra.mxu0 0.0
  %408 = vmatpush.msra.mxu0 0.0
  %409 = vmatpush.msra.mxu0 0.0
  %410 = vmatpush.msra.mxu0 0.0
  %411 = vmatpush.msra.mxu0 0.0
  %412 = vmatpush.msra.mxu0 0.0
  %413 = vmatpush.msra.mxu0 0.0
  %414 = vmatpush.msra.mxu0 0.0
  %415 = vmatpush.msra.mxu0 0.0
  %416 = vmatpush.msra.mxu0 0.0
  %417 = vmatpush.msra.mxu0 %v400
  %418 = vmatmul.f32.gmra.mxu0 %v397
  %v419 = vpop.f32.mrf.mxu0
  %v420 = vadd.f32 %v390, %v419
  %421 = vdwg.mxu0
  %s422 = scalar_lea.vmem %s5, 8
  %v423 = vld [vmem:[%s422] sm:$0xf]
  %v426 = vperm.slane %v351, %v224
  %v427 = vperm.slane %v352, %v224
  %v428 = vsel %vm233, %v427, %v426
  %v429 = vsel %vm365, %v428, 0
  %v432 = vsel %vm368, %v423, 0
  %434 = vmatpush.msra.mxu0 0.0
  %435 = vmatpush.msra.mxu0 0.0
  %436 = vmatpush.msra.mxu0 0.0
  %437 = vmatpush.msra.mxu0 0.0
  %438 = vmatpush.msra.mxu0 0.0
  %439 = vmatpush.msra.mxu0 0.0
  %440 = vmatpush.msra.mxu0 0.0
  %441 = vmatpush.msra.mxu0 0.0
  %442 = vmatpush.msra.mxu0 0.0
  %443 = vmatpush.msra.mxu0 0.0
  %444 = vmatpush.msra.mxu0 0.0
  %445 = vmatpush.msra.mxu0 0.0
  %446 = vmatpush.msra.mxu0 0.0
  %447 = vmatpush.msra.mxu0 0.0
  %448 = vmatpush.msra.mxu0 0.0
  %449 = vmatpush.msra.mxu0 %v432
  %450 = vmatmul.f32.gmra.mxu0 %v429
  %v451 = vpop.f32.mrf.mxu0
  %v452 = vadd.f32 0.0, %v451
  %453 = vdwg.mxu0
  %v454 = vadd.f32 %v420, %v452
  %s455 = scalar_lea.vmem %s5, 12
  %v456 = vld [vmem:[%s455] sm:$0xf]
  %v459 = vperm.slane %v353, %v224
  %v460 = vperm.slane %v354, %v224
  %v461 = vsel %vm233, %v460, %v459
  %v462 = vsel %vm365, %v461, 0
  %v465 = vsel %vm368, %v456, 0
  %467 = vmatpush.msra.mxu0 0.0
  %468 = vmatpush.msra.mxu0 0.0
  %469 = vmatpush.msra.mxu0 0.0
  %470 = vmatpush.msra.mxu0 0.0
  %471 = vmatpush.msra.mxu0 0.0
  %472 = vmatpush.msra.mxu0 0.0
  %473 = vmatpush.msra.mxu0 0.0
  %474 = vmatpush.msra.mxu0 0.0
  %475 = vmatpush.msra.mxu0 0.0
  %476 = vmatpush.msra.mxu0 0.0
  %477 = vmatpush.msra.mxu0 0.0
  %478 = vmatpush.msra.mxu0 0.0
  %479 = vmatpush.msra.mxu0 0.0
  %480 = vmatpush.msra.mxu0 0.0
  %481 = vmatpush.msra.mxu0 0.0
  %482 = vmatpush.msra.mxu0 %v465
  %483 = vmatmul.f32.gmra.mxu0 %v462
  %v484 = vpop.f32.mrf.mxu0
  %v485 = vadd.f32 0.0, %v484
  %486 = vdwg.mxu0
  %v487 = vadd.f32 %v454, %v485
  %s488 = scalar_lea.vmem %s5, 16
  %v489 = vld [vmem:[%s488] sm:$0xf]
  %v492 = vperm.slane %v355, %v224
  %v493 = vperm.slane %v356, %v224
  %v494 = vsel %vm233, %v493, %v492
  %v495 = vsel %vm365, %v494, 0
  %v498 = vsel %vm368, %v489, 0
  %500 = vmatpush.msra.mxu0 0.0
  %501 = vmatpush.msra.mxu0 0.0
  %502 = vmatpush.msra.mxu0 0.0
  %503 = vmatpush.msra.mxu0 0.0
  %504 = vmatpush.msra.mxu0 0.0
  %505 = vmatpush.msra.mxu0 0.0
  %506 = vmatpush.msra.mxu0 0.0
  %507 = vmatpush.msra.mxu0 0.0
  %508 = vmatpush.msra.mxu0 0.0
  %509 = vmatpush.msra.mxu0 0.0
  %510 = vmatpush.msra.mxu0 0.0
  %511 = vmatpush.msra.mxu0 0.0
  %512 = vmatpush.msra.mxu0 0.0
  %513 = vmatpush.msra.mxu0 0.0
  %514 = vmatpush.msra.mxu0 0.0
  %515 = vmatpush.msra.mxu0 %v498
  %516 = vmatmul.f32.gmra.mxu0 %v495
  %v517 = vpop.f32.mrf.mxu0
  %v518 = vadd.f32 0.0, %v517
  %519 = vdwg.mxu0
  %v520 = vadd.f32 %v487, %v518
  %v521 = vld [vmem:[%s1] sm:$0xff]
  %v522 = vld [vmem:[%s1 + $0x8] sm:$0xff]
  %v523 = vld [vmem:[%s1 + $0x10] sm:$0xff]
  %v524 = vld [vmem:[%s1 + $0x18] sm:$0xff]
  %v525 = vld [vmem:[%s1 + $0x20] sm:$0xff]
  %v526 = vld [vmem:[%s1 + $0x28] sm:$0xff]
  %v527 = vld [vmem:[%s1 + $0x30] sm:$0xff]
  %v528 = vld [vmem:[%s1 + $0x38] sm:$0xff]
  %v529 = vld [vmem:[%s1 + $0x40] sm:$0xff]
  %v530 = vld [vmem:[%s1 + $0x48] sm:$0xff]
  %v531 = vld [vmem:[%s1 + $0x50] sm:$0xff]
  %v532 = vld [vmem:[%s1 + $0x58] sm:$0xff]
  %v533 = vld [vmem:[%s1 + $0x60] sm:$0xff]
  %v534 = vld [vmem:[%s1 + $0x68] sm:$0xff]
  %v535 = vld [vmem:[%s1 + $0x70] sm:$0xff]
  %v536 = vld [vmem:[%s1 + $0x78] sm:$0xff]
  %v537 = vld [vmem:[%s1 + $0x80] sm:$0xff]
  %v538 = vld [vmem:[%s1 + $0x88] sm:$0xff]
  %v539 = vld [vmem:[%s1 + $0x90] sm:$0xff]
  %v540 = vld [vmem:[%s1 + $0x98] sm:$0xff]
  %v541 = vld [vmem:[%s1 + $0xa0] sm:$0xff]
  %v542 = vld [vmem:[%s1 + $0xa8] sm:$0xff]
  %v543 = vld [vmem:[%s1 + $0xb0] sm:$0xff]
  %v544 = vld [vmem:[%s1 + $0xb8] sm:$0xff]
  %v545 = vld [vmem:[%s1 + $0xc0] sm:$0xff]
  %v546 = vld [vmem:[%s1 + $0xc8] sm:$0xff]
  %v547 = vld [vmem:[%s1 + $0xd0] sm:$0xff]
  %v548 = vld [vmem:[%s1 + $0xd8] sm:$0xff]
  %v549 = vld [vmem:[%s1 + $0xe0] sm:$0xff]
  %v550 = vld [vmem:[%s1 + $0xe8] sm:$0xff]
  %v551 = vld [vmem:[%s1 + $0xf0] sm:$0xff]
  %v552 = vld [vmem:[%s1 + $0xf8] sm:$0xff]
  %v553 = vsel %vm54, %v521, 0.0
  %554 = vadd.xlane.f32.xlu0 %v553
  %v555 = vpop.xlane.xlu0 %554
  %v556 = vsel %vm54, %v522, 0.0
  %557 = vadd.xlane.f32.xlu0 %v556
  %v558 = vpop.xlane.xlu0 %557
  %v559 = vsel %vm54, %v523, 0.0
  %560 = vadd.xlane.f32.xlu0 %v559
  %v561 = vpop.xlane.xlu0 %560
  %v562 = vsel %vm54, %v524, 0.0
  %563 = vadd.xlane.f32.xlu0 %v562
  %v564 = vpop.xlane.xlu0 %563
  %v565 = vsel %vm54, %v525, 0.0
  %566 = vadd.xlane.f32.xlu0 %v565
  %v567 = vpop.xlane.xlu0 %566
  %v568 = vsel %vm54, %v526, 0.0
  %569 = vadd.xlane.f32.xlu0 %v568
  %v570 = vpop.xlane.xlu0 %569
  %v571 = vsel %vm54, %v527, 0.0
  %572 = vadd.xlane.f32.xlu0 %v571
  %v573 = vpop.xlane.xlu0 %572
  %v574 = vsel %vm54, %v528, 0.0
  %575 = vadd.xlane.f32.xlu0 %v574
  %v576 = vpop.xlane.xlu0 %575
  %v577 = vsel %vm54, %v529, 0.0
  %578 = vadd.xlane.f32.xlu0 %v577
  %v579 = vpop.xlane.xlu0 %578
  %v580 = vsel %vm54, %v530, 0.0
  %581 = vadd.xlane.f32.xlu0 %v580
  %v582 = vpop.xlane.xlu0 %581
  %v583 = vsel %vm54, %v531, 0.0
  %584 = vadd.xlane.f32.xlu0 %v583
  %v585 = vpop.xlane.xlu0 %584
  %v586 = vsel %vm54, %v532, 0.0
  %587 = vadd.xlane.f32.xlu0 %v586
  %v588 = vpop.xlane.xlu0 %587
  %v589 = vsel %vm54, %v533, 0.0
  %590 = vadd.xlane.f32.xlu0 %v589
  %v591 = vpop.xlane.xlu0 %590
  %v592 = vsel %vm54, %v534, 0.0
  %593 = vadd.xlane.f32.xlu0 %v592
  %v594 = vpop.xlane.xlu0 %593
  %v595 = vsel %vm54, %v535, 0.0
  %596 = vadd.xlane.f32.xlu0 %v595
  %v597 = vpop.xlane.xlu0 %596
  %v598 = vsel %vm54, %v536, 0.0
  %599 = vadd.xlane.f32.xlu0 %v598
  %v600 = vpop.xlane.xlu0 %599
  %v601 = vsel %vm54, %v537, 0.0
  %602 = vadd.xlane.f32.xlu0 %v601
  %v603 = vpop.xlane.xlu0 %602
  %v604 = vsel %vm54, %v538, 0.0
  %605 = vadd.xlane.f32.xlu0 %v604
  %v606 = vpop.xlane.xlu0 %605
  %v607 = vsel %vm54, %v539, 0.0
  %608 = vadd.xlane.f32.xlu0 %v607
  %v609 = vpop.xlane.xlu0 %608
  %v610 = vsel %vm54, %v540, 0.0
  %611 = vadd.xlane.f32.xlu0 %v610
  %v612 = vpop.xlane.xlu0 %611
  %v613 = vsel %vm54, %v541, 0.0
  %614 = vadd.xlane.f32.xlu0 %v613
  %v615 = vpop.xlane.xlu0 %614
  %v616 = vsel %vm54, %v542, 0.0
  %617 = vadd.xlane.f32.xlu0 %v616
  %v618 = vpop.xlane.xlu0 %617
  %v619 = vsel %vm54, %v543, 0.0
  %620 = vadd.xlane.f32.xlu0 %v619
  %v621 = vpop.xlane.xlu0 %620
  %v622 = vsel %vm54, %v544, 0.0
  %623 = vadd.xlane.f32.xlu0 %v622
  %v624 = vpop.xlane.xlu0 %623
  %v625 = vsel %vm54, %v545, 0.0
  %626 = vadd.xlane.f32.xlu0 %v625
  %v627 = vpop.xlane.xlu0 %626
  %v628 = vsel %vm54, %v546, 0.0
  %629 = vadd.xlane.f32.xlu0 %v628
  %v630 = vpop.xlane.xlu0 %629
  %v631 = vsel %vm54, %v547, 0.0
  %632 = vadd.xlane.f32.xlu0 %v631
  %v633 = vpop.xlane.xlu0 %632
  %v634 = vsel %vm54, %v548, 0.0
  %635 = vadd.xlane.f32.xlu0 %v634
  %v636 = vpop.xlane.xlu0 %635
  %v637 = vsel %vm54, %v549, 0.0
  %638 = vadd.xlane.f32.xlu0 %v637
  %v639 = vpop.xlane.xlu0 %638
  %v640 = vsel %vm54, %v550, 0.0
  %641 = vadd.xlane.f32.xlu0 %v640
  %v642 = vpop.xlane.xlu0 %641
  %v643 = vsel %vm54, %v551, 0.0
  %644 = vadd.xlane.f32.xlu0 %v643
  %v645 = vpop.xlane.xlu0 %644
  %v646 = vsel %vm54, %v552, 0.0
  %647 = vadd.xlane.f32.xlu0 %v646
  %v648 = vpop.xlane.xlu0 %647
  %681 = vrot.lane.b32.xlu0 %v521, 120
  %v682 = vpop.permute.xlu0 %681
  %683 = vrot.lane.b32.xlu0 %v522, 120
  %v684 = vpop.permute.xlu0 %683
  %685 = vrot.lane.b32.xlu0 %v523, 120
  %v686 = vpop.permute.xlu0 %685
  %687 = vrot.lane.b32.xlu0 %v524, 120
  %v688 = vpop.permute.xlu0 %687
  %689 = vrot.lane.b32.xlu0 %v525, 120
  %v690 = vpop.permute.xlu0 %689
  %691 = vrot.lane.b32.xlu0 %v526, 120
  %v692 = vpop.permute.xlu0 %691
  %693 = vrot.lane.b32.xlu0 %v527, 120
  %v694 = vpop.permute.xlu0 %693
  %695 = vrot.lane.b32.xlu0 %v528, 120
  %v696 = vpop.permute.xlu0 %695
  %697 = vrot.lane.b32.xlu0 %v529, 120
  %v698 = vpop.permute.xlu0 %697
  %699 = vrot.lane.b32.xlu0 %v530, 120
  %v700 = vpop.permute.xlu0 %699
  %701 = vrot.lane.b32.xlu0 %v531, 120
  %v702 = vpop.permute.xlu0 %701
  %703 = vrot.lane.b32.xlu0 %v532, 120
  %v704 = vpop.permute.xlu0 %703
  %705 = vrot.lane.b32.xlu0 %v533, 120
  %v706 = vpop.permute.xlu0 %705
  %707 = vrot.lane.b32.xlu0 %v534, 120
  %v708 = vpop.permute.xlu0 %707
  %709 = vrot.lane.b32.xlu0 %v535, 120
  %v710 = vpop.permute.xlu0 %709
  %711 = vrot.lane.b32.xlu0 %v536, 120
  %v712 = vpop.permute.xlu0 %711
  %713 = vrot.lane.b32.xlu0 %v537, 120
  %v714 = vpop.permute.xlu0 %713
  %715 = vrot.lane.b32.xlu0 %v538, 120
  %v716 = vpop.permute.xlu0 %715
  %717 = vrot.lane.b32.xlu0 %v539, 120
  %v718 = vpop.permute.xlu0 %717
  %719 = vrot.lane.b32.xlu0 %v540, 120
  %v720 = vpop.permute.xlu0 %719
  %721 = vrot.lane.b32.xlu0 %v541, 120
  %v722 = vpop.permute.xlu0 %721
  %723 = vrot.lane.b32.xlu0 %v542, 120
  %v724 = vpop.permute.xlu0 %723
  %725 = vrot.lane.b32.xlu0 %v543, 120
  %v726 = vpop.permute.xlu0 %725
  %727 = vrot.lane.b32.xlu0 %v544, 120
  %v728 = vpop.permute.xlu0 %727
  %729 = vrot.lane.b32.xlu0 %v545, 120
  %v730 = vpop.permute.xlu0 %729
  %731 = vrot.lane.b32.xlu0 %v546, 120
  %v732 = vpop.permute.xlu0 %731
  %733 = vrot.lane.b32.xlu0 %v547, 120
  %v734 = vpop.permute.xlu0 %733
  %735 = vrot.lane.b32.xlu0 %v548, 120
  %v736 = vpop.permute.xlu0 %735
  %737 = vrot.lane.b32.xlu0 %v549, 120
  %v738 = vpop.permute.xlu0 %737
  %739 = vrot.lane.b32.xlu0 %v550, 120
  %v740 = vpop.permute.xlu0 %739
  %741 = vrot.lane.b32.xlu0 %v551, 120
  %v742 = vpop.permute.xlu0 %741
  %743 = vrot.lane.b32.xlu0 %v552, 120
  %v744 = vpop.permute.xlu0 %743
  %v777 = vsel %vm54, %v682, 0.0
  %778 = vadd.xlane.f32.xlu0 %v777
  %v779 = vpop.xlane.xlu0 %778
  %v780 = vsel %vm54, %v684, 0.0
  %781 = vadd.xlane.f32.xlu0 %v780
  %v782 = vpop.xlane.xlu0 %781
  %v783 = vsel %vm54, %v686, 0.0
  %784 = vadd.xlane.f32.xlu0 %v783
  %v785 = vpop.xlane.xlu0 %784
  %v786 = vsel %vm54, %v688, 0.0
  %787 = vadd.xlane.f32.xlu0 %v786
  %v788 = vpop.xlane.xlu0 %787
  %v789 = vsel %vm54, %v690, 0.0
  %790 = vadd.xlane.f32.xlu0 %v789
  %v791 = vpop.xlane.xlu0 %790
  %v792 = vsel %vm54, %v692, 0.0
  %793 = vadd.xlane.f32.xlu0 %v792
  %v794 = vpop.xlane.xlu0 %793
  %v795 = vsel %vm54, %v694, 0.0
  %796 = vadd.xlane.f32.xlu0 %v795
  %v797 = vpop.xlane.xlu0 %796
  %v798 = vsel %vm54, %v696, 0.0
  %799 = vadd.xlane.f32.xlu0 %v798
  %v800 = vpop.xlane.xlu0 %799
  %v801 = vsel %vm54, %v698, 0.0
  %802 = vadd.xlane.f32.xlu0 %v801
  %v803 = vpop.xlane.xlu0 %802
  %v804 = vsel %vm54, %v700, 0.0
  %805 = vadd.xlane.f32.xlu0 %v804
  %v806 = vpop.xlane.xlu0 %805
  %v807 = vsel %vm54, %v702, 0.0
  %808 = vadd.xlane.f32.xlu0 %v807
  %v809 = vpop.xlane.xlu0 %808
  %v810 = vsel %vm54, %v704, 0.0
  %811 = vadd.xlane.f32.xlu0 %v810
  %v812 = vpop.xlane.xlu0 %811
  %v813 = vsel %vm54, %v706, 0.0
  %814 = vadd.xlane.f32.xlu0 %v813
  %v815 = vpop.xlane.xlu0 %814
  %v816 = vsel %vm54, %v708, 0.0
  %817 = vadd.xlane.f32.xlu0 %v816
  %v818 = vpop.xlane.xlu0 %817
  %v819 = vsel %vm54, %v710, 0.0
  %820 = vadd.xlane.f32.xlu0 %v819
  %v821 = vpop.xlane.xlu0 %820
  %v822 = vsel %vm54, %v712, 0.0
  %823 = vadd.xlane.f32.xlu0 %v822
  %v824 = vpop.xlane.xlu0 %823
  %v825 = vsel %vm54, %v714, 0.0
  %826 = vadd.xlane.f32.xlu0 %v825
  %v827 = vpop.xlane.xlu0 %826
  %v828 = vsel %vm54, %v716, 0.0
  %829 = vadd.xlane.f32.xlu0 %v828
  %v830 = vpop.xlane.xlu0 %829
  %v831 = vsel %vm54, %v718, 0.0
  %832 = vadd.xlane.f32.xlu0 %v831
  %v833 = vpop.xlane.xlu0 %832
  %v834 = vsel %vm54, %v720, 0.0
  %835 = vadd.xlane.f32.xlu0 %v834
  %v836 = vpop.xlane.xlu0 %835
  %v837 = vsel %vm54, %v722, 0.0
  %838 = vadd.xlane.f32.xlu0 %v837
  %v839 = vpop.xlane.xlu0 %838
  %v840 = vsel %vm54, %v724, 0.0
  %841 = vadd.xlane.f32.xlu0 %v840
  %v842 = vpop.xlane.xlu0 %841
  %v843 = vsel %vm54, %v726, 0.0
  %844 = vadd.xlane.f32.xlu0 %v843
  %v845 = vpop.xlane.xlu0 %844
  %v846 = vsel %vm54, %v728, 0.0
  %847 = vadd.xlane.f32.xlu0 %v846
  %v848 = vpop.xlane.xlu0 %847
  %v849 = vsel %vm54, %v730, 0.0
  %850 = vadd.xlane.f32.xlu0 %v849
  %v851 = vpop.xlane.xlu0 %850
  %v852 = vsel %vm54, %v732, 0.0
  %853 = vadd.xlane.f32.xlu0 %v852
  %v854 = vpop.xlane.xlu0 %853
  %v855 = vsel %vm54, %v734, 0.0
  %856 = vadd.xlane.f32.xlu0 %v855
  %v857 = vpop.xlane.xlu0 %856
  %v858 = vsel %vm54, %v736, 0.0
  %859 = vadd.xlane.f32.xlu0 %v858
  %v860 = vpop.xlane.xlu0 %859
  %v861 = vsel %vm54, %v738, 0.0
  %862 = vadd.xlane.f32.xlu0 %v861
  %v863 = vpop.xlane.xlu0 %862
  %v864 = vsel %vm54, %v740, 0.0
  %865 = vadd.xlane.f32.xlu0 %v864
  %v866 = vpop.xlane.xlu0 %865
  %v867 = vsel %vm54, %v742, 0.0
  %868 = vadd.xlane.f32.xlu0 %v867
  %v869 = vpop.xlane.xlu0 %868
  %v870 = vsel %vm54, %v744, 0.0
  %871 = vadd.xlane.f32.xlu0 %v870
  %v872 = vpop.xlane.xlu0 %871
  %v889 = vperm.slane %v555, %v224
  %v890 = vperm.slane %v561, %v224
  %v891 = vperm.slane %v567, %v224
  %v892 = vperm.slane %v573, %v224
  %v893 = vperm.slane %v579, %v224
  %v894 = vperm.slane %v585, %v224
  %v895 = vperm.slane %v591, %v224
  %v896 = vperm.slane %v597, %v224
  %v897 = vperm.slane %v603, %v224
  %v898 = vperm.slane %v609, %v224
  %v899 = vperm.slane %v615, %v224
  %v900 = vperm.slane %v621, %v224
  %v901 = vperm.slane %v627, %v224
  %v902 = vperm.slane %v633, %v224
  %v903 = vperm.slane %v639, %v224
  %v904 = vperm.slane %v645, %v224
  %v905 = vsel %vm233, %v890, %v889
  %v906 = vsel %vm235, %v891, %v905
  %v907 = vsel %vm237, %v892, %v906
  %vm908 = vcmask 1044484
  %v909 = vsel %vm908, %v893, %v907
  %vm910 = vcmask 1045509
  %v911 = vsel %vm910, %v894, %v909
  %vm912 = vcmask 1046534
  %v913 = vsel %vm912, %v895, %v911
  %vm914 = vcmask 1047559
  %v915 = vsel %vm914, %v896, %v913
  %v916 = vsel %vm233, %v898, %v897
  %v917 = vsel %vm235, %v899, %v916
  %v918 = vsel %vm237, %v900, %v917
  %v919 = vsel %vm908, %v901, %v918
  %v920 = vsel %vm910, %v902, %v919
  %v921 = vsel %vm912, %v903, %v920
  %v922 = vsel %vm914, %v904, %v921
  %v925 = vsel %vm54, %v915, 0.0
  %926 = vadd.xlane.f32.xlu0 %v925
  %v927 = vpop.xlane.xlu0 %926
  %v928 = vsel %vm54, %v922, 0.0
  %929 = vadd.xlane.f32.xlu0 %v928
  %v930 = vpop.xlane.xlu0 %929
  %v947 = vperm.slane %v558, %v224
  %v948 = vperm.slane %v564, %v224
  %v949 = vperm.slane %v570, %v224
  %v950 = vperm.slane %v576, %v224
  %v951 = vperm.slane %v582, %v224
  %v952 = vperm.slane %v588, %v224
  %v953 = vperm.slane %v594, %v224
  %v954 = vperm.slane %v600, %v224
  %v955 = vperm.slane %v606, %v224
  %v956 = vperm.slane %v612, %v224
  %v957 = vperm.slane %v618, %v224
  %v958 = vperm.slane %v624, %v224
  %v959 = vperm.slane %v630, %v224
  %v960 = vperm.slane %v636, %v224
  %v961 = vperm.slane %v642, %v224
  %v962 = vperm.slane %v648, %v224
  %v963 = vsel %vm233, %v948, %v947
  %v964 = vsel %vm235, %v949, %v963
  %v965 = vsel %vm237, %v950, %v964
  %v966 = vsel %vm908, %v951, %v965
  %v967 = vsel %vm910, %v952, %v966
  %v968 = vsel %vm912, %v953, %v967
  %v969 = vsel %vm914, %v954, %v968
  %v970 = vsel %vm233, %v956, %v955
  %v971 = vsel %vm235, %v957, %v970
  %v972 = vsel %vm237, %v958, %v971
  %v973 = vsel %vm908, %v959, %v972
  %v974 = vsel %vm910, %v960, %v973
  %v975 = vsel %vm912, %v961, %v974
  %v976 = vsel %vm914, %v962, %v975
  %v979 = vsel %vm54, %v969, 0.0
  %980 = vadd.xlane.f32.xlu0 %v979
  %v981 = vpop.xlane.xlu0 %980
  %v982 = vsel %vm54, %v976, 0.0
  %983 = vadd.xlane.f32.xlu0 %v982
  %v984 = vpop.xlane.xlu0 %983
  %v1001 = vperm.slane %v779, %v224
  %v1002 = vperm.slane %v785, %v224
  %v1003 = vperm.slane %v791, %v224
  %v1004 = vperm.slane %v797, %v224
  %v1005 = vperm.slane %v803, %v224
  %v1006 = vperm.slane %v809, %v224
  %v1007 = vperm.slane %v815, %v224
  %v1008 = vperm.slane %v821, %v224
  %v1009 = vperm.slane %v827, %v224
  %v1010 = vperm.slane %v833, %v224
  %v1011 = vperm.slane %v839, %v224
  %v1012 = vperm.slane %v845, %v224
  %v1013 = vperm.slane %v851, %v224
  %v1014 = vperm.slane %v857, %v224
  %v1015 = vperm.slane %v863, %v224
  %v1016 = vperm.slane %v869, %v224
  %v1017 = vsel %vm233, %v1002, %v1001
  %v1018 = vsel %vm235, %v1003, %v1017
  %v1019 = vsel %vm237, %v1004, %v1018
  %v1020 = vsel %vm908, %v1005, %v1019
  %v1021 = vsel %vm910, %v1006, %v1020
  %v1022 = vsel %vm912, %v1007, %v1021
  %v1023 = vsel %vm914, %v1008, %v1022
  %v1024 = vsel %vm233, %v1010, %v1009
  %v1025 = vsel %vm235, %v1011, %v1024
  %v1026 = vsel %vm237, %v1012, %v1025
  %v1027 = vsel %vm908, %v1013, %v1026
  %v1028 = vsel %vm910, %v1014, %v1027
  %v1029 = vsel %vm912, %v1015, %v1028
  %v1030 = vsel %vm914, %v1016, %v1029
  %v1033 = vsel %vm54, %v1023, 0.0
  %1034 = vadd.xlane.f32.xlu0 %v1033
  %v1035 = vpop.xlane.xlu0 %1034
  %v1036 = vsel %vm54, %v1030, 0.0
  %1037 = vadd.xlane.f32.xlu0 %v1036
  %v1038 = vpop.xlane.xlu0 %1037
  %v1055 = vperm.slane %v782, %v224
  %v1056 = vperm.slane %v788, %v224
  %v1057 = vperm.slane %v794, %v224
  %v1058 = vperm.slane %v800, %v224
  %v1059 = vperm.slane %v806, %v224
  %v1060 = vperm.slane %v812, %v224
  %v1061 = vperm.slane %v818, %v224
  %v1062 = vperm.slane %v824, %v224
  %v1063 = vperm.slane %v830, %v224
  %v1064 = vperm.slane %v836, %v224
  %v1065 = vperm.slane %v842, %v224
  %v1066 = vperm.slane %v848, %v224
  %v1067 = vperm.slane %v854, %v224
  %v1068 = vperm.slane %v860, %v224
  %v1069 = vperm.slane %v866, %v224
  %v1070 = vperm.slane %v872, %v224
  %v1071 = vsel %vm233, %v1056, %v1055
  %v1072 = vsel %vm235, %v1057, %v1071
  %v1073 = vsel %vm237, %v1058, %v1072
  %v1074 = vsel %vm908, %v1059, %v1073
  %v1075 = vsel %vm910, %v1060, %v1074
  %v1076 = vsel %vm912, %v1061, %v1075
  %v1077 = vsel %vm914, %v1062, %v1076
  %v1078 = vsel %vm233, %v1064, %v1063
  %v1079 = vsel %vm235, %v1065, %v1078
  %v1080 = vsel %vm237, %v1066, %v1079
  %v1081 = vsel %vm908, %v1067, %v1080
  %v1082 = vsel %vm910, %v1068, %v1081
  %v1083 = vsel %vm912, %v1069, %v1082
  %v1084 = vsel %vm914, %v1070, %v1083
  %v1087 = vsel %vm54, %v1077, 0.0
  %1088 = vadd.xlane.f32.xlu0 %v1087
  %v1089 = vpop.xlane.xlu0 %1088
  %v1090 = vsel %vm54, %v1084, 0.0
  %1091 = vadd.xlane.f32.xlu0 %v1090
  %v1092 = vpop.xlane.xlu0 %1091
  %v1093 = vadd.f32 %v927, %v1035
  %v1094 = vadd.f32 %v930, %v1038
  %v1095 = vadd.f32 %v1093, %v981
  %v1096 = vadd.f32 %v1094, %v984
  %v1097 = vadd.f32 %v1095, %v1089
  %v1098 = vadd.f32 %v1096, %v1092
  %v1099 = vmul.f32 %v1097, 0.00390625
  %v1100 = vmul.f32 %v1098, 0.00390625
  %v1101 = vmul.f32 %v927, 0.015625
  %v1102 = vmul.f32 %v930, 0.015625
  %v1103 = vmul.f32 %v1035, 0.015625
  %v1104 = vmul.f32 %v1038, 0.015625
  %v1105 = vmul.f32 %v981, 0.015625
  %v1106 = vmul.f32 %v984, 0.015625
  %v1107 = vmul.f32 %v1089, 0.015625
  %v1108 = vmul.f32 %v1092, 0.015625
  %v1109 = vld [vmem:[%s6] sm:$0xff]
  %v1112 = vperm.slane %v1099, %v224
  %v1113 = vperm.slane %v1100, %v224
  %v1114 = vsel %vm233, %v1113, %v1112
  %v1115 = vsel %vm54, %v1114, 0
  %1117 = vmatpush.msra.mxu0 0.0
  %1118 = vmatpush.msra.mxu0 0.0
  %1119 = vmatpush.msra.mxu0 0.0
  %1120 = vmatpush.msra.mxu0 0.0
  %1121 = vmatpush.msra.mxu0 0.0
  %1122 = vmatpush.msra.mxu0 0.0
  %1123 = vmatpush.msra.mxu0 0.0
  %1124 = vmatpush.msra.mxu0 0.0
  %1125 = vmatpush.msra.mxu0 0.0
  %1126 = vmatpush.msra.mxu0 0.0
  %1127 = vmatpush.msra.mxu0 0.0
  %1128 = vmatpush.msra.mxu0 0.0
  %1129 = vmatpush.msra.mxu0 0.0
  %1130 = vmatpush.msra.mxu0 0.0
  %1131 = vmatpush.msra.mxu0 0.0
  %1132 = vmatpush.msra.mxu0 %v1109
  %1133 = vmatmul.f32.gmra.mxu0 %v1115
  %v1134 = vpop.f32.mrf.mxu0
  %v1135 = vadd.f32 0.0, %v1134
  %1136 = vdwg.mxu0
  %v1137 = vadd.f32 %v520, %v1135
  %s1138 = scalar_lea.vmem %s6, 8
  %v1139 = vld [vmem:[%s1138] sm:$0xff]
  %v1142 = vperm.slane %v1101, %v224
  %v1143 = vperm.slane %v1102, %v224
  %v1144 = vsel %vm233, %v1143, %v1142
  %v1145 = vsel %vm54, %v1144, 0
  %1147 = vmatpush.msra.mxu0 0.0
  %1148 = vmatpush.msra.mxu0 0.0
  %1149 = vmatpush.msra.mxu0 0.0
  %1150 = vmatpush.msra.mxu0 0.0
  %1151 = vmatpush.msra.mxu0 0.0
  %1152 = vmatpush.msra.mxu0 0.0
  %1153 = vmatpush.msra.mxu0 0.0
  %1154 = vmatpush.msra.mxu0 0.0
  %1155 = vmatpush.msra.mxu0 0.0
  %1156 = vmatpush.msra.mxu0 0.0
  %1157 = vmatpush.msra.mxu0 0.0
  %1158 = vmatpush.msra.mxu0 0.0
  %1159 = vmatpush.msra.mxu0 0.0
  %1160 = vmatpush.msra.mxu0 0.0
  %1161 = vmatpush.msra.mxu0 0.0
  %1162 = vmatpush.msra.mxu0 %v1139
  %1163 = vmatmul.f32.gmra.mxu0 %v1145
  %v1164 = vpop.f32.mrf.mxu0
  %v1165 = vadd.f32 0.0, %v1164
  %1166 = vdwg.mxu0
  %v1167 = vadd.f32 %v1137, %v1165
  %s1168 = scalar_lea.vmem %s6, 16
  %v1169 = vld [vmem:[%s1168] sm:$0xff]
  %v1172 = vperm.slane %v1103, %v224
  %v1173 = vperm.slane %v1104, %v224
  %v1174 = vsel %vm233, %v1173, %v1172
  %v1175 = vsel %vm54, %v1174, 0
  %1177 = vmatpush.msra.mxu0 0.0
  %1178 = vmatpush.msra.mxu0 0.0
  %1179 = vmatpush.msra.mxu0 0.0
  %1180 = vmatpush.msra.mxu0 0.0
  %1181 = vmatpush.msra.mxu0 0.0
  %1182 = vmatpush.msra.mxu0 0.0
  %1183 = vmatpush.msra.mxu0 0.0
  %1184 = vmatpush.msra.mxu0 0.0
  %1185 = vmatpush.msra.mxu0 0.0
  %1186 = vmatpush.msra.mxu0 0.0
  %1187 = vmatpush.msra.mxu0 0.0
  %1188 = vmatpush.msra.mxu0 0.0
  %1189 = vmatpush.msra.mxu0 0.0
  %1190 = vmatpush.msra.mxu0 0.0
  %1191 = vmatpush.msra.mxu0 0.0
  %1192 = vmatpush.msra.mxu0 %v1169
  %1193 = vmatmul.f32.gmra.mxu0 %v1175
  %v1194 = vpop.f32.mrf.mxu0
  %v1195 = vadd.f32 0.0, %v1194
  %1196 = vdwg.mxu0
  %v1197 = vadd.f32 %v1167, %v1195
  %s1198 = scalar_lea.vmem %s6, 24
  %v1199 = vld [vmem:[%s1198] sm:$0xff]
  %v1202 = vperm.slane %v1105, %v224
  %v1203 = vperm.slane %v1106, %v224
  %v1204 = vsel %vm233, %v1203, %v1202
  %v1205 = vsel %vm54, %v1204, 0
  %1207 = vmatpush.msra.mxu0 0.0
  %1208 = vmatpush.msra.mxu0 0.0
  %1209 = vmatpush.msra.mxu0 0.0
  %1210 = vmatpush.msra.mxu0 0.0
  %1211 = vmatpush.msra.mxu0 0.0
  %1212 = vmatpush.msra.mxu0 0.0
  %1213 = vmatpush.msra.mxu0 0.0
  %1214 = vmatpush.msra.mxu0 0.0
  %1215 = vmatpush.msra.mxu0 0.0
  %1216 = vmatpush.msra.mxu0 0.0
  %1217 = vmatpush.msra.mxu0 0.0
  %1218 = vmatpush.msra.mxu0 0.0
  %1219 = vmatpush.msra.mxu0 0.0
  %1220 = vmatpush.msra.mxu0 0.0
  %1221 = vmatpush.msra.mxu0 0.0
  %1222 = vmatpush.msra.mxu0 %v1199
  %1223 = vmatmul.f32.gmra.mxu0 %v1205
  %v1224 = vpop.f32.mrf.mxu0
  %v1225 = vadd.f32 0.0, %v1224
  %1226 = vdwg.mxu0
  %v1227 = vadd.f32 %v1197, %v1225
  %s1228 = scalar_lea.vmem %s6, 32
  %v1229 = vld [vmem:[%s1228] sm:$0xff]
  %v1232 = vperm.slane %v1107, %v224
  %v1233 = vperm.slane %v1108, %v224
  %v1234 = vsel %vm233, %v1233, %v1232
  %v1235 = vsel %vm54, %v1234, 0
  %1237 = vmatpush.msra.mxu0 0.0
  %1238 = vmatpush.msra.mxu0 0.0
  %1239 = vmatpush.msra.mxu0 0.0
  %1240 = vmatpush.msra.mxu0 0.0
  %1241 = vmatpush.msra.mxu0 0.0
  %1242 = vmatpush.msra.mxu0 0.0
  %1243 = vmatpush.msra.mxu0 0.0
  %1244 = vmatpush.msra.mxu0 0.0
  %1245 = vmatpush.msra.mxu0 0.0
  %1246 = vmatpush.msra.mxu0 0.0
  %1247 = vmatpush.msra.mxu0 0.0
  %1248 = vmatpush.msra.mxu0 0.0
  %1249 = vmatpush.msra.mxu0 0.0
  %1250 = vmatpush.msra.mxu0 0.0
  %1251 = vmatpush.msra.mxu0 0.0
  %1252 = vmatpush.msra.mxu0 %v1229
  %1253 = vmatmul.f32.gmra.mxu0 %v1235
  %v1254 = vpop.f32.mrf.mxu0
  %v1255 = vadd.f32 0.0, %v1254
  %1256 = vdwg.mxu0
  %v1257 = vadd.f32 %v1227, %v1255
  %v1258 = vld [vmem:[%s2] sm:$0xff]
  %v1259 = vld [vmem:[%s2 + $0x8] sm:$0xff]
  %v1260 = vld [vmem:[%s2 + $0x10] sm:$0xff]
  %v1261 = vld [vmem:[%s2 + $0x18] sm:$0xff]
  %v1262 = vld [vmem:[%s2 + $0x20] sm:$0xff]
  %v1263 = vld [vmem:[%s2 + $0x28] sm:$0xff]
  %v1264 = vld [vmem:[%s2 + $0x30] sm:$0xff]
  %v1265 = vld [vmem:[%s2 + $0x38] sm:$0xff]
  %v1266 = vld [vmem:[%s2 + $0x40] sm:$0xff]
  %v1267 = vld [vmem:[%s2 + $0x48] sm:$0xff]
  %v1268 = vld [vmem:[%s2 + $0x50] sm:$0xff]
  %v1269 = vld [vmem:[%s2 + $0x58] sm:$0xff]
  %v1270 = vld [vmem:[%s2 + $0x60] sm:$0xff]
  %v1271 = vld [vmem:[%s2 + $0x68] sm:$0xff]
  %v1272 = vld [vmem:[%s2 + $0x70] sm:$0xff]
  %v1273 = vld [vmem:[%s2 + $0x78] sm:$0xff]
  %v1274 = vld [vmem:[%s2 + $0x80] sm:$0xff]
  %v1275 = vld [vmem:[%s2 + $0x88] sm:$0xff]
  %v1276 = vld [vmem:[%s2 + $0x90] sm:$0xff]
  %v1277 = vld [vmem:[%s2 + $0x98] sm:$0xff]
  %v1278 = vld [vmem:[%s2 + $0xa0] sm:$0xff]
  %v1279 = vld [vmem:[%s2 + $0xa8] sm:$0xff]
  %v1280 = vld [vmem:[%s2 + $0xb0] sm:$0xff]
  %v1281 = vld [vmem:[%s2 + $0xb8] sm:$0xff]
  %v1282 = vsel %vm365, %v1258, 0.0
  %1283 = vadd.xlane.f32.xlu0 %v1282
  %v1284 = vpop.xlane.xlu0 %1283
  %v1285 = vsel %vm365, %v1259, 0.0
  %1286 = vadd.xlane.f32.xlu0 %v1285
  %v1287 = vpop.xlane.xlu0 %1286
  %v1288 = vsel %vm365, %v1260, 0.0
  %1289 = vadd.xlane.f32.xlu0 %v1288
  %v1290 = vpop.xlane.xlu0 %1289
  %v1291 = vsel %vm365, %v1261, 0.0
  %1292 = vadd.xlane.f32.xlu0 %v1291
  %v1293 = vpop.xlane.xlu0 %1292
  %v1294 = vsel %vm365, %v1262, 0.0
  %1295 = vadd.xlane.f32.xlu0 %v1294
  %v1296 = vpop.xlane.xlu0 %1295
  %v1297 = vsel %vm365, %v1263, 0.0
  %1298 = vadd.xlane.f32.xlu0 %v1297
  %v1299 = vpop.xlane.xlu0 %1298
  %v1300 = vsel %vm365, %v1264, 0.0
  %1301 = vadd.xlane.f32.xlu0 %v1300
  %v1302 = vpop.xlane.xlu0 %1301
  %v1303 = vsel %vm365, %v1265, 0.0
  %1304 = vadd.xlane.f32.xlu0 %v1303
  %v1305 = vpop.xlane.xlu0 %1304
  %v1306 = vsel %vm365, %v1266, 0.0
  %1307 = vadd.xlane.f32.xlu0 %v1306
  %v1308 = vpop.xlane.xlu0 %1307
  %v1309 = vsel %vm365, %v1267, 0.0
  %1310 = vadd.xlane.f32.xlu0 %v1309
  %v1311 = vpop.xlane.xlu0 %1310
  %v1312 = vsel %vm365, %v1268, 0.0
  %1313 = vadd.xlane.f32.xlu0 %v1312
  %v1314 = vpop.xlane.xlu0 %1313
  %v1315 = vsel %vm365, %v1269, 0.0
  %1316 = vadd.xlane.f32.xlu0 %v1315
  %v1317 = vpop.xlane.xlu0 %1316
  %v1318 = vsel %vm365, %v1270, 0.0
  %1319 = vadd.xlane.f32.xlu0 %v1318
  %v1320 = vpop.xlane.xlu0 %1319
  %v1321 = vsel %vm365, %v1271, 0.0
  %1322 = vadd.xlane.f32.xlu0 %v1321
  %v1323 = vpop.xlane.xlu0 %1322
  %v1324 = vsel %vm365, %v1272, 0.0
  %1325 = vadd.xlane.f32.xlu0 %v1324
  %v1326 = vpop.xlane.xlu0 %1325
  %v1327 = vsel %vm365, %v1273, 0.0
  %1328 = vadd.xlane.f32.xlu0 %v1327
  %v1329 = vpop.xlane.xlu0 %1328
  %v1330 = vsel %vm365, %v1274, 0.0
  %1331 = vadd.xlane.f32.xlu0 %v1330
  %v1332 = vpop.xlane.xlu0 %1331
  %v1333 = vsel %vm365, %v1275, 0.0
  %1334 = vadd.xlane.f32.xlu0 %v1333
  %v1335 = vpop.xlane.xlu0 %1334
  %v1336 = vsel %vm365, %v1276, 0.0
  %1337 = vadd.xlane.f32.xlu0 %v1336
  %v1338 = vpop.xlane.xlu0 %1337
  %v1339 = vsel %vm365, %v1277, 0.0
  %1340 = vadd.xlane.f32.xlu0 %v1339
  %v1341 = vpop.xlane.xlu0 %1340
  %v1342 = vsel %vm365, %v1278, 0.0
  %1343 = vadd.xlane.f32.xlu0 %v1342
  %v1344 = vpop.xlane.xlu0 %1343
  %v1345 = vsel %vm365, %v1279, 0.0
  %1346 = vadd.xlane.f32.xlu0 %v1345
  %v1347 = vpop.xlane.xlu0 %1346
  %v1348 = vsel %vm365, %v1280, 0.0
  %1349 = vadd.xlane.f32.xlu0 %v1348
  %v1350 = vpop.xlane.xlu0 %1349
  %v1351 = vsel %vm365, %v1281, 0.0
  %1352 = vadd.xlane.f32.xlu0 %v1351
  %v1353 = vpop.xlane.xlu0 %1352
  %1378 = vrot.lane.b32.xlu0 %v1258, 124
  %v1379 = vpop.permute.xlu0 %1378
  %1380 = vrot.lane.b32.xlu0 %v1259, 124
  %v1381 = vpop.permute.xlu0 %1380
  %1382 = vrot.lane.b32.xlu0 %v1260, 124
  %v1383 = vpop.permute.xlu0 %1382
  %1384 = vrot.lane.b32.xlu0 %v1261, 124
  %v1385 = vpop.permute.xlu0 %1384
  %1386 = vrot.lane.b32.xlu0 %v1262, 124
  %v1387 = vpop.permute.xlu0 %1386
  %1388 = vrot.lane.b32.xlu0 %v1263, 124
  %v1389 = vpop.permute.xlu0 %1388
  %1390 = vrot.lane.b32.xlu0 %v1264, 124
  %v1391 = vpop.permute.xlu0 %1390
  %1392 = vrot.lane.b32.xlu0 %v1265, 124
  %v1393 = vpop.permute.xlu0 %1392
  %1394 = vrot.lane.b32.xlu0 %v1266, 124
  %v1395 = vpop.permute.xlu0 %1394
  %1396 = vrot.lane.b32.xlu0 %v1267, 124
  %v1397 = vpop.permute.xlu0 %1396
  %1398 = vrot.lane.b32.xlu0 %v1268, 124
  %v1399 = vpop.permute.xlu0 %1398
  %1400 = vrot.lane.b32.xlu0 %v1269, 124
  %v1401 = vpop.permute.xlu0 %1400
  %1402 = vrot.lane.b32.xlu0 %v1270, 124
  %v1403 = vpop.permute.xlu0 %1402
  %1404 = vrot.lane.b32.xlu0 %v1271, 124
  %v1405 = vpop.permute.xlu0 %1404
  %1406 = vrot.lane.b32.xlu0 %v1272, 124
  %v1407 = vpop.permute.xlu0 %1406
  %1408 = vrot.lane.b32.xlu0 %v1273, 124
  %v1409 = vpop.permute.xlu0 %1408
  %1410 = vrot.lane.b32.xlu0 %v1274, 124
  %v1411 = vpop.permute.xlu0 %1410
  %1412 = vrot.lane.b32.xlu0 %v1275, 124
  %v1413 = vpop.permute.xlu0 %1412
  %1414 = vrot.lane.b32.xlu0 %v1276, 124
  %v1415 = vpop.permute.xlu0 %1414
  %1416 = vrot.lane.b32.xlu0 %v1277, 124
  %v1417 = vpop.permute.xlu0 %1416
  %1418 = vrot.lane.b32.xlu0 %v1278, 124
  %v1419 = vpop.permute.xlu0 %1418
  %1420 = vrot.lane.b32.xlu0 %v1279, 124
  %v1421 = vpop.permute.xlu0 %1420
  %1422 = vrot.lane.b32.xlu0 %v1280, 124
  %v1423 = vpop.permute.xlu0 %1422
  %1424 = vrot.lane.b32.xlu0 %v1281, 124
  %v1425 = vpop.permute.xlu0 %1424
  %v1450 = vsel %vm365, %v1379, 0.0
  %1451 = vadd.xlane.f32.xlu0 %v1450
  %v1452 = vpop.xlane.xlu0 %1451
  %v1453 = vsel %vm365, %v1381, 0.0
  %1454 = vadd.xlane.f32.xlu0 %v1453
  %v1455 = vpop.xlane.xlu0 %1454
  %v1456 = vsel %vm365, %v1383, 0.0
  %1457 = vadd.xlane.f32.xlu0 %v1456
  %v1458 = vpop.xlane.xlu0 %1457
  %v1459 = vsel %vm365, %v1385, 0.0
  %1460 = vadd.xlane.f32.xlu0 %v1459
  %v1461 = vpop.xlane.xlu0 %1460
  %v1462 = vsel %vm365, %v1387, 0.0
  %1463 = vadd.xlane.f32.xlu0 %v1462
  %v1464 = vpop.xlane.xlu0 %1463
  %v1465 = vsel %vm365, %v1389, 0.0
  %1466 = vadd.xlane.f32.xlu0 %v1465
  %v1467 = vpop.xlane.xlu0 %1466
  %v1468 = vsel %vm365, %v1391, 0.0
  %1469 = vadd.xlane.f32.xlu0 %v1468
  %v1470 = vpop.xlane.xlu0 %1469
  %v1471 = vsel %vm365, %v1393, 0.0
  %1472 = vadd.xlane.f32.xlu0 %v1471
  %v1473 = vpop.xlane.xlu0 %1472
  %v1474 = vsel %vm365, %v1395, 0.0
  %1475 = vadd.xlane.f32.xlu0 %v1474
  %v1476 = vpop.xlane.xlu0 %1475
  %v1477 = vsel %vm365, %v1397, 0.0
  %1478 = vadd.xlane.f32.xlu0 %v1477
  %v1479 = vpop.xlane.xlu0 %1478
  %v1480 = vsel %vm365, %v1399, 0.0
  %1481 = vadd.xlane.f32.xlu0 %v1480
  %v1482 = vpop.xlane.xlu0 %1481
  %v1483 = vsel %vm365, %v1401, 0.0
  %1484 = vadd.xlane.f32.xlu0 %v1483
  %v1485 = vpop.xlane.xlu0 %1484
  %v1486 = vsel %vm365, %v1403, 0.0
  %1487 = vadd.xlane.f32.xlu0 %v1486
  %v1488 = vpop.xlane.xlu0 %1487
  %v1489 = vsel %vm365, %v1405, 0.0
  %1490 = vadd.xlane.f32.xlu0 %v1489
  %v1491 = vpop.xlane.xlu0 %1490
  %v1492 = vsel %vm365, %v1407, 0.0
  %1493 = vadd.xlane.f32.xlu0 %v1492
  %v1494 = vpop.xlane.xlu0 %1493
  %v1495 = vsel %vm365, %v1409, 0.0
  %1496 = vadd.xlane.f32.xlu0 %v1495
  %v1497 = vpop.xlane.xlu0 %1496
  %v1498 = vsel %vm365, %v1411, 0.0
  %1499 = vadd.xlane.f32.xlu0 %v1498
  %v1500 = vpop.xlane.xlu0 %1499
  %v1501 = vsel %vm365, %v1413, 0.0
  %1502 = vadd.xlane.f32.xlu0 %v1501
  %v1503 = vpop.xlane.xlu0 %1502
  %v1504 = vsel %vm365, %v1415, 0.0
  %1505 = vadd.xlane.f32.xlu0 %v1504
  %v1506 = vpop.xlane.xlu0 %1505
  %v1507 = vsel %vm365, %v1417, 0.0
  %1508 = vadd.xlane.f32.xlu0 %v1507
  %v1509 = vpop.xlane.xlu0 %1508
  %v1510 = vsel %vm365, %v1419, 0.0
  %1511 = vadd.xlane.f32.xlu0 %v1510
  %v1512 = vpop.xlane.xlu0 %1511
  %v1513 = vsel %vm365, %v1421, 0.0
  %1514 = vadd.xlane.f32.xlu0 %v1513
  %v1515 = vpop.xlane.xlu0 %1514
  %v1516 = vsel %vm365, %v1423, 0.0
  %1517 = vadd.xlane.f32.xlu0 %v1516
  %v1518 = vpop.xlane.xlu0 %1517
  %v1519 = vsel %vm365, %v1425, 0.0
  %1520 = vadd.xlane.f32.xlu0 %v1519
  %v1521 = vpop.xlane.xlu0 %1520
  %v1546 = vperm.slane %v1284, %v224
  %v1547 = vperm.slane %v1287, %v224
  %v1548 = vperm.slane %v1290, %v224
  %v1549 = vperm.slane %v1293, %v224
  %v1550 = vperm.slane %v1296, %v224
  %v1551 = vperm.slane %v1299, %v224
  %v1552 = vperm.slane %v1302, %v224
  %v1553 = vperm.slane %v1305, %v224
  %v1554 = vperm.slane %v1308, %v224
  %v1555 = vperm.slane %v1311, %v224
  %v1556 = vperm.slane %v1314, %v224
  %v1557 = vperm.slane %v1317, %v224
  %v1558 = vperm.slane %v1320, %v224
  %v1559 = vperm.slane %v1323, %v224
  %v1560 = vperm.slane %v1326, %v224
  %v1561 = vperm.slane %v1329, %v224
  %v1562 = vperm.slane %v1332, %v224
  %v1563 = vperm.slane %v1335, %v224
  %v1564 = vperm.slane %v1338, %v224
  %v1565 = vperm.slane %v1341, %v224
  %v1566 = vperm.slane %v1344, %v224
  %v1567 = vperm.slane %v1347, %v224
  %v1568 = vperm.slane %v1350, %v224
  %v1569 = vperm.slane %v1353, %v224
  %v1570 = vsel %vm233, %v1547, %v1546
  %v1571 = vsel %vm235, %v1548, %v1570
  %v1572 = vsel %vm237, %v1549, %v1571
  %v1573 = vsel %vm908, %v1550, %v1572
  %v1574 = vsel %vm910, %v1551, %v1573
  %v1575 = vsel %vm912, %v1552, %v1574
  %v1576 = vsel %vm914, %v1553, %v1575
  %v1577 = vsel %vm233, %v1555, %v1554
  %v1578 = vsel %vm235, %v1556, %v1577
  %v1579 = vsel %vm237, %v1557, %v1578
  %v1580 = vsel %vm233, %v1559, %v1558
  %v1581 = vsel %vm235, %v1560, %v1580
  %v1582 = vsel %vm237, %v1561, %v1581
  %v1583 = vsel %vm908, %v1562, %v1582
  %v1584 = vsel %vm910, %v1563, %v1583
  %v1585 = vsel %vm912, %v1564, %v1584
  %v1586 = vsel %vm914, %v1565, %v1585
  %v1587 = vsel %vm233, %v1567, %v1566
  %v1588 = vsel %vm235, %v1568, %v1587
  %v1589 = vsel %vm237, %v1569, %v1588
  %v1594 = vsel %vm365, %v1576, 0.0
  %1595 = vadd.xlane.f32.xlu0 %v1594
  %v1596 = vpop.xlane.xlu0 %1595
  %vm1597 = vcmask 27648
  %v1598 = vsel %vm1597, %v1579, 0.0
  %1599 = vadd.xlane.f32.xlu0 %v1598
  %v1600 = vpop.xlane.xlu0 %1599
  %v1601 = vsel %vm365, %v1586, 0.0
  %1602 = vadd.xlane.f32.xlu0 %v1601
  %v1603 = vpop.xlane.xlu0 %1602
  %v1604 = vsel %vm1597, %v1589, 0.0
  %1605 = vadd.xlane.f32.xlu0 %v1604
  %v1606 = vpop.xlane.xlu0 %1605
  %v1607 = vadd.s32 %v224, 4
  %v1608 = vperm.slane %v1284, %v1607
  %v1609 = vperm.slane %v1287, %v1607
  %v1610 = vperm.slane %v1290, %v1607
  %v1611 = vperm.slane %v1293, %v1607
  %v1612 = vperm.slane %v1296, %v1607
  %v1613 = vperm.slane %v1299, %v1607
  %v1614 = vperm.slane %v1302, %v1607
  %v1615 = vperm.slane %v1305, %v1607
  %v1616 = vperm.slane %v1308, %v1607
  %v1617 = vperm.slane %v1311, %v1607
  %v1618 = vperm.slane %v1314, %v1607
  %v1619 = vperm.slane %v1317, %v1607
  %v1620 = vperm.slane %v1320, %v1607
  %v1621 = vperm.slane %v1323, %v1607
  %v1622 = vperm.slane %v1326, %v1607
  %v1623 = vperm.slane %v1329, %v1607
  %v1624 = vperm.slane %v1332, %v1607
  %v1625 = vperm.slane %v1335, %v1607
  %v1626 = vperm.slane %v1338, %v1607
  %v1627 = vperm.slane %v1341, %v1607
  %v1628 = vperm.slane %v1344, %v1607
  %v1629 = vperm.slane %v1347, %v1607
  %v1630 = vperm.slane %v1350, %v1607
  %v1631 = vperm.slane %v1353, %v1607
  %v1632 = vsel %vm233, %v1609, %v1608
  %v1633 = vsel %vm235, %v1610, %v1632
  %v1634 = vsel %vm237, %v1611, %v1633
  %v1635 = vsel %vm908, %v1612, %v1634
  %v1636 = vsel %vm910, %v1613, %v1635
  %v1637 = vsel %vm912, %v1614, %v1636
  %v1638 = vsel %vm914, %v1615, %v1637
  %v1639 = vsel %vm233, %v1617, %v1616
  %v1640 = vsel %vm235, %v1618, %v1639
  %v1641 = vsel %vm237, %v1619, %v1640
  %v1642 = vsel %vm233, %v1621, %v1620
  %v1643 = vsel %vm235, %v1622, %v1642
  %v1644 = vsel %vm237, %v1623, %v1643
  %v1645 = vsel %vm908, %v1624, %v1644
  %v1646 = vsel %vm910, %v1625, %v1645
  %v1647 = vsel %vm912, %v1626, %v1646
  %v1648 = vsel %vm914, %v1627, %v1647
  %v1649 = vsel %vm233, %v1629, %v1628
  %v1650 = vsel %vm235, %v1630, %v1649
  %v1651 = vsel %vm237, %v1631, %v1650
  %v1656 = vsel %vm365, %v1638, 0.0
  %1657 = vadd.xlane.f32.xlu0 %v1656
  %v1658 = vpop.xlane.xlu0 %1657
  %v1659 = vsel %vm1597, %v1641, 0.0
  %1660 = vadd.xlane.f32.xlu0 %v1659
  %v1661 = vpop.xlane.xlu0 %1660
  %v1662 = vsel %vm365, %v1648, 0.0
  %1663 = vadd.xlane.f32.xlu0 %v1662
  %v1664 = vpop.xlane.xlu0 %1663
  %v1665 = vsel %vm1597, %v1651, 0.0
  %1666 = vadd.xlane.f32.xlu0 %v1665
  %v1667 = vpop.xlane.xlu0 %1666
  %v1692 = vperm.slane %v1452, %v224
  %v1693 = vperm.slane %v1455, %v224
  %v1694 = vperm.slane %v1458, %v224
  %v1695 = vperm.slane %v1461, %v224
  %v1696 = vperm.slane %v1464, %v224
  %v1697 = vperm.slane %v1467, %v224
  %v1698 = vperm.slane %v1470, %v224
  %v1699 = vperm.slane %v1473, %v224
  %v1700 = vperm.slane %v1476, %v224
  %v1701 = vperm.slane %v1479, %v224
  %v1702 = vperm.slane %v1482, %v224
  %v1703 = vperm.slane %v1485, %v224
  %v1704 = vperm.slane %v1488, %v224
  %v1705 = vperm.slane %v1491, %v224
  %v1706 = vperm.slane %v1494, %v224
  %v1707 = vperm.slane %v1497, %v224
  %v1708 = vperm.slane %v1500, %v224
  %v1709 = vperm.slane %v1503, %v224
  %v1710 = vperm.slane %v1506, %v224
  %v1711 = vperm.slane %v1509, %v224
  %v1712 = vperm.slane %v1512, %v224
  %v1713 = vperm.slane %v1515, %v224
  %v1714 = vperm.slane %v1518, %v224
  %v1715 = vperm.slane %v1521, %v224
  %v1716 = vsel %vm233, %v1693, %v1692
  %v1717 = vsel %vm235, %v1694, %v1716
  %v1718 = vsel %vm237, %v1695, %v1717
  %v1719 = vsel %vm908, %v1696, %v1718
  %v1720 = vsel %vm910, %v1697, %v1719
  %v1721 = vsel %vm912, %v1698, %v1720
  %v1722 = vsel %vm914, %v1699, %v1721
  %v1723 = vsel %vm233, %v1701, %v1700
  %v1724 = vsel %vm235, %v1702, %v1723
  %v1725 = vsel %vm237, %v1703, %v1724
  %v1726 = vsel %vm233, %v1705, %v1704
  %v1727 = vsel %vm235, %v1706, %v1726
  %v1728 = vsel %vm237, %v1707, %v1727
  %v1729 = vsel %vm908, %v1708, %v1728
  %v1730 = vsel %vm910, %v1709, %v1729
  %v1731 = vsel %vm912, %v1710, %v1730
  %v1732 = vsel %vm914, %v1711, %v1731
  %v1733 = vsel %vm233, %v1713, %v1712
  %v1734 = vsel %vm235, %v1714, %v1733
  %v1735 = vsel %vm237, %v1715, %v1734
  %v1740 = vsel %vm365, %v1722, 0.0
  %1741 = vadd.xlane.f32.xlu0 %v1740
  %v1742 = vpop.xlane.xlu0 %1741
  %v1743 = vsel %vm1597, %v1725, 0.0
  %1744 = vadd.xlane.f32.xlu0 %v1743
  %v1745 = vpop.xlane.xlu0 %1744
  %v1746 = vsel %vm365, %v1732, 0.0
  %1747 = vadd.xlane.f32.xlu0 %v1746
  %v1748 = vpop.xlane.xlu0 %1747
  %v1749 = vsel %vm1597, %v1735, 0.0
  %1750 = vadd.xlane.f32.xlu0 %v1749
  %v1751 = vpop.xlane.xlu0 %1750
  %v1752 = vperm.slane %v1452, %v1607
  %v1753 = vperm.slane %v1455, %v1607
  %v1754 = vperm.slane %v1458, %v1607
  %v1755 = vperm.slane %v1461, %v1607
  %v1756 = vperm.slane %v1464, %v1607
  %v1757 = vperm.slane %v1467, %v1607
  %v1758 = vperm.slane %v1470, %v1607
  %v1759 = vperm.slane %v1473, %v1607
  %v1760 = vperm.slane %v1476, %v1607
  %v1761 = vperm.slane %v1479, %v1607
  %v1762 = vperm.slane %v1482, %v1607
  %v1763 = vperm.slane %v1485, %v1607
  %v1764 = vperm.slane %v1488, %v1607
  %v1765 = vperm.slane %v1491, %v1607
  %v1766 = vperm.slane %v1494, %v1607
  %v1767 = vperm.slane %v1497, %v1607
  %v1768 = vperm.slane %v1500, %v1607
  %v1769 = vperm.slane %v1503, %v1607
  %v1770 = vperm.slane %v1506, %v1607
  %v1771 = vperm.slane %v1509, %v1607
  %v1772 = vperm.slane %v1512, %v1607
  %v1773 = vperm.slane %v1515, %v1607
  %v1774 = vperm.slane %v1518, %v1607
  %v1775 = vperm.slane %v1521, %v1607
  %v1776 = vsel %vm233, %v1753, %v1752
  %v1777 = vsel %vm235, %v1754, %v1776
  %v1778 = vsel %vm237, %v1755, %v1777
  %v1779 = vsel %vm908, %v1756, %v1778
  %v1780 = vsel %vm910, %v1757, %v1779
  %v1781 = vsel %vm912, %v1758, %v1780
  %v1782 = vsel %vm914, %v1759, %v1781
  %v1783 = vsel %vm233, %v1761, %v1760
  %v1784 = vsel %vm235, %v1762, %v1783
  %v1785 = vsel %vm237, %v1763, %v1784
  %v1786 = vsel %vm233, %v1765, %v1764
  %v1787 = vsel %vm235, %v1766, %v1786
  %v1788 = vsel %vm237, %v1767, %v1787
  %v1789 = vsel %vm908, %v1768, %v1788
  %v1790 = vsel %vm910, %v1769, %v1789
  %v1791 = vsel %vm912, %v1770, %v1790
  %v1792 = vsel %vm914, %v1771, %v1791
  %v1793 = vsel %vm233, %v1773, %v1772
  %v1794 = vsel %vm235, %v1774, %v1793
  %v1795 = vsel %vm237, %v1775, %v1794
  %v1800 = vsel %vm365, %v1782, 0.0
  %1801 = vadd.xlane.f32.xlu0 %v1800
  %v1802 = vpop.xlane.xlu0 %1801
  %v1803 = vsel %vm1597, %v1785, 0.0
  %1804 = vadd.xlane.f32.xlu0 %v1803
  %v1805 = vpop.xlane.xlu0 %1804
  %v1806 = vsel %vm365, %v1792, 0.0
  %1807 = vadd.xlane.f32.xlu0 %v1806
  %v1808 = vpop.xlane.xlu0 %1807
  %v1809 = vsel %vm1597, %v1795, 0.0
  %1810 = vadd.xlane.f32.xlu0 %v1809
  %v1811 = vpop.xlane.xlu0 %1810
  %v1812 = vadd.f32 %v1596, %v1742
  %v1813 = vadd.f32 %v1600, %v1745
  %v1814 = vadd.f32 %v1603, %v1748
  %v1815 = vadd.f32 %v1606, %v1751
  %v1816 = vadd.f32 %v1812, %v1658
  %v1817 = vadd.f32 %v1813, %v1661
  %v1818 = vadd.f32 %v1814, %v1664
  %v1819 = vadd.f32 %v1815, %v1667
  %v1820 = vadd.f32 %v1816, %v1802
  %v1821 = vadd.f32 %v1817, %v1805
  %v1822 = vadd.f32 %v1818, %v1808
  %v1823 = vadd.f32 %v1819, %v1811
  %v1824 = vmul.f32 %v1820, 0.015625
  %v1825 = vmul.f32 %v1821, 0.015625
  %v1826 = vmul.f32 %v1822, 0.015625
  %v1827 = vmul.f32 %v1823, 0.015625
  %v1828 = vmul.f32 %v1596, 0.0625
  %v1829 = vmul.f32 %v1600, 0.0625
  %v1830 = vmul.f32 %v1603, 0.0625
  %v1831 = vmul.f32 %v1606, 0.0625
  %v1832 = vmul.f32 %v1742, 0.0625
  %v1833 = vmul.f32 %v1745, 0.0625
  %v1834 = vmul.f32 %v1748, 0.0625
  %v1835 = vmul.f32 %v1751, 0.0625
  %v1836 = vmul.f32 %v1658, 0.0625
  %v1837 = vmul.f32 %v1661, 0.0625
  %v1838 = vmul.f32 %v1664, 0.0625
  %v1839 = vmul.f32 %v1667, 0.0625
  %v1840 = vmul.f32 %v1802, 0.0625
  %v1841 = vmul.f32 %v1805, 0.0625
  %v1842 = vmul.f32 %v1808, 0.0625
  %v1843 = vmul.f32 %v1811, 0.0625
  %v1844 = vld [vmem:[%s7] sm:$0xff]
  %v1845 = vld [vmem:[%s7 + $0x8] sm:$0xf]
  %v1850 = vperm.slane %v1824, %v224
  %v1851 = vadd.s32 %v224, 4294967288
  %v1852 = vperm.slane %v1825, %v1851
  %vm1853 = vcmask 130112
  %v1854 = vsel %vm1853, %v1852, %v1850
  %v1855 = vperm.slane %v1826, %v224
  %v1856 = vperm.slane %v1827, %v1851
  %v1857 = vsel %vm1853, %v1856, %v1855
  %v1858 = vsel %vm233, %v1857, %v1854
  %vm1859 = vcmask 97280
  %v1860 = vsel %vm1859, %v1858, 0
  %v1863 = vsel %vm368, %v1845, 0
  %1865 = vmatpush.msra.mxu0 0.0
  %1866 = vmatpush.msra.mxu0 0.0
  %1867 = vmatpush.msra.mxu0 0.0
  %1868 = vmatpush.msra.mxu0 0.0
  %1869 = vmatpush.msra.mxu0 0.0
  %1870 = vmatpush.msra.mxu0 0.0
  %1871 = vmatpush.msra.mxu0 0.0
  %1872 = vmatpush.msra.mxu0 0.0
  %1873 = vmatpush.msra.mxu0 0.0
  %1874 = vmatpush.msra.mxu0 0.0
  %1875 = vmatpush.msra.mxu0 0.0
  %1876 = vmatpush.msra.mxu0 0.0
  %1877 = vmatpush.msra.mxu0 0.0
  %1878 = vmatpush.msra.mxu0 0.0
  %1879 = vmatpush.msra.mxu0 %v1863
  %1880 = vmatpush.msra.mxu0 %v1844
  %1881 = vmatmul.f32.gmra.mxu0 %v1860
  %v1882 = vpop.f32.mrf.mxu0
  %v1883 = vadd.f32 0.0, %v1882
  %1884 = vdwg.mxu0
  %v1885 = vadd.f32 %v1257, %v1883
  %s1886 = scalar_lea.vmem %s7, 16
  %v1887 = vld [vmem:[%s1886] sm:$0xff]
  %v1888 = vld [vmem:[%s1886 + $0x8] sm:$0xf]
  %v1893 = vperm.slane %v1828, %v224
  %v1894 = vperm.slane %v1829, %v1851
  %v1895 = vsel %vm1853, %v1894, %v1893
  %v1896 = vperm.slane %v1830, %v224
  %v1897 = vperm.slane %v1831, %v1851
  %v1898 = vsel %vm1853, %v1897, %v1896
  %v1899 = vsel %vm233, %v1898, %v1895
  %v1900 = vsel %vm1859, %v1899, 0
  %v1903 = vsel %vm368, %v1888, 0
  %1905 = vmatpush.msra.mxu0 0.0
  %1906 = vmatpush.msra.mxu0 0.0
  %1907 = vmatpush.msra.mxu0 0.0
  %1908 = vmatpush.msra.mxu0 0.0
  %1909 = vmatpush.msra.mxu0 0.0
  %1910 = vmatpush.msra.mxu0 0.0
  %1911 = vmatpush.msra.mxu0 0.0
  %1912 = vmatpush.msra.mxu0 0.0
  %1913 = vmatpush.msra.mxu0 0.0
  %1914 = vmatpush.msra.mxu0 0.0
  %1915 = vmatpush.msra.mxu0 0.0
  %1916 = vmatpush.msra.mxu0 0.0
  %1917 = vmatpush.msra.mxu0 0.0
  %1918 = vmatpush.msra.mxu0 0.0
  %1919 = vmatpush.msra.mxu0 %v1903
  %1920 = vmatpush.msra.mxu0 %v1887
  %1921 = vmatmul.f32.gmra.mxu0 %v1900
  %v1922 = vpop.f32.mrf.mxu0
  %v1923 = vadd.f32 0.0, %v1922
  %1924 = vdwg.mxu0
  %v1925 = vadd.f32 %v1885, %v1923
  %s1926 = scalar_lea.vmem %s7, 32
  %v1927 = vld [vmem:[%s1926] sm:$0xff]
  %v1928 = vld [vmem:[%s1926 + $0x8] sm:$0xf]
  %v1933 = vperm.slane %v1832, %v224
  %v1934 = vperm.slane %v1833, %v1851
  %v1935 = vsel %vm1853, %v1934, %v1933
  %v1936 = vperm.slane %v1834, %v224
  %v1937 = vperm.slane %v1835, %v1851
  %v1938 = vsel %vm1853, %v1937, %v1936
  %v1939 = vsel %vm233, %v1938, %v1935
  %v1940 = vsel %vm1859, %v1939, 0
  %v1943 = vsel %vm368, %v1928, 0
  %1945 = vmatpush.msra.mxu0 0.0
  %1946 = vmatpush.msra.mxu0 0.0
  %1947 = vmatpush.msra.mxu0 0.0
  %1948 = vmatpush.msra.mxu0 0.0
  %1949 = vmatpush.msra.mxu0 0.0
  %1950 = vmatpush.msra.mxu0 0.0
  %1951 = vmatpush.msra.mxu0 0.0
  %1952 = vmatpush.msra.mxu0 0.0
  %1953 = vmatpush.msra.mxu0 0.0
  %1954 = vmatpush.msra.mxu0 0.0
  %1955 = vmatpush.msra.mxu0 0.0
  %1956 = vmatpush.msra.mxu0 0.0
  %1957 = vmatpush.msra.mxu0 0.0
  %1958 = vmatpush.msra.mxu0 0.0
  %1959 = vmatpush.msra.mxu0 %v1943
  %1960 = vmatpush.msra.mxu0 %v1927
  %1961 = vmatmul.f32.gmra.mxu0 %v1940
  %v1962 = vpop.f32.mrf.mxu0
  %v1963 = vadd.f32 0.0, %v1962
  %1964 = vdwg.mxu0
  %v1965 = vadd.f32 %v1925, %v1963
  %s1966 = scalar_lea.vmem %s7, 48
  %v1967 = vld [vmem:[%s1966] sm:$0xff]
  %v1968 = vld [vmem:[%s1966 + $0x8] sm:$0xf]
  %v1973 = vperm.slane %v1836, %v224
  %v1974 = vperm.slane %v1837, %v1851
  %v1975 = vsel %vm1853, %v1974, %v1973
  %v1976 = vperm.slane %v1838, %v224
  %v1977 = vperm.slane %v1839, %v1851
  %v1978 = vsel %vm1853, %v1977, %v1976
  %v1979 = vsel %vm233, %v1978, %v1975
  %v1980 = vsel %vm1859, %v1979, 0
  %v1983 = vsel %vm368, %v1968, 0
  %1985 = vmatpush.msra.mxu0 0.0
  %1986 = vmatpush.msra.mxu0 0.0
  %1987 = vmatpush.msra.mxu0 0.0
  %1988 = vmatpush.msra.mxu0 0.0
  %1989 = vmatpush.msra.mxu0 0.0
  %1990 = vmatpush.msra.mxu0 0.0
  %1991 = vmatpush.msra.mxu0 0.0
  %1992 = vmatpush.msra.mxu0 0.0
  %1993 = vmatpush.msra.mxu0 0.0
  %1994 = vmatpush.msra.mxu0 0.0
  %1995 = vmatpush.msra.mxu0 0.0
  %1996 = vmatpush.msra.mxu0 0.0
  %1997 = vmatpush.msra.mxu0 0.0
  %1998 = vmatpush.msra.mxu0 0.0
  %1999 = vmatpush.msra.mxu0 %v1983
  %2000 = vmatpush.msra.mxu0 %v1967
  %2001 = vmatmul.f32.gmra.mxu0 %v1980
  %v2002 = vpop.f32.mrf.mxu0
  %v2003 = vadd.f32 0.0, %v2002
  %2004 = vdwg.mxu0
  %v2005 = vadd.f32 %v1965, %v2003
  %s2006 = scalar_lea.vmem %s7, 64
  %v2007 = vld [vmem:[%s2006] sm:$0xff]
  %v2008 = vld [vmem:[%s2006 + $0x8] sm:$0xf]
  %v2013 = vperm.slane %v1840, %v224
  %v2014 = vperm.slane %v1841, %v1851
  %v2015 = vsel %vm1853, %v2014, %v2013
  %v2016 = vperm.slane %v1842, %v224
  %v2017 = vperm.slane %v1843, %v1851
  %v2018 = vsel %vm1853, %v2017, %v2016
  %v2019 = vsel %vm233, %v2018, %v2015
  %v2020 = vsel %vm1859, %v2019, 0
  %v2023 = vsel %vm368, %v2008, 0
  %2025 = vmatpush.msra.mxu0 0.0
  %2026 = vmatpush.msra.mxu0 0.0
  %2027 = vmatpush.msra.mxu0 0.0
  %2028 = vmatpush.msra.mxu0 0.0
  %2029 = vmatpush.msra.mxu0 0.0
  %2030 = vmatpush.msra.mxu0 0.0
  %2031 = vmatpush.msra.mxu0 0.0
  %2032 = vmatpush.msra.mxu0 0.0
  %2033 = vmatpush.msra.mxu0 0.0
  %2034 = vmatpush.msra.mxu0 0.0
  %2035 = vmatpush.msra.mxu0 0.0
  %2036 = vmatpush.msra.mxu0 0.0
  %2037 = vmatpush.msra.mxu0 0.0
  %2038 = vmatpush.msra.mxu0 0.0
  %2039 = vmatpush.msra.mxu0 %v2023
  %2040 = vmatpush.msra.mxu0 %v2007
  %2041 = vmatmul.f32.gmra.mxu0 %v2020
  %v2042 = vpop.f32.mrf.mxu0
  %v2043 = vadd.f32 0.0, %v2042
  %2044 = vdwg.mxu0
  %v2045 = vadd.f32 %v2005, %v2043
  %v2046 = vld [vmem:[%s3] sm:$0xff]
  %v2047 = vld [vmem:[%s3 + $0x8] sm:$0xff]
  %v2048 = vld [vmem:[%s3 + $0x10] sm:$0xff]
  %v2049 = vld [vmem:[%s3 + $0x18] sm:$0xff]
  %v2050 = vld [vmem:[%s3 + $0x20] sm:$0xff]
  %v2051 = vld [vmem:[%s3 + $0x28] sm:$0xff]
  %v2052 = vld [vmem:[%s3 + $0x30] sm:$0xff]
  %v2053 = vld [vmem:[%s3 + $0x38] sm:$0xff]
  %v2054 = vld [vmem:[%s3 + $0x40] sm:$0xff]
  %v2055 = vld [vmem:[%s3 + $0x48] sm:$0xff]
  %v2056 = vld [vmem:[%s3 + $0x50] sm:$0xff]
  %v2057 = vld [vmem:[%s3 + $0x58] sm:$0xff]
  %v2058 = vld [vmem:[%s3 + $0x60] sm:$0xff]
  %v2059 = vld [vmem:[%s3 + $0x68] sm:$0xff]
  %v2060 = vld [vmem:[%s3 + $0x70] sm:$0xff]
  %v2061 = vld [vmem:[%s3 + $0x78] sm:$0xff]
  %v2062 = vld [vmem:[%s3 + $0x80] sm:$0xff]
  %v2063 = vld [vmem:[%s3 + $0x88] sm:$0xff]
  %v2064 = vld [vmem:[%s3 + $0x90] sm:$0xff]
  %v2065 = vld [vmem:[%s3 + $0x98] sm:$0xff]
  %v2066 = vld [vmem:[%s3 + $0xa0] sm:$0xff]
  %v2067 = vld [vmem:[%s3 + $0xa8] sm:$0xff]
  %v2068 = vld [vmem:[%s3 + $0xb0] sm:$0xff]
  %v2069 = vld [vmem:[%s3 + $0xb8] sm:$0xff]
  %v2070 = vld [vmem:[%s3 + $0xc0] sm:$0xff]
  %v2071 = vld [vmem:[%s3 + $0xc8] sm:$0xff]
  %v2072 = vld [vmem:[%s3 + $0xd0] sm:$0xff]
  %v2073 = vld [vmem:[%s3 + $0xd8] sm:$0xff]
  %v2074 = vld [vmem:[%s3 + $0xe0] sm:$0xff]
  %v2075 = vld [vmem:[%s3 + $0xe8] sm:$0xff]
  %v2076 = vld [vmem:[%s3 + $0xf0] sm:$0xff]
  %v2077 = vld [vmem:[%s3 + $0xf8] sm:$0xff]
  %v2078 = vsel %vm365, %v2046, 0.0
  %2079 = vadd.xlane.f32.xlu0 %v2078
  %v2080 = vpop.xlane.xlu0 %2079
  %v2081 = vsel %vm365, %v2047, 0.0
  %2082 = vadd.xlane.f32.xlu0 %v2081
  %v2083 = vpop.xlane.xlu0 %2082
  %v2084 = vsel %vm365, %v2048, 0.0
  %2085 = vadd.xlane.f32.xlu0 %v2084
  %v2086 = vpop.xlane.xlu0 %2085
  %v2087 = vsel %vm365, %v2049, 0.0
  %2088 = vadd.xlane.f32.xlu0 %v2087
  %v2089 = vpop.xlane.xlu0 %2088
  %v2090 = vsel %vm365, %v2050, 0.0
  %2091 = vadd.xlane.f32.xlu0 %v2090
  %v2092 = vpop.xlane.xlu0 %2091
  %v2093 = vsel %vm365, %v2051, 0.0
  %2094 = vadd.xlane.f32.xlu0 %v2093
  %v2095 = vpop.xlane.xlu0 %2094
  %v2096 = vsel %vm365, %v2052, 0.0
  %2097 = vadd.xlane.f32.xlu0 %v2096
  %v2098 = vpop.xlane.xlu0 %2097
  %v2099 = vsel %vm365, %v2053, 0.0
  %2100 = vadd.xlane.f32.xlu0 %v2099
  %v2101 = vpop.xlane.xlu0 %2100
  %v2102 = vsel %vm365, %v2054, 0.0
  %2103 = vadd.xlane.f32.xlu0 %v2102
  %v2104 = vpop.xlane.xlu0 %2103
  %v2105 = vsel %vm365, %v2055, 0.0
  %2106 = vadd.xlane.f32.xlu0 %v2105
  %v2107 = vpop.xlane.xlu0 %2106
  %v2108 = vsel %vm365, %v2056, 0.0
  %2109 = vadd.xlane.f32.xlu0 %v2108
  %v2110 = vpop.xlane.xlu0 %2109
  %v2111 = vsel %vm365, %v2057, 0.0
  %2112 = vadd.xlane.f32.xlu0 %v2111
  %v2113 = vpop.xlane.xlu0 %2112
  %v2114 = vsel %vm365, %v2058, 0.0
  %2115 = vadd.xlane.f32.xlu0 %v2114
  %v2116 = vpop.xlane.xlu0 %2115
  %v2117 = vsel %vm365, %v2059, 0.0
  %2118 = vadd.xlane.f32.xlu0 %v2117
  %v2119 = vpop.xlane.xlu0 %2118
  %v2120 = vsel %vm365, %v2060, 0.0
  %2121 = vadd.xlane.f32.xlu0 %v2120
  %v2122 = vpop.xlane.xlu0 %2121
  %v2123 = vsel %vm365, %v2061, 0.0
  %2124 = vadd.xlane.f32.xlu0 %v2123
  %v2125 = vpop.xlane.xlu0 %2124
  %v2126 = vsel %vm365, %v2062, 0.0
  %2127 = vadd.xlane.f32.xlu0 %v2126
  %v2128 = vpop.xlane.xlu0 %2127
  %v2129 = vsel %vm365, %v2063, 0.0
  %2130 = vadd.xlane.f32.xlu0 %v2129
  %v2131 = vpop.xlane.xlu0 %2130
  %v2132 = vsel %vm365, %v2064, 0.0
  %2133 = vadd.xlane.f32.xlu0 %v2132
  %v2134 = vpop.xlane.xlu0 %2133
  %v2135 = vsel %vm365, %v2065, 0.0
  %2136 = vadd.xlane.f32.xlu0 %v2135
  %v2137 = vpop.xlane.xlu0 %2136
  %v2138 = vsel %vm365, %v2066, 0.0
  %2139 = vadd.xlane.f32.xlu0 %v2138
  %v2140 = vpop.xlane.xlu0 %2139
  %v2141 = vsel %vm365, %v2067, 0.0
  %2142 = vadd.xlane.f32.xlu0 %v2141
  %v2143 = vpop.xlane.xlu0 %2142
  %v2144 = vsel %vm365, %v2068, 0.0
  %2145 = vadd.xlane.f32.xlu0 %v2144
  %v2146 = vpop.xlane.xlu0 %2145
  %v2147 = vsel %vm365, %v2069, 0.0
  %2148 = vadd.xlane.f32.xlu0 %v2147
  %v2149 = vpop.xlane.xlu0 %2148
  %v2150 = vsel %vm365, %v2070, 0.0
  %2151 = vadd.xlane.f32.xlu0 %v2150
  %v2152 = vpop.xlane.xlu0 %2151
  %v2153 = vsel %vm365, %v2071, 0.0
  %2154 = vadd.xlane.f32.xlu0 %v2153
  %v2155 = vpop.xlane.xlu0 %2154
  %v2156 = vsel %vm365, %v2072, 0.0
  %2157 = vadd.xlane.f32.xlu0 %v2156
  %v2158 = vpop.xlane.xlu0 %2157
  %v2159 = vsel %vm365, %v2073, 0.0
  %2160 = vadd.xlane.f32.xlu0 %v2159
  %v2161 = vpop.xlane.xlu0 %2160
  %v2162 = vsel %vm365, %v2074, 0.0
  %2163 = vadd.xlane.f32.xlu0 %v2162
  %v2164 = vpop.xlane.xlu0 %2163
  %v2165 = vsel %vm365, %v2075, 0.0
  %2166 = vadd.xlane.f32.xlu0 %v2165
  %v2167 = vpop.xlane.xlu0 %2166
  %v2168 = vsel %vm365, %v2076, 0.0
  %2169 = vadd.xlane.f32.xlu0 %v2168
  %v2170 = vpop.xlane.xlu0 %2169
  %v2171 = vsel %vm365, %v2077, 0.0
  %2172 = vadd.xlane.f32.xlu0 %v2171
  %v2173 = vpop.xlane.xlu0 %2172
  %2206 = vrot.lane.b32.xlu0 %v2046, 124
  %v2207 = vpop.permute.xlu0 %2206
  %2208 = vrot.lane.b32.xlu0 %v2047, 124
  %v2209 = vpop.permute.xlu0 %2208
  %2210 = vrot.lane.b32.xlu0 %v2048, 124
  %v2211 = vpop.permute.xlu0 %2210
  %2212 = vrot.lane.b32.xlu0 %v2049, 124
  %v2213 = vpop.permute.xlu0 %2212
  %2214 = vrot.lane.b32.xlu0 %v2050, 124
  %v2215 = vpop.permute.xlu0 %2214
  %2216 = vrot.lane.b32.xlu0 %v2051, 124
  %v2217 = vpop.permute.xlu0 %2216
  %2218 = vrot.lane.b32.xlu0 %v2052, 124
  %v2219 = vpop.permute.xlu0 %2218
  %2220 = vrot.lane.b32.xlu0 %v2053, 124
  %v2221 = vpop.permute.xlu0 %2220
  %2222 = vrot.lane.b32.xlu0 %v2054, 124
  %v2223 = vpop.permute.xlu0 %2222
  %2224 = vrot.lane.b32.xlu0 %v2055, 124
  %v2225 = vpop.permute.xlu0 %2224
  %2226 = vrot.lane.b32.xlu0 %v2056, 124
  %v2227 = vpop.permute.xlu0 %2226
  %2228 = vrot.lane.b32.xlu0 %v2057, 124
  %v2229 = vpop.permute.xlu0 %2228
  %2230 = vrot.lane.b32.xlu0 %v2058, 124
  %v2231 = vpop.permute.xlu0 %2230
  %2232 = vrot.lane.b32.xlu0 %v2059, 124
  %v2233 = vpop.permute.xlu0 %2232
  %2234 = vrot.lane.b32.xlu0 %v2060, 124
  %v2235 = vpop.permute.xlu0 %2234
  %2236 = vrot.lane.b32.xlu0 %v2061, 124
  %v2237 = vpop.permute.xlu0 %2236
  %2238 = vrot.lane.b32.xlu0 %v2062, 124
  %v2239 = vpop.permute.xlu0 %2238
  %2240 = vrot.lane.b32.xlu0 %v2063, 124
  %v2241 = vpop.permute.xlu0 %2240
  %2242 = vrot.lane.b32.xlu0 %v2064, 124
  %v2243 = vpop.permute.xlu0 %2242
  %2244 = vrot.lane.b32.xlu0 %v2065, 124
  %v2245 = vpop.permute.xlu0 %2244
  %2246 = vrot.lane.b32.xlu0 %v2066, 124
  %v2247 = vpop.permute.xlu0 %2246
  %2248 = vrot.lane.b32.xlu0 %v2067, 124
  %v2249 = vpop.permute.xlu0 %2248
  %2250 = vrot.lane.b32.xlu0 %v2068, 124
  %v2251 = vpop.permute.xlu0 %2250
  %2252 = vrot.lane.b32.xlu0 %v2069, 124
  %v2253 = vpop.permute.xlu0 %2252
  %2254 = vrot.lane.b32.xlu0 %v2070, 124
  %v2255 = vpop.permute.xlu0 %2254
  %2256 = vrot.lane.b32.xlu0 %v2071, 124
  %v2257 = vpop.permute.xlu0 %2256
  %2258 = vrot.lane.b32.xlu0 %v2072, 124
  %v2259 = vpop.permute.xlu0 %2258
  %2260 = vrot.lane.b32.xlu0 %v2073, 124
  %v2261 = vpop.permute.xlu0 %2260
  %2262 = vrot.lane.b32.xlu0 %v2074, 124
  %v2263 = vpop.permute.xlu0 %2262
  %2264 = vrot.lane.b32.xlu0 %v2075, 124
  %v2265 = vpop.permute.xlu0 %2264
  %2266 = vrot.lane.b32.xlu0 %v2076, 124
  %v2267 = vpop.permute.xlu0 %2266
  %2268 = vrot.lane.b32.xlu0 %v2077, 124
  %v2269 = vpop.permute.xlu0 %2268
  %v2302 = vsel %vm365, %v2207, 0.0
  %2303 = vadd.xlane.f32.xlu0 %v2302
  %v2304 = vpop.xlane.xlu0 %2303
  %v2305 = vsel %vm365, %v2209, 0.0
  %2306 = vadd.xlane.f32.xlu0 %v2305
  %v2307 = vpop.xlane.xlu0 %2306
  %v2308 = vsel %vm365, %v2211, 0.0
  %2309 = vadd.xlane.f32.xlu0 %v2308
  %v2310 = vpop.xlane.xlu0 %2309
  %v2311 = vsel %vm365, %v2213, 0.0
  %2312 = vadd.xlane.f32.xlu0 %v2311
  %v2313 = vpop.xlane.xlu0 %2312
  %v2314 = vsel %vm365, %v2215, 0.0
  %2315 = vadd.xlane.f32.xlu0 %v2314
  %v2316 = vpop.xlane.xlu0 %2315
  %v2317 = vsel %vm365, %v2217, 0.0
  %2318 = vadd.xlane.f32.xlu0 %v2317
  %v2319 = vpop.xlane.xlu0 %2318
  %v2320 = vsel %vm365, %v2219, 0.0
  %2321 = vadd.xlane.f32.xlu0 %v2320
  %v2322 = vpop.xlane.xlu0 %2321
  %v2323 = vsel %vm365, %v2221, 0.0
  %2324 = vadd.xlane.f32.xlu0 %v2323
  %v2325 = vpop.xlane.xlu0 %2324
  %v2326 = vsel %vm365, %v2223, 0.0
  %2327 = vadd.xlane.f32.xlu0 %v2326
  %v2328 = vpop.xlane.xlu0 %2327
  %v2329 = vsel %vm365, %v2225, 0.0
  %2330 = vadd.xlane.f32.xlu0 %v2329
  %v2331 = vpop.xlane.xlu0 %2330
  %v2332 = vsel %vm365, %v2227, 0.0
  %2333 = vadd.xlane.f32.xlu0 %v2332
  %v2334 = vpop.xlane.xlu0 %2333
  %v2335 = vsel %vm365, %v2229, 0.0
  %2336 = vadd.xlane.f32.xlu0 %v2335
  %v2337 = vpop.xlane.xlu0 %2336
  %v2338 = vsel %vm365, %v2231, 0.0
  %2339 = vadd.xlane.f32.xlu0 %v2338
  %v2340 = vpop.xlane.xlu0 %2339
  %v2341 = vsel %vm365, %v2233, 0.0
  %2342 = vadd.xlane.f32.xlu0 %v2341
  %v2343 = vpop.xlane.xlu0 %2342
  %v2344 = vsel %vm365, %v2235, 0.0
  %2345 = vadd.xlane.f32.xlu0 %v2344
  %v2346 = vpop.xlane.xlu0 %2345
  %v2347 = vsel %vm365, %v2237, 0.0
  %2348 = vadd.xlane.f32.xlu0 %v2347
  %v2349 = vpop.xlane.xlu0 %2348
  %v2350 = vsel %vm365, %v2239, 0.0
  %2351 = vadd.xlane.f32.xlu0 %v2350
  %v2352 = vpop.xlane.xlu0 %2351
  %v2353 = vsel %vm365, %v2241, 0.0
  %2354 = vadd.xlane.f32.xlu0 %v2353
  %v2355 = vpop.xlane.xlu0 %2354
  %v2356 = vsel %vm365, %v2243, 0.0
  %2357 = vadd.xlane.f32.xlu0 %v2356
  %v2358 = vpop.xlane.xlu0 %2357
  %v2359 = vsel %vm365, %v2245, 0.0
  %2360 = vadd.xlane.f32.xlu0 %v2359
  %v2361 = vpop.xlane.xlu0 %2360
  %v2362 = vsel %vm365, %v2247, 0.0
  %2363 = vadd.xlane.f32.xlu0 %v2362
  %v2364 = vpop.xlane.xlu0 %2363
  %v2365 = vsel %vm365, %v2249, 0.0
  %2366 = vadd.xlane.f32.xlu0 %v2365
  %v2367 = vpop.xlane.xlu0 %2366
  %v2368 = vsel %vm365, %v2251, 0.0
  %2369 = vadd.xlane.f32.xlu0 %v2368
  %v2370 = vpop.xlane.xlu0 %2369
  %v2371 = vsel %vm365, %v2253, 0.0
  %2372 = vadd.xlane.f32.xlu0 %v2371
  %v2373 = vpop.xlane.xlu0 %2372
  %v2374 = vsel %vm365, %v2255, 0.0
  %2375 = vadd.xlane.f32.xlu0 %v2374
  %v2376 = vpop.xlane.xlu0 %2375
  %v2377 = vsel %vm365, %v2257, 0.0
  %2378 = vadd.xlane.f32.xlu0 %v2377
  %v2379 = vpop.xlane.xlu0 %2378
  %v2380 = vsel %vm365, %v2259, 0.0
  %2381 = vadd.xlane.f32.xlu0 %v2380
  %v2382 = vpop.xlane.xlu0 %2381
  %v2383 = vsel %vm365, %v2261, 0.0
  %2384 = vadd.xlane.f32.xlu0 %v2383
  %v2385 = vpop.xlane.xlu0 %2384
  %v2386 = vsel %vm365, %v2263, 0.0
  %2387 = vadd.xlane.f32.xlu0 %v2386
  %v2388 = vpop.xlane.xlu0 %2387
  %v2389 = vsel %vm365, %v2265, 0.0
  %2390 = vadd.xlane.f32.xlu0 %v2389
  %v2391 = vpop.xlane.xlu0 %2390
  %v2392 = vsel %vm365, %v2267, 0.0
  %2393 = vadd.xlane.f32.xlu0 %v2392
  %v2394 = vpop.xlane.xlu0 %2393
  %v2395 = vsel %vm365, %v2269, 0.0
  %2396 = vadd.xlane.f32.xlu0 %v2395
  %v2397 = vpop.xlane.xlu0 %2396
  %v2430 = vperm.slane %v2080, %v224
  %v2431 = vperm.slane %v2083, %v224
  %v2432 = vperm.slane %v2086, %v224
  %v2433 = vperm.slane %v2089, %v224
  %v2434 = vperm.slane %v2092, %v224
  %v2435 = vperm.slane %v2095, %v224
  %v2436 = vperm.slane %v2098, %v224
  %v2437 = vperm.slane %v2101, %v224
  %v2438 = vperm.slane %v2104, %v224
  %v2439 = vperm.slane %v2107, %v224
  %v2440 = vperm.slane %v2110, %v224
  %v2441 = vperm.slane %v2113, %v224
  %v2442 = vperm.slane %v2116, %v224
  %v2443 = vperm.slane %v2119, %v224
  %v2444 = vperm.slane %v2122, %v224
  %v2445 = vperm.slane %v2125, %v224
  %v2446 = vperm.slane %v2128, %v224
  %v2447 = vperm.slane %v2131, %v224
  %v2448 = vperm.slane %v2134, %v224
  %v2449 = vperm.slane %v2137, %v224
  %v2450 = vperm.slane %v2140, %v224
  %v2451 = vperm.slane %v2143, %v224
  %v2452 = vperm.slane %v2146, %v224
  %v2453 = vperm.slane %v2149, %v224
  %v2454 = vperm.slane %v2152, %v224
  %v2455 = vperm.slane %v2155, %v224
  %v2456 = vperm.slane %v2158, %v224
  %v2457 = vperm.slane %v2161, %v224
  %v2458 = vperm.slane %v2164, %v224
  %v2459 = vperm.slane %v2167, %v224
  %v2460 = vperm.slane %v2170, %v224
  %v2461 = vperm.slane %v2173, %v224
  %v2462 = vsel %vm233, %v2431, %v2430
  %v2463 = vsel %vm235, %v2432, %v2462
  %v2464 = vsel %vm237, %v2433, %v2463
  %v2465 = vsel %vm908, %v2434, %v2464
  %v2466 = vsel %vm910, %v2435, %v2465
  %v2467 = vsel %vm912, %v2436, %v2466
  %v2468 = vsel %vm914, %v2437, %v2467
  %v2469 = vsel %vm233, %v2439, %v2438
  %v2470 = vsel %vm235, %v2440, %v2469
  %v2471 = vsel %vm237, %v2441, %v2470
  %v2472 = vsel %vm908, %v2442, %v2471
  %v2473 = vsel %vm910, %v2443, %v2472
  %v2474 = vsel %vm912, %v2444, %v2473
  %v2475 = vsel %vm914, %v2445, %v2474
  %v2476 = vsel %vm233, %v2447, %v2446
  %v2477 = vsel %vm235, %v2448, %v2476
  %v2478 = vsel %vm237, %v2449, %v2477
  %v2479 = vsel %vm908, %v2450, %v2478
  %v2480 = vsel %vm910, %v2451, %v2479
  %v2481 = vsel %vm912, %v2452, %v2480
  %v2482 = vsel %vm914, %v2453, %v2481
  %v2483 = vsel %vm233, %v2455, %v2454
  %v2484 = vsel %vm235, %v2456, %v2483
  %v2485 = vsel %vm237, %v2457, %v2484
  %v2486 = vsel %vm908, %v2458, %v2485
  %v2487 = vsel %vm910, %v2459, %v2486
  %v2488 = vsel %vm912, %v2460, %v2487
  %v2489 = vsel %vm914, %v2461, %v2488
  %v2494 = vsel %vm365, %v2468, 0.0
  %2495 = vadd.xlane.f32.xlu0 %v2494
  %v2496 = vpop.xlane.xlu0 %2495
  %v2497 = vsel %vm365, %v2475, 0.0
  %2498 = vadd.xlane.f32.xlu0 %v2497
  %v2499 = vpop.xlane.xlu0 %2498
  %v2500 = vsel %vm365, %v2482, 0.0
  %2501 = vadd.xlane.f32.xlu0 %v2500
  %v2502 = vpop.xlane.xlu0 %2501
  %v2503 = vsel %vm365, %v2489, 0.0
  %2504 = vadd.xlane.f32.xlu0 %v2503
  %v2505 = vpop.xlane.xlu0 %2504
  %v2506 = vperm.slane %v2080, %v1607
  %v2507 = vperm.slane %v2083, %v1607
  %v2508 = vperm.slane %v2086, %v1607
  %v2509 = vperm.slane %v2089, %v1607
  %v2510 = vperm.slane %v2092, %v1607
  %v2511 = vperm.slane %v2095, %v1607
  %v2512 = vperm.slane %v2098, %v1607
  %v2513 = vperm.slane %v2101, %v1607
  %v2514 = vperm.slane %v2104, %v1607
  %v2515 = vperm.slane %v2107, %v1607
  %v2516 = vperm.slane %v2110, %v1607
  %v2517 = vperm.slane %v2113, %v1607
  %v2518 = vperm.slane %v2116, %v1607
  %v2519 = vperm.slane %v2119, %v1607
  %v2520 = vperm.slane %v2122, %v1607
  %v2521 = vperm.slane %v2125, %v1607
  %v2522 = vperm.slane %v2128, %v1607
  %v2523 = vperm.slane %v2131, %v1607
  %v2524 = vperm.slane %v2134, %v1607
  %v2525 = vperm.slane %v2137, %v1607
  %v2526 = vperm.slane %v2140, %v1607
  %v2527 = vperm.slane %v2143, %v1607
  %v2528 = vperm.slane %v2146, %v1607
  %v2529 = vperm.slane %v2149, %v1607
  %v2530 = vperm.slane %v2152, %v1607
  %v2531 = vperm.slane %v2155, %v1607
  %v2532 = vperm.slane %v2158, %v1607
  %v2533 = vperm.slane %v2161, %v1607
  %v2534 = vperm.slane %v2164, %v1607
  %v2535 = vperm.slane %v2167, %v1607
  %v2536 = vperm.slane %v2170, %v1607
  %v2537 = vperm.slane %v2173, %v1607
  %v2538 = vsel %vm233, %v2507, %v2506
  %v2539 = vsel %vm235, %v2508, %v2538
  %v2540 = vsel %vm237, %v2509, %v2539
  %v2541 = vsel %vm908, %v2510, %v2540
  %v2542 = vsel %vm910, %v2511, %v2541
  %v2543 = vsel %vm912, %v2512, %v2542
  %v2544 = vsel %vm914, %v2513, %v2543
  %v2545 = vsel %vm233, %v2515, %v2514
  %v2546 = vsel %vm235, %v2516, %v2545
  %v2547 = vsel %vm237, %v2517, %v2546
  %v2548 = vsel %vm908, %v2518, %v2547
  %v2549 = vsel %vm910, %v2519, %v2548
  %v2550 = vsel %vm912, %v2520, %v2549
  %v2551 = vsel %vm914, %v2521, %v2550
  %v2552 = vsel %vm233, %v2523, %v2522
  %v2553 = vsel %vm235, %v2524, %v2552
  %v2554 = vsel %vm237, %v2525, %v2553
  %v2555 = vsel %vm908, %v2526, %v2554
  %v2556 = vsel %vm910, %v2527, %v2555
  %v2557 = vsel %vm912, %v2528, %v2556
  %v2558 = vsel %vm914, %v2529, %v2557
  %v2559 = vsel %vm233, %v2531, %v2530
  %v2560 = vsel %vm235, %v2532, %v2559
  %v2561 = vsel %vm237, %v2533, %v2560
  %v2562 = vsel %vm908, %v2534, %v2561
  %v2563 = vsel %vm910, %v2535, %v2562
  %v2564 = vsel %vm912, %v2536, %v2563
  %v2565 = vsel %vm914, %v2537, %v2564
  %v2570 = vsel %vm365, %v2544, 0.0
  %2571 = vadd.xlane.f32.xlu0 %v2570
  %v2572 = vpop.xlane.xlu0 %2571
  %v2573 = vsel %vm365, %v2551, 0.0
  %2574 = vadd.xlane.f32.xlu0 %v2573
  %v2575 = vpop.xlane.xlu0 %2574
  %v2576 = vsel %vm365, %v2558, 0.0
  %2577 = vadd.xlane.f32.xlu0 %v2576
  %v2578 = vpop.xlane.xlu0 %2577
  %v2579 = vsel %vm365, %v2565, 0.0
  %2580 = vadd.xlane.f32.xlu0 %v2579
  %v2581 = vpop.xlane.xlu0 %2580
  %v2614 = vperm.slane %v2304, %v224
  %v2615 = vperm.slane %v2307, %v224
  %v2616 = vperm.slane %v2310, %v224
  %v2617 = vperm.slane %v2313, %v224
  %v2618 = vperm.slane %v2316, %v224
  %v2619 = vperm.slane %v2319, %v224
  %v2620 = vperm.slane %v2322, %v224
  %v2621 = vperm.slane %v2325, %v224
  %v2622 = vperm.slane %v2328, %v224
  %v2623 = vperm.slane %v2331, %v224
  %v2624 = vperm.slane %v2334, %v224
  %v2625 = vperm.slane %v2337, %v224
  %v2626 = vperm.slane %v2340, %v224
  %v2627 = vperm.slane %v2343, %v224
  %v2628 = vperm.slane %v2346, %v224
  %v2629 = vperm.slane %v2349, %v224
  %v2630 = vperm.slane %v2352, %v224
  %v2631 = vperm.slane %v2355, %v224
  %v2632 = vperm.slane %v2358, %v224
  %v2633 = vperm.slane %v2361, %v224
  %v2634 = vperm.slane %v2364, %v224
  %v2635 = vperm.slane %v2367, %v224
  %v2636 = vperm.slane %v2370, %v224
  %v2637 = vperm.slane %v2373, %v224
  %v2638 = vperm.slane %v2376, %v224
  %v2639 = vperm.slane %v2379, %v224
  %v2640 = vperm.slane %v2382, %v224
  %v2641 = vperm.slane %v2385, %v224
  %v2642 = vperm.slane %v2388, %v224
  %v2643 = vperm.slane %v2391, %v224
  %v2644 = vperm.slane %v2394, %v224
  %v2645 = vperm.slane %v2397, %v224
  %v2646 = vsel %vm233, %v2615, %v2614
  %v2647 = vsel %vm235, %v2616, %v2646
  %v2648 = vsel %vm237, %v2617, %v2647
  %v2649 = vsel %vm908, %v2618, %v2648
  %v2650 = vsel %vm910, %v2619, %v2649
  %v2651 = vsel %vm912, %v2620, %v2650
  %v2652 = vsel %vm914, %v2621, %v2651
  %v2653 = vsel %vm233, %v2623, %v2622
  %v2654 = vsel %vm235, %v2624, %v2653
  %v2655 = vsel %vm237, %v2625, %v2654
  %v2656 = vsel %vm908, %v2626, %v2655
  %v2657 = vsel %vm910, %v2627, %v2656
  %v2658 = vsel %vm912, %v2628, %v2657
  %v2659 = vsel %vm914, %v2629, %v2658
  %v2660 = vsel %vm233, %v2631, %v2630
  %v2661 = vsel %vm235, %v2632, %v2660
  %v2662 = vsel %vm237, %v2633, %v2661
  %v2663 = vsel %vm908, %v2634, %v2662
  %v2664 = vsel %vm910, %v2635, %v2663
  %v2665 = vsel %vm912, %v2636, %v2664
  %v2666 = vsel %vm914, %v2637, %v2665
  %v2667 = vsel %vm233, %v2639, %v2638
  %v2668 = vsel %vm235, %v2640, %v2667
  %v2669 = vsel %vm237, %v2641, %v2668
  %v2670 = vsel %vm908, %v2642, %v2669
  %v2671 = vsel %vm910, %v2643, %v2670
  %v2672 = vsel %vm912, %v2644, %v2671
  %v2673 = vsel %vm914, %v2645, %v2672
  %v2678 = vsel %vm365, %v2652, 0.0
  %2679 = vadd.xlane.f32.xlu0 %v2678
  %v2680 = vpop.xlane.xlu0 %2679
  %v2681 = vsel %vm365, %v2659, 0.0
  %2682 = vadd.xlane.f32.xlu0 %v2681
  %v2683 = vpop.xlane.xlu0 %2682
  %v2684 = vsel %vm365, %v2666, 0.0
  %2685 = vadd.xlane.f32.xlu0 %v2684
  %v2686 = vpop.xlane.xlu0 %2685
  %v2687 = vsel %vm365, %v2673, 0.0
  %2688 = vadd.xlane.f32.xlu0 %v2687
  %v2689 = vpop.xlane.xlu0 %2688
  %v2690 = vperm.slane %v2304, %v1607
  %v2691 = vperm.slane %v2307, %v1607
  %v2692 = vperm.slane %v2310, %v1607
  %v2693 = vperm.slane %v2313, %v1607
  %v2694 = vperm.slane %v2316, %v1607
  %v2695 = vperm.slane %v2319, %v1607
  %v2696 = vperm.slane %v2322, %v1607
  %v2697 = vperm.slane %v2325, %v1607
  %v2698 = vperm.slane %v2328, %v1607
  %v2699 = vperm.slane %v2331, %v1607
  %v2700 = vperm.slane %v2334, %v1607
  %v2701 = vperm.slane %v2337, %v1607
  %v2702 = vperm.slane %v2340, %v1607
  %v2703 = vperm.slane %v2343, %v1607
  %v2704 = vperm.slane %v2346, %v1607
  %v2705 = vperm.slane %v2349, %v1607
  %v2706 = vperm.slane %v2352, %v1607
  %v2707 = vperm.slane %v2355, %v1607
  %v2708 = vperm.slane %v2358, %v1607
  %v2709 = vperm.slane %v2361, %v1607
  %v2710 = vperm.slane %v2364, %v1607
  %v2711 = vperm.slane %v2367, %v1607
  %v2712 = vperm.slane %v2370, %v1607
  %v2713 = vperm.slane %v2373, %v1607
  %v2714 = vperm.slane %v2376, %v1607
  %v2715 = vperm.slane %v2379, %v1607
  %v2716 = vperm.slane %v2382, %v1607
  %v2717 = vperm.slane %v2385, %v1607
  %v2718 = vperm.slane %v2388, %v1607
  %v2719 = vperm.slane %v2391, %v1607
  %v2720 = vperm.slane %v2394, %v1607
  %v2721 = vperm.slane %v2397, %v1607
  %v2722 = vsel %vm233, %v2691, %v2690
  %v2723 = vsel %vm235, %v2692, %v2722
  %v2724 = vsel %vm237, %v2693, %v2723
  %v2725 = vsel %vm908, %v2694, %v2724
  %v2726 = vsel %vm910, %v2695, %v2725
  %v2727 = vsel %vm912, %v2696, %v2726
  %v2728 = vsel %vm914, %v2697, %v2727
  %v2729 = vsel %vm233, %v2699, %v2698
  %v2730 = vsel %vm235, %v2700, %v2729
  %v2731 = vsel %vm237, %v2701, %v2730
  %v2732 = vsel %vm908, %v2702, %v2731
  %v2733 = vsel %vm910, %v2703, %v2732
  %v2734 = vsel %vm912, %v2704, %v2733
  %v2735 = vsel %vm914, %v2705, %v2734
  %v2736 = vsel %vm233, %v2707, %v2706
  %v2737 = vsel %vm235, %v2708, %v2736
  %v2738 = vsel %vm237, %v2709, %v2737
  %v2739 = vsel %vm908, %v2710, %v2738
  %v2740 = vsel %vm910, %v2711, %v2739
  %v2741 = vsel %vm912, %v2712, %v2740
  %v2742 = vsel %vm914, %v2713, %v2741
  %v2743 = vsel %vm233, %v2715, %v2714
  %v2744 = vsel %vm235, %v2716, %v2743
  %v2745 = vsel %vm237, %v2717, %v2744
  %v2746 = vsel %vm908, %v2718, %v2745
  %v2747 = vsel %vm910, %v2719, %v2746
  %v2748 = vsel %vm912, %v2720, %v2747
  %v2749 = vsel %vm914, %v2721, %v2748
  %v2754 = vsel %vm365, %v2728, 0.0
  %2755 = vadd.xlane.f32.xlu0 %v2754
  %v2756 = vpop.xlane.xlu0 %2755
  %v2757 = vsel %vm365, %v2735, 0.0
  %2758 = vadd.xlane.f32.xlu0 %v2757
  %v2759 = vpop.xlane.xlu0 %2758
  %v2760 = vsel %vm365, %v2742, 0.0
  %2761 = vadd.xlane.f32.xlu0 %v2760
  %v2762 = vpop.xlane.xlu0 %2761
  %v2763 = vsel %vm365, %v2749, 0.0
  %2764 = vadd.xlane.f32.xlu0 %v2763
  %v2765 = vpop.xlane.xlu0 %2764
  %v2766 = vadd.f32 %v2496, %v2680
  %v2767 = vadd.f32 %v2499, %v2683
  %v2768 = vadd.f32 %v2502, %v2686
  %v2769 = vadd.f32 %v2505, %v2689
  %v2770 = vadd.f32 %v2766, %v2572
  %v2771 = vadd.f32 %v2767, %v2575
  %v2772 = vadd.f32 %v2768, %v2578
  %v2773 = vadd.f32 %v2769, %v2581
  %v2774 = vadd.f32 %v2770, %v2756
  %v2775 = vadd.f32 %v2771, %v2759
  %v2776 = vadd.f32 %v2772, %v2762
  %v2777 = vadd.f32 %v2773, %v2765
  %v2778 = vmul.f32 %v2774, 0.015625
  %v2779 = vmul.f32 %v2775, 0.015625
  %v2780 = vmul.f32 %v2776, 0.015625
  %v2781 = vmul.f32 %v2777, 0.015625
  %v2782 = vmul.f32 %v2496, 0.0625
  %v2783 = vmul.f32 %v2499, 0.0625
  %v2784 = vmul.f32 %v2502, 0.0625
  %v2785 = vmul.f32 %v2505, 0.0625
  %v2786 = vmul.f32 %v2680, 0.0625
  %v2787 = vmul.f32 %v2683, 0.0625
  %v2788 = vmul.f32 %v2686, 0.0625
  %v2789 = vmul.f32 %v2689, 0.0625
  %v2790 = vmul.f32 %v2572, 0.0625
  %v2791 = vmul.f32 %v2575, 0.0625
  %v2792 = vmul.f32 %v2578, 0.0625
  %v2793 = vmul.f32 %v2581, 0.0625
  %v2794 = vmul.f32 %v2756, 0.0625
  %v2795 = vmul.f32 %v2759, 0.0625
  %v2796 = vmul.f32 %v2762, 0.0625
  %v2797 = vmul.f32 %v2765, 0.0625
  %v2798 = vld [vmem:[%s8] sm:$0xff]
  %v2799 = vld [vmem:[%s8 + $0x8] sm:$0xff]
  %v2804 = vperm.slane %v2778, %v224
  %v2805 = vperm.slane %v2779, %v1851
  %v2806 = vsel %vm1853, %v2805, %v2804
  %v2807 = vperm.slane %v2780, %v224
  %v2808 = vperm.slane %v2781, %v1851
  %v2809 = vsel %vm1853, %v2808, %v2807
  %v2810 = vsel %vm233, %v2809, %v2806
  %vm2811 = vcmask 130048
  %v2812 = vsel %vm2811, %v2810, 0
  %2814 = vmatpush.msra.mxu0 0.0
  %2815 = vmatpush.msra.mxu0 0.0
  %2816 = vmatpush.msra.mxu0 0.0
  %2817 = vmatpush.msra.mxu0 0.0
  %2818 = vmatpush.msra.mxu0 0.0
  %2819 = vmatpush.msra.mxu0 0.0
  %2820 = vmatpush.msra.mxu0 0.0
  %2821 = vmatpush.msra.mxu0 0.0
  %2822 = vmatpush.msra.mxu0 0.0
  %2823 = vmatpush.msra.mxu0 0.0
  %2824 = vmatpush.msra.mxu0 0.0
  %2825 = vmatpush.msra.mxu0 0.0
  %2826 = vmatpush.msra.mxu0 0.0
  %2827 = vmatpush.msra.mxu0 0.0
  %2828 = vmatpush.msra.mxu0 %v2799
  %2829 = vmatpush.msra.mxu0 %v2798
  %2830 = vmatmul.f32.gmra.mxu0 %v2812
  %v2831 = vpop.f32.mrf.mxu0
  %v2832 = vadd.f32 0.0, %v2831
  %2833 = vdwg.mxu0
  %v2834 = vadd.f32 %v2045, %v2832
  %s2835 = scalar_lea.vmem %s8, 16
  %v2836 = vld [vmem:[%s2835] sm:$0xff]
  %v2837 = vld [vmem:[%s2835 + $0x8] sm:$0xff]
  %v2842 = vperm.slane %v2782, %v224
  %v2843 = vperm.slane %v2783, %v1851
  %v2844 = vsel %vm1853, %v2843, %v2842
  %v2845 = vperm.slane %v2784, %v224
  %v2846 = vperm.slane %v2785, %v1851
  %v2847 = vsel %vm1853, %v2846, %v2845
  %v2848 = vsel %vm233, %v2847, %v2844
  %v2849 = vsel %vm2811, %v2848, 0
  %2851 = vmatpush.msra.mxu0 0.0
  %2852 = vmatpush.msra.mxu0 0.0
  %2853 = vmatpush.msra.mxu0 0.0
  %2854 = vmatpush.msra.mxu0 0.0
  %2855 = vmatpush.msra.mxu0 0.0
  %2856 = vmatpush.msra.mxu0 0.0
  %2857 = vmatpush.msra.mxu0 0.0
  %2858 = vmatpush.msra.mxu0 0.0
  %2859 = vmatpush.msra.mxu0 0.0
  %2860 = vmatpush.msra.mxu0 0.0
  %2861 = vmatpush.msra.mxu0 0.0
  %2862 = vmatpush.msra.mxu0 0.0
  %2863 = vmatpush.msra.mxu0 0.0
  %2864 = vmatpush.msra.mxu0 0.0
  %2865 = vmatpush.msra.mxu0 %v2837
  %2866 = vmatpush.msra.mxu0 %v2836
  %2867 = vmatmul.f32.gmra.mxu0 %v2849
  %v2868 = vpop.f32.mrf.mxu0
  %v2869 = vadd.f32 0.0, %v2868
  %2870 = vdwg.mxu0
  %v2871 = vadd.f32 %v2834, %v2869
  %s2872 = scalar_lea.vmem %s8, 32
  %v2873 = vld [vmem:[%s2872] sm:$0xff]
  %v2874 = vld [vmem:[%s2872 + $0x8] sm:$0xff]
  %v2879 = vperm.slane %v2786, %v224
  %v2880 = vperm.slane %v2787, %v1851
  %v2881 = vsel %vm1853, %v2880, %v2879
  %v2882 = vperm.slane %v2788, %v224
  %v2883 = vperm.slane %v2789, %v1851
  %v2884 = vsel %vm1853, %v2883, %v2882
  %v2885 = vsel %vm233, %v2884, %v2881
  %v2886 = vsel %vm2811, %v2885, 0
  %2888 = vmatpush.msra.mxu0 0.0
  %2889 = vmatpush.msra.mxu0 0.0
  %2890 = vmatpush.msra.mxu0 0.0
  %2891 = vmatpush.msra.mxu0 0.0
  %2892 = vmatpush.msra.mxu0 0.0
  %2893 = vmatpush.msra.mxu0 0.0
  %2894 = vmatpush.msra.mxu0 0.0
  %2895 = vmatpush.msra.mxu0 0.0
  %2896 = vmatpush.msra.mxu0 0.0
  %2897 = vmatpush.msra.mxu0 0.0
  %2898 = vmatpush.msra.mxu0 0.0
  %2899 = vmatpush.msra.mxu0 0.0
  %2900 = vmatpush.msra.mxu0 0.0
  %2901 = vmatpush.msra.mxu0 0.0
  %2902 = vmatpush.msra.mxu0 %v2874
  %2903 = vmatpush.msra.mxu0 %v2873
  %2904 = vmatmul.f32.gmra.mxu0 %v2886
  %v2905 = vpop.f32.mrf.mxu0
  %v2906 = vadd.f32 0.0, %v2905
  %2907 = vdwg.mxu0
  %v2908 = vadd.f32 %v2871, %v2906
  %s2909 = scalar_lea.vmem %s8, 48
  %v2910 = vld [vmem:[%s2909] sm:$0xff]
  %v2911 = vld [vmem:[%s2909 + $0x8] sm:$0xff]
  %v2916 = vperm.slane %v2790, %v224
  %v2917 = vperm.slane %v2791, %v1851
  %v2918 = vsel %vm1853, %v2917, %v2916
  %v2919 = vperm.slane %v2792, %v224
  %v2920 = vperm.slane %v2793, %v1851
  %v2921 = vsel %vm1853, %v2920, %v2919
  %v2922 = vsel %vm233, %v2921, %v2918
  %v2923 = vsel %vm2811, %v2922, 0
  %2925 = vmatpush.msra.mxu0 0.0
  %2926 = vmatpush.msra.mxu0 0.0
  %2927 = vmatpush.msra.mxu0 0.0
  %2928 = vmatpush.msra.mxu0 0.0
  %2929 = vmatpush.msra.mxu0 0.0
  %2930 = vmatpush.msra.mxu0 0.0
  %2931 = vmatpush.msra.mxu0 0.0
  %2932 = vmatpush.msra.mxu0 0.0
  %2933 = vmatpush.msra.mxu0 0.0
  %2934 = vmatpush.msra.mxu0 0.0
  %2935 = vmatpush.msra.mxu0 0.0
  %2936 = vmatpush.msra.mxu0 0.0
  %2937 = vmatpush.msra.mxu0 0.0
  %2938 = vmatpush.msra.mxu0 0.0
  %2939 = vmatpush.msra.mxu0 %v2911
  %2940 = vmatpush.msra.mxu0 %v2910
  %2941 = vmatmul.f32.gmra.mxu0 %v2923
  %v2942 = vpop.f32.mrf.mxu0
  %v2943 = vadd.f32 0.0, %v2942
  %2944 = vdwg.mxu0
  %v2945 = vadd.f32 %v2908, %v2943
  %s2946 = scalar_lea.vmem %s8, 64
  %v2947 = vld [vmem:[%s2946] sm:$0xff]
  %v2948 = vld [vmem:[%s2946 + $0x8] sm:$0xff]
  %v2953 = vperm.slane %v2794, %v224
  %v2954 = vperm.slane %v2795, %v1851
  %v2955 = vsel %vm1853, %v2954, %v2953
  %v2956 = vperm.slane %v2796, %v224
  %v2957 = vperm.slane %v2797, %v1851
  %v2958 = vsel %vm1853, %v2957, %v2956
  %v2959 = vsel %vm233, %v2958, %v2955
  %v2960 = vsel %vm2811, %v2959, 0
  %2962 = vmatpush.msra.mxu0 0.0
  %2963 = vmatpush.msra.mxu0 0.0
  %2964 = vmatpush.msra.mxu0 0.0
  %2965 = vmatpush.msra.mxu0 0.0
  %2966 = vmatpush.msra.mxu0 0.0
  %2967 = vmatpush.msra.mxu0 0.0
  %2968 = vmatpush.msra.mxu0 0.0
  %2969 = vmatpush.msra.mxu0 0.0
  %2970 = vmatpush.msra.mxu0 0.0
  %2971 = vmatpush.msra.mxu0 0.0
  %2972 = vmatpush.msra.mxu0 0.0
  %2973 = vmatpush.msra.mxu0 0.0
  %2974 = vmatpush.msra.mxu0 0.0
  %2975 = vmatpush.msra.mxu0 0.0
  %2976 = vmatpush.msra.mxu0 %v2948
  %2977 = vmatpush.msra.mxu0 %v2947
  %2978 = vmatmul.f32.gmra.mxu0 %v2960
  %v2979 = vpop.f32.mrf.mxu0
  %v2980 = vadd.f32 0.0, %v2979
  %2981 = vdwg.mxu0
  %v2982 = vadd.f32 %v2945, %v2980
  %v2983 = vld [vmem:[%s4] sm:$0xf]
  %v2984 = vld [vmem:[%s4 + $0x4] sm:$0xf]
  %v2985 = vld [vmem:[%s4 + $0x8] sm:$0xf]
  %v2986 = vld [vmem:[%s4 + $0xc] sm:$0xf]
  %v2987 = vld [vmem:[%s4 + $0x10] sm:$0xf]
  %v2988 = vld [vmem:[%s4 + $0x14] sm:$0xf]
  %v2989 = vld [vmem:[%s4 + $0x18] sm:$0xf]
  %v2990 = vld [vmem:[%s4 + $0x1c] sm:$0xf]
  %v2991 = vld [vmem:[%s4 + $0x20] sm:$0xf]
  %v2992 = vld [vmem:[%s4 + $0x24] sm:$0xf]
  %v2993 = vld [vmem:[%s4 + $0x28] sm:$0xf]
  %v2994 = vld [vmem:[%s4 + $0x2c] sm:$0xf]
  %v2995 = vld [vmem:[%s4 + $0x30] sm:$0xf]
  %v2996 = vld [vmem:[%s4 + $0x34] sm:$0xf]
  %v2997 = vld [vmem:[%s4 + $0x38] sm:$0xf]
  %v2998 = vld [vmem:[%s4 + $0x3c] sm:$0xf]
  %v2999 = vld [vmem:[%s4 + $0x40] sm:$0xf]
  %v3000 = vld [vmem:[%s4 + $0x44] sm:$0xf]
  %v3001 = vld [vmem:[%s4 + $0x48] sm:$0xf]
  %v3002 = vld [vmem:[%s4 + $0x4c] sm:$0xf]
  %v3003 = vld [vmem:[%s4 + $0x50] sm:$0xf]
  %v3004 = vld [vmem:[%s4 + $0x54] sm:$0xf]
  %v3005 = vld [vmem:[%s4 + $0x58] sm:$0xf]
  %v3006 = vld [vmem:[%s4 + $0x5c] sm:$0xf]
  %v3007 = vld [vmem:[%s4 + $0x60] sm:$0xf]
  %v3008 = vld [vmem:[%s4 + $0x64] sm:$0xf]
  %v3009 = vld [vmem:[%s4 + $0x68] sm:$0xf]
  %v3010 = vld [vmem:[%s4 + $0x6c] sm:$0xf]
  %v3011 = vld [vmem:[%s4 + $0x70] sm:$0xf]
  %v3012 = vld [vmem:[%s4 + $0x74] sm:$0xf]
  %v3013 = vld [vmem:[%s4 + $0x78] sm:$0xf]
  %v3014 = vld [vmem:[%s4 + $0x7c] sm:$0xf]
  %v3015 = vld [vmem:[%s4 + $0x80] sm:$0xf]
  %v3016 = vld [vmem:[%s4 + $0x84] sm:$0xf]
  %v3017 = vld [vmem:[%s4 + $0x88] sm:$0xf]
  %v3018 = vld [vmem:[%s4 + $0x8c] sm:$0xf]
  %v3019 = vld [vmem:[%s4 + $0x90] sm:$0xf]
  %v3020 = vld [vmem:[%s4 + $0x94] sm:$0xf]
  %v3021 = vld [vmem:[%s4 + $0x98] sm:$0xf]
  %v3022 = vld [vmem:[%s4 + $0x9c] sm:$0xf]
  %v3023 = vld [vmem:[%s4 + $0xa0] sm:$0xf]
  %v3024 = vld [vmem:[%s4 + $0xa4] sm:$0xf]
  %v3025 = vld [vmem:[%s4 + $0xa8] sm:$0xf]
  %v3026 = vld [vmem:[%s4 + $0xac] sm:$0xf]
  %v3027 = vld [vmem:[%s4 + $0xb0] sm:$0xf]
  %v3028 = vld [vmem:[%s4 + $0xb4] sm:$0xf]
  %v3029 = vld [vmem:[%s4 + $0xb8] sm:$0xf]
  %v3030 = vld [vmem:[%s4 + $0xbc] sm:$0xf]
  %vm3031 = vcmask 11264
  %v3032 = vsel %vm3031, %v2983, 0.0
  %3033 = vadd.xlane.f32.xlu0 %v3032
  %v3034 = vpop.xlane.xlu0 %3033
  %v3035 = vsel %vm3031, %v2984, 0.0
  %3036 = vadd.xlane.f32.xlu0 %v3035
  %v3037 = vpop.xlane.xlu0 %3036
  %v3038 = vsel %vm3031, %v2985, 0.0
  %3039 = vadd.xlane.f32.xlu0 %v3038
  %v3040 = vpop.xlane.xlu0 %3039
  %v3041 = vsel %vm3031, %v2986, 0.0
  %3042 = vadd.xlane.f32.xlu0 %v3041
  %v3043 = vpop.xlane.xlu0 %3042
  %v3044 = vsel %vm3031, %v2987, 0.0
  %3045 = vadd.xlane.f32.xlu0 %v3044
  %v3046 = vpop.xlane.xlu0 %3045
  %v3047 = vsel %vm3031, %v2988, 0.0
  %3048 = vadd.xlane.f32.xlu0 %v3047
  %v3049 = vpop.xlane.xlu0 %3048
  %v3050 = vsel %vm3031, %v2989, 0.0
  %3051 = vadd.xlane.f32.xlu0 %v3050
  %v3052 = vpop.xlane.xlu0 %3051
  %v3053 = vsel %vm3031, %v2990, 0.0
  %3054 = vadd.xlane.f32.xlu0 %v3053
  %v3055 = vpop.xlane.xlu0 %3054
  %v3056 = vsel %vm3031, %v2991, 0.0
  %3057 = vadd.xlane.f32.xlu0 %v3056
  %v3058 = vpop.xlane.xlu0 %3057
  %v3059 = vsel %vm3031, %v2992, 0.0
  %3060 = vadd.xlane.f32.xlu0 %v3059
  %v3061 = vpop.xlane.xlu0 %3060
  %v3062 = vsel %vm3031, %v2993, 0.0
  %3063 = vadd.xlane.f32.xlu0 %v3062
  %v3064 = vpop.xlane.xlu0 %3063
  %v3065 = vsel %vm3031, %v2994, 0.0
  %3066 = vadd.xlane.f32.xlu0 %v3065
  %v3067 = vpop.xlane.xlu0 %3066
  %v3068 = vsel %vm3031, %v2995, 0.0
  %3069 = vadd.xlane.f32.xlu0 %v3068
  %v3070 = vpop.xlane.xlu0 %3069
  %v3071 = vsel %vm3031, %v2996, 0.0
  %3072 = vadd.xlane.f32.xlu0 %v3071
  %v3073 = vpop.xlane.xlu0 %3072
  %v3074 = vsel %vm3031, %v2997, 0.0
  %3075 = vadd.xlane.f32.xlu0 %v3074
  %v3076 = vpop.xlane.xlu0 %3075
  %v3077 = vsel %vm3031, %v2998, 0.0
  %3078 = vadd.xlane.f32.xlu0 %v3077
  %v3079 = vpop.xlane.xlu0 %3078
  %v3080 = vsel %vm3031, %v2999, 0.0
  %3081 = vadd.xlane.f32.xlu0 %v3080
  %v3082 = vpop.xlane.xlu0 %3081
  %v3083 = vsel %vm3031, %v3000, 0.0
  %3084 = vadd.xlane.f32.xlu0 %v3083
  %v3085 = vpop.xlane.xlu0 %3084
  %v3086 = vsel %vm3031, %v3001, 0.0
  %3087 = vadd.xlane.f32.xlu0 %v3086
  %v3088 = vpop.xlane.xlu0 %3087
  %v3089 = vsel %vm3031, %v3002, 0.0
  %3090 = vadd.xlane.f32.xlu0 %v3089
  %v3091 = vpop.xlane.xlu0 %3090
  %v3092 = vsel %vm3031, %v3003, 0.0
  %3093 = vadd.xlane.f32.xlu0 %v3092
  %v3094 = vpop.xlane.xlu0 %3093
  %v3095 = vsel %vm3031, %v3004, 0.0
  %3096 = vadd.xlane.f32.xlu0 %v3095
  %v3097 = vpop.xlane.xlu0 %3096
  %v3098 = vsel %vm3031, %v3005, 0.0
  %3099 = vadd.xlane.f32.xlu0 %v3098
  %v3100 = vpop.xlane.xlu0 %3099
  %v3101 = vsel %vm3031, %v3006, 0.0
  %3102 = vadd.xlane.f32.xlu0 %v3101
  %v3103 = vpop.xlane.xlu0 %3102
  %v3104 = vsel %vm3031, %v3007, 0.0
  %3105 = vadd.xlane.f32.xlu0 %v3104
  %v3106 = vpop.xlane.xlu0 %3105
  %v3107 = vsel %vm3031, %v3008, 0.0
  %3108 = vadd.xlane.f32.xlu0 %v3107
  %v3109 = vpop.xlane.xlu0 %3108
  %v3110 = vsel %vm3031, %v3009, 0.0
  %3111 = vadd.xlane.f32.xlu0 %v3110
  %v3112 = vpop.xlane.xlu0 %3111
  %v3113 = vsel %vm3031, %v3010, 0.0
  %3114 = vadd.xlane.f32.xlu0 %v3113
  %v3115 = vpop.xlane.xlu0 %3114
  %v3116 = vsel %vm3031, %v3011, 0.0
  %3117 = vadd.xlane.f32.xlu0 %v3116
  %v3118 = vpop.xlane.xlu0 %3117
  %v3119 = vsel %vm3031, %v3012, 0.0
  %3120 = vadd.xlane.f32.xlu0 %v3119
  %v3121 = vpop.xlane.xlu0 %3120
  %v3122 = vsel %vm3031, %v3013, 0.0
  %3123 = vadd.xlane.f32.xlu0 %v3122
  %v3124 = vpop.xlane.xlu0 %3123
  %v3125 = vsel %vm3031, %v3014, 0.0
  %3126 = vadd.xlane.f32.xlu0 %v3125
  %v3127 = vpop.xlane.xlu0 %3126
  %v3128 = vsel %vm3031, %v3015, 0.0
  %3129 = vadd.xlane.f32.xlu0 %v3128
  %v3130 = vpop.xlane.xlu0 %3129
  %v3131 = vsel %vm3031, %v3016, 0.0
  %3132 = vadd.xlane.f32.xlu0 %v3131
  %v3133 = vpop.xlane.xlu0 %3132
  %v3134 = vsel %vm3031, %v3017, 0.0
  %3135 = vadd.xlane.f32.xlu0 %v3134
  %v3136 = vpop.xlane.xlu0 %3135
  %v3137 = vsel %vm3031, %v3018, 0.0
  %3138 = vadd.xlane.f32.xlu0 %v3137
  %v3139 = vpop.xlane.xlu0 %3138
  %v3140 = vsel %vm3031, %v3019, 0.0
  %3141 = vadd.xlane.f32.xlu0 %v3140
  %v3142 = vpop.xlane.xlu0 %3141
  %v3143 = vsel %vm3031, %v3020, 0.0
  %3144 = vadd.xlane.f32.xlu0 %v3143
  %v3145 = vpop.xlane.xlu0 %3144
  %v3146 = vsel %vm3031, %v3021, 0.0
  %3147 = vadd.xlane.f32.xlu0 %v3146
  %v3148 = vpop.xlane.xlu0 %3147
  %v3149 = vsel %vm3031, %v3022, 0.0
  %3150 = vadd.xlane.f32.xlu0 %v3149
  %v3151 = vpop.xlane.xlu0 %3150
  %v3152 = vsel %vm3031, %v3023, 0.0
  %3153 = vadd.xlane.f32.xlu0 %v3152
  %v3154 = vpop.xlane.xlu0 %3153
  %v3155 = vsel %vm3031, %v3024, 0.0
  %3156 = vadd.xlane.f32.xlu0 %v3155
  %v3157 = vpop.xlane.xlu0 %3156
  %v3158 = vsel %vm3031, %v3025, 0.0
  %3159 = vadd.xlane.f32.xlu0 %v3158
  %v3160 = vpop.xlane.xlu0 %3159
  %v3161 = vsel %vm3031, %v3026, 0.0
  %3162 = vadd.xlane.f32.xlu0 %v3161
  %v3163 = vpop.xlane.xlu0 %3162
  %v3164 = vsel %vm3031, %v3027, 0.0
  %3165 = vadd.xlane.f32.xlu0 %v3164
  %v3166 = vpop.xlane.xlu0 %3165
  %v3167 = vsel %vm3031, %v3028, 0.0
  %3168 = vadd.xlane.f32.xlu0 %v3167
  %v3169 = vpop.xlane.xlu0 %3168
  %v3170 = vsel %vm3031, %v3029, 0.0
  %3171 = vadd.xlane.f32.xlu0 %v3170
  %v3172 = vpop.xlane.xlu0 %3171
  %v3173 = vsel %vm3031, %v3030, 0.0
  %3174 = vadd.xlane.f32.xlu0 %v3173
  %v3175 = vpop.xlane.xlu0 %3174
  %3224 = vrot.lane.b32.xlu0 %v2983, 126
  %v3225 = vpop.permute.xlu0 %3224
  %3226 = vrot.lane.b32.xlu0 %v2984, 126
  %v3227 = vpop.permute.xlu0 %3226
  %3228 = vrot.lane.b32.xlu0 %v2985, 126
  %v3229 = vpop.permute.xlu0 %3228
  %3230 = vrot.lane.b32.xlu0 %v2986, 126
  %v3231 = vpop.permute.xlu0 %3230
  %3232 = vrot.lane.b32.xlu0 %v2987, 126
  %v3233 = vpop.permute.xlu0 %3232
  %3234 = vrot.lane.b32.xlu0 %v2988, 126
  %v3235 = vpop.permute.xlu0 %3234
  %3236 = vrot.lane.b32.xlu0 %v2989, 126
  %v3237 = vpop.permute.xlu0 %3236
  %3238 = vrot.lane.b32.xlu0 %v2990, 126
  %v3239 = vpop.permute.xlu0 %3238
  %3240 = vrot.lane.b32.xlu0 %v2991, 126
  %v3241 = vpop.permute.xlu0 %3240
  %3242 = vrot.lane.b32.xlu0 %v2992, 126
  %v3243 = vpop.permute.xlu0 %3242
  %3244 = vrot.lane.b32.xlu0 %v2993, 126
  %v3245 = vpop.permute.xlu0 %3244
  %3246 = vrot.lane.b32.xlu0 %v2994, 126
  %v3247 = vpop.permute.xlu0 %3246
  %3248 = vrot.lane.b32.xlu0 %v2995, 126
  %v3249 = vpop.permute.xlu0 %3248
  %3250 = vrot.lane.b32.xlu0 %v2996, 126
  %v3251 = vpop.permute.xlu0 %3250
  %3252 = vrot.lane.b32.xlu0 %v2997, 126
  %v3253 = vpop.permute.xlu0 %3252
  %3254 = vrot.lane.b32.xlu0 %v2998, 126
  %v3255 = vpop.permute.xlu0 %3254
  %3256 = vrot.lane.b32.xlu0 %v2999, 126
  %v3257 = vpop.permute.xlu0 %3256
  %3258 = vrot.lane.b32.xlu0 %v3000, 126
  %v3259 = vpop.permute.xlu0 %3258
  %3260 = vrot.lane.b32.xlu0 %v3001, 126
  %v3261 = vpop.permute.xlu0 %3260
  %3262 = vrot.lane.b32.xlu0 %v3002, 126
  %v3263 = vpop.permute.xlu0 %3262
  %3264 = vrot.lane.b32.xlu0 %v3003, 126
  %v3265 = vpop.permute.xlu0 %3264
  %3266 = vrot.lane.b32.xlu0 %v3004, 126
  %v3267 = vpop.permute.xlu0 %3266
  %3268 = vrot.lane.b32.xlu0 %v3005, 126
  %v3269 = vpop.permute.xlu0 %3268
  %3270 = vrot.lane.b32.xlu0 %v3006, 126
  %v3271 = vpop.permute.xlu0 %3270
  %3272 = vrot.lane.b32.xlu0 %v3007, 126
  %v3273 = vpop.permute.xlu0 %3272
  %3274 = vrot.lane.b32.xlu0 %v3008, 126
  %v3275 = vpop.permute.xlu0 %3274
  %3276 = vrot.lane.b32.xlu0 %v3009, 126
  %v3277 = vpop.permute.xlu0 %3276
  %3278 = vrot.lane.b32.xlu0 %v3010, 126
  %v3279 = vpop.permute.xlu0 %3278
  %3280 = vrot.lane.b32.xlu0 %v3011, 126
  %v3281 = vpop.permute.xlu0 %3280
  %3282 = vrot.lane.b32.xlu0 %v3012, 126
  %v3283 = vpop.permute.xlu0 %3282
  %3284 = vrot.lane.b32.xlu0 %v3013, 126
  %v3285 = vpop.permute.xlu0 %3284
  %3286 = vrot.lane.b32.xlu0 %v3014, 126
  %v3287 = vpop.permute.xlu0 %3286
  %3288 = vrot.lane.b32.xlu0 %v3015, 126
  %v3289 = vpop.permute.xlu0 %3288
  %3290 = vrot.lane.b32.xlu0 %v3016, 126
  %v3291 = vpop.permute.xlu0 %3290
  %3292 = vrot.lane.b32.xlu0 %v3017, 126
  %v3293 = vpop.permute.xlu0 %3292
  %3294 = vrot.lane.b32.xlu0 %v3018, 126
  %v3295 = vpop.permute.xlu0 %3294
  %3296 = vrot.lane.b32.xlu0 %v3019, 126
  %v3297 = vpop.permute.xlu0 %3296
  %3298 = vrot.lane.b32.xlu0 %v3020, 126
  %v3299 = vpop.permute.xlu0 %3298
  %3300 = vrot.lane.b32.xlu0 %v3021, 126
  %v3301 = vpop.permute.xlu0 %3300
  %3302 = vrot.lane.b32.xlu0 %v3022, 126
  %v3303 = vpop.permute.xlu0 %3302
  %3304 = vrot.lane.b32.xlu0 %v3023, 126
  %v3305 = vpop.permute.xlu0 %3304
  %3306 = vrot.lane.b32.xlu0 %v3024, 126
  %v3307 = vpop.permute.xlu0 %3306
  %3308 = vrot.lane.b32.xlu0 %v3025, 126
  %v3309 = vpop.permute.xlu0 %3308
  %3310 = vrot.lane.b32.xlu0 %v3026, 126
  %v3311 = vpop.permute.xlu0 %3310
  %3312 = vrot.lane.b32.xlu0 %v3027, 126
  %v3313 = vpop.permute.xlu0 %3312
  %3314 = vrot.lane.b32.xlu0 %v3028, 126
  %v3315 = vpop.permute.xlu0 %3314
  %3316 = vrot.lane.b32.xlu0 %v3029, 126
  %v3317 = vpop.permute.xlu0 %3316
  %3318 = vrot.lane.b32.xlu0 %v3030, 126
  %v3319 = vpop.permute.xlu0 %3318
  %v3368 = vsel %vm3031, %v3225, 0.0
  %3369 = vadd.xlane.f32.xlu0 %v3368
  %v3370 = vpop.xlane.xlu0 %3369
  %v3371 = vsel %vm3031, %v3227, 0.0
  %3372 = vadd.xlane.f32.xlu0 %v3371
  %v3373 = vpop.xlane.xlu0 %3372
  %v3374 = vsel %vm3031, %v3229, 0.0
  %3375 = vadd.xlane.f32.xlu0 %v3374
  %v3376 = vpop.xlane.xlu0 %3375
  %v3377 = vsel %vm3031, %v3231, 0.0
  %3378 = vadd.xlane.f32.xlu0 %v3377
  %v3379 = vpop.xlane.xlu0 %3378
  %v3380 = vsel %vm3031, %v3233, 0.0
  %3381 = vadd.xlane.f32.xlu0 %v3380
  %v3382 = vpop.xlane.xlu0 %3381
  %v3383 = vsel %vm3031, %v3235, 0.0
  %3384 = vadd.xlane.f32.xlu0 %v3383
  %v3385 = vpop.xlane.xlu0 %3384
  %v3386 = vsel %vm3031, %v3237, 0.0
  %3387 = vadd.xlane.f32.xlu0 %v3386
  %v3388 = vpop.xlane.xlu0 %3387
  %v3389 = vsel %vm3031, %v3239, 0.0
  %3390 = vadd.xlane.f32.xlu0 %v3389
  %v3391 = vpop.xlane.xlu0 %3390
  %v3392 = vsel %vm3031, %v3241, 0.0
  %3393 = vadd.xlane.f32.xlu0 %v3392
  %v3394 = vpop.xlane.xlu0 %3393
  %v3395 = vsel %vm3031, %v3243, 0.0
  %3396 = vadd.xlane.f32.xlu0 %v3395
  %v3397 = vpop.xlane.xlu0 %3396
  %v3398 = vsel %vm3031, %v3245, 0.0
  %3399 = vadd.xlane.f32.xlu0 %v3398
  %v3400 = vpop.xlane.xlu0 %3399
  %v3401 = vsel %vm3031, %v3247, 0.0
  %3402 = vadd.xlane.f32.xlu0 %v3401
  %v3403 = vpop.xlane.xlu0 %3402
  %v3404 = vsel %vm3031, %v3249, 0.0
  %3405 = vadd.xlane.f32.xlu0 %v3404
  %v3406 = vpop.xlane.xlu0 %3405
  %v3407 = vsel %vm3031, %v3251, 0.0
  %3408 = vadd.xlane.f32.xlu0 %v3407
  %v3409 = vpop.xlane.xlu0 %3408
  %v3410 = vsel %vm3031, %v3253, 0.0
  %3411 = vadd.xlane.f32.xlu0 %v3410
  %v3412 = vpop.xlane.xlu0 %3411
  %v3413 = vsel %vm3031, %v3255, 0.0
  %3414 = vadd.xlane.f32.xlu0 %v3413
  %v3415 = vpop.xlane.xlu0 %3414
  %v3416 = vsel %vm3031, %v3257, 0.0
  %3417 = vadd.xlane.f32.xlu0 %v3416
  %v3418 = vpop.xlane.xlu0 %3417
  %v3419 = vsel %vm3031, %v3259, 0.0
  %3420 = vadd.xlane.f32.xlu0 %v3419
  %v3421 = vpop.xlane.xlu0 %3420
  %v3422 = vsel %vm3031, %v3261, 0.0
  %3423 = vadd.xlane.f32.xlu0 %v3422
  %v3424 = vpop.xlane.xlu0 %3423
  %v3425 = vsel %vm3031, %v3263, 0.0
  %3426 = vadd.xlane.f32.xlu0 %v3425
  %v3427 = vpop.xlane.xlu0 %3426
  %v3428 = vsel %vm3031, %v3265, 0.0
  %3429 = vadd.xlane.f32.xlu0 %v3428
  %v3430 = vpop.xlane.xlu0 %3429
  %v3431 = vsel %vm3031, %v3267, 0.0
  %3432 = vadd.xlane.f32.xlu0 %v3431
  %v3433 = vpop.xlane.xlu0 %3432
  %v3434 = vsel %vm3031, %v3269, 0.0
  %3435 = vadd.xlane.f32.xlu0 %v3434
  %v3436 = vpop.xlane.xlu0 %3435
  %v3437 = vsel %vm3031, %v3271, 0.0
  %3438 = vadd.xlane.f32.xlu0 %v3437
  %v3439 = vpop.xlane.xlu0 %3438
  %v3440 = vsel %vm3031, %v3273, 0.0
  %3441 = vadd.xlane.f32.xlu0 %v3440
  %v3442 = vpop.xlane.xlu0 %3441
  %v3443 = vsel %vm3031, %v3275, 0.0
  %3444 = vadd.xlane.f32.xlu0 %v3443
  %v3445 = vpop.xlane.xlu0 %3444
  %v3446 = vsel %vm3031, %v3277, 0.0
  %3447 = vadd.xlane.f32.xlu0 %v3446
  %v3448 = vpop.xlane.xlu0 %3447
  %v3449 = vsel %vm3031, %v3279, 0.0
  %3450 = vadd.xlane.f32.xlu0 %v3449
  %v3451 = vpop.xlane.xlu0 %3450
  %v3452 = vsel %vm3031, %v3281, 0.0
  %3453 = vadd.xlane.f32.xlu0 %v3452
  %v3454 = vpop.xlane.xlu0 %3453
  %v3455 = vsel %vm3031, %v3283, 0.0
  %3456 = vadd.xlane.f32.xlu0 %v3455
  %v3457 = vpop.xlane.xlu0 %3456
  %v3458 = vsel %vm3031, %v3285, 0.0
  %3459 = vadd.xlane.f32.xlu0 %v3458
  %v3460 = vpop.xlane.xlu0 %3459
  %v3461 = vsel %vm3031, %v3287, 0.0
  %3462 = vadd.xlane.f32.xlu0 %v3461
  %v3463 = vpop.xlane.xlu0 %3462
  %v3464 = vsel %vm3031, %v3289, 0.0
  %3465 = vadd.xlane.f32.xlu0 %v3464
  %v3466 = vpop.xlane.xlu0 %3465
  %v3467 = vsel %vm3031, %v3291, 0.0
  %3468 = vadd.xlane.f32.xlu0 %v3467
  %v3469 = vpop.xlane.xlu0 %3468
  %v3470 = vsel %vm3031, %v3293, 0.0
  %3471 = vadd.xlane.f32.xlu0 %v3470
  %v3472 = vpop.xlane.xlu0 %3471
  %v3473 = vsel %vm3031, %v3295, 0.0
  %3474 = vadd.xlane.f32.xlu0 %v3473
  %v3475 = vpop.xlane.xlu0 %3474
  %v3476 = vsel %vm3031, %v3297, 0.0
  %3477 = vadd.xlane.f32.xlu0 %v3476
  %v3478 = vpop.xlane.xlu0 %3477
  %v3479 = vsel %vm3031, %v3299, 0.0
  %3480 = vadd.xlane.f32.xlu0 %v3479
  %v3481 = vpop.xlane.xlu0 %3480
  %v3482 = vsel %vm3031, %v3301, 0.0
  %3483 = vadd.xlane.f32.xlu0 %v3482
  %v3484 = vpop.xlane.xlu0 %3483
  %v3485 = vsel %vm3031, %v3303, 0.0
  %3486 = vadd.xlane.f32.xlu0 %v3485
  %v3487 = vpop.xlane.xlu0 %3486
  %v3488 = vsel %vm3031, %v3305, 0.0
  %3489 = vadd.xlane.f32.xlu0 %v3488
  %v3490 = vpop.xlane.xlu0 %3489
  %v3491 = vsel %vm3031, %v3307, 0.0
  %3492 = vadd.xlane.f32.xlu0 %v3491
  %v3493 = vpop.xlane.xlu0 %3492
  %v3494 = vsel %vm3031, %v3309, 0.0
  %3495 = vadd.xlane.f32.xlu0 %v3494
  %v3496 = vpop.xlane.xlu0 %3495
  %v3497 = vsel %vm3031, %v3311, 0.0
  %3498 = vadd.xlane.f32.xlu0 %v3497
  %v3499 = vpop.xlane.xlu0 %3498
  %v3500 = vsel %vm3031, %v3313, 0.0
  %3501 = vadd.xlane.f32.xlu0 %v3500
  %v3502 = vpop.xlane.xlu0 %3501
  %v3503 = vsel %vm3031, %v3315, 0.0
  %3504 = vadd.xlane.f32.xlu0 %v3503
  %v3505 = vpop.xlane.xlu0 %3504
  %v3506 = vsel %vm3031, %v3317, 0.0
  %3507 = vadd.xlane.f32.xlu0 %v3506
  %v3508 = vpop.xlane.xlu0 %3507
  %v3509 = vsel %vm3031, %v3319, 0.0
  %3510 = vadd.xlane.f32.xlu0 %v3509
  %v3511 = vpop.xlane.xlu0 %3510
  %v3560 = vperm.slane %v3034, %v224
  %v3561 = vperm.slane %v3037, %v224
  %v3562 = vperm.slane %v3040, %v224
  %v3563 = vperm.slane %v3043, %v224
  %v3564 = vperm.slane %v3046, %v224
  %v3565 = vperm.slane %v3049, %v224
  %v3566 = vperm.slane %v3052, %v224
  %v3567 = vperm.slane %v3055, %v224
  %v3568 = vperm.slane %v3058, %v224
  %v3569 = vperm.slane %v3061, %v224
  %v3570 = vperm.slane %v3064, %v224
  %v3571 = vperm.slane %v3067, %v224
  %v3572 = vperm.slane %v3070, %v224
  %v3573 = vperm.slane %v3073, %v224
  %v3574 = vperm.slane %v3076, %v224
  %v3575 = vperm.slane %v3079, %v224
  %v3576 = vperm.slane %v3082, %v224
  %v3577 = vperm.slane %v3085, %v224
  %v3578 = vperm.slane %v3088, %v224
  %v3579 = vperm.slane %v3091, %v224
  %v3580 = vperm.slane %v3094, %v224
  %v3581 = vperm.slane %v3097, %v224
  %v3582 = vperm.slane %v3100, %v224
  %v3583 = vperm.slane %v3103, %v224
  %v3584 = vperm.slane %v3106, %v224
  %v3585 = vperm.slane %v3109, %v224
  %v3586 = vperm.slane %v3112, %v224
  %v3587 = vperm.slane %v3115, %v224
  %v3588 = vperm.slane %v3118, %v224
  %v3589 = vperm.slane %v3121, %v224
  %v3590 = vperm.slane %v3124, %v224
  %v3591 = vperm.slane %v3127, %v224
  %v3592 = vperm.slane %v3130, %v224
  %v3593 = vperm.slane %v3133, %v224
  %v3594 = vperm.slane %v3136, %v224
  %v3595 = vperm.slane %v3139, %v224
  %v3596 = vperm.slane %v3142, %v224
  %v3597 = vperm.slane %v3145, %v224
  %v3598 = vperm.slane %v3148, %v224
  %v3599 = vperm.slane %v3151, %v224
  %v3600 = vperm.slane %v3154, %v224
  %v3601 = vperm.slane %v3157, %v224
  %v3602 = vperm.slane %v3160, %v224
  %v3603 = vperm.slane %v3163, %v224
  %v3604 = vperm.slane %v3166, %v224
  %v3605 = vperm.slane %v3169, %v224
  %v3606 = vperm.slane %v3172, %v224
  %v3607 = vperm.slane %v3175, %v224
  %v3608 = vsel %vm233, %v3561, %v3560
  %v3609 = vsel %vm235, %v3562, %v3608
  %v3610 = vsel %vm237, %v3563, %v3609
  %v3611 = vsel %vm908, %v3564, %v3610
  %v3612 = vsel %vm910, %v3565, %v3611
  %v3613 = vsel %vm912, %v3566, %v3612
  %v3614 = vsel %vm914, %v3567, %v3613
  %v3615 = vsel %vm233, %v3569, %v3568
  %v3616 = vsel %vm235, %v3570, %v3615
  %v3617 = vsel %vm237, %v3571, %v3616
  %v3618 = vsel %vm908, %v3572, %v3617
  %v3619 = vsel %vm910, %v3573, %v3618
  %v3620 = vsel %vm912, %v3574, %v3619
  %v3621 = vsel %vm914, %v3575, %v3620
  %v3622 = vsel %vm233, %v3577, %v3576
  %v3623 = vsel %vm235, %v3578, %v3622
  %v3624 = vsel %vm237, %v3579, %v3623
  %v3625 = vsel %vm908, %v3580, %v3624
  %v3626 = vsel %vm910, %v3581, %v3625
  %v3627 = vsel %vm912, %v3582, %v3626
  %v3628 = vsel %vm914, %v3583, %v3627
  %v3629 = vsel %vm233, %v3585, %v3584
  %v3630 = vsel %vm235, %v3586, %v3629
  %v3631 = vsel %vm237, %v3587, %v3630
  %v3632 = vsel %vm908, %v3588, %v3631
  %v3633 = vsel %vm910, %v3589, %v3632
  %v3634 = vsel %vm912, %v3590, %v3633
  %v3635 = vsel %vm914, %v3591, %v3634
  %v3636 = vsel %vm233, %v3593, %v3592
  %v3637 = vsel %vm235, %v3594, %v3636
  %v3638 = vsel %vm237, %v3595, %v3637
  %v3639 = vsel %vm908, %v3596, %v3638
  %v3640 = vsel %vm910, %v3597, %v3639
  %v3641 = vsel %vm912, %v3598, %v3640
  %v3642 = vsel %vm914, %v3599, %v3641
  %v3643 = vsel %vm233, %v3601, %v3600
  %v3644 = vsel %vm235, %v3602, %v3643
  %v3645 = vsel %vm237, %v3603, %v3644
  %v3646 = vsel %vm908, %v3604, %v3645
  %v3647 = vsel %vm910, %v3605, %v3646
  %v3648 = vsel %vm912, %v3606, %v3647
  %v3649 = vsel %vm914, %v3607, %v3648
  %vm3656 = vcmask 15360
  %v3657 = vsel %vm3656, %v3614, 0.0
  %3658 = vadd.xlane.f32.xlu0 %v3657
  %v3659 = vpop.xlane.xlu0 %3658
  %v3660 = vsel %vm3656, %v3621, 0.0
  %3661 = vadd.xlane.f32.xlu0 %v3660
  %v3662 = vpop.xlane.xlu0 %3661
  %v3663 = vsel %vm3656, %v3628, 0.0
  %3664 = vadd.xlane.f32.xlu0 %v3663
  %v3665 = vpop.xlane.xlu0 %3664
  %v3666 = vsel %vm3656, %v3635, 0.0
  %3667 = vadd.xlane.f32.xlu0 %v3666
  %v3668 = vpop.xlane.xlu0 %3667
  %v3669 = vsel %vm3656, %v3642, 0.0
  %3670 = vadd.xlane.f32.xlu0 %v3669
  %v3671 = vpop.xlane.xlu0 %3670
  %v3672 = vsel %vm3656, %v3649, 0.0
  %3673 = vadd.xlane.f32.xlu0 %v3672
  %v3674 = vpop.xlane.xlu0 %3673
  %v3675 = vadd.s32 %v224, 2
  %v3676 = vperm.slane %v3034, %v3675
  %v3677 = vperm.slane %v3037, %v3675
  %v3678 = vperm.slane %v3040, %v3675
  %v3679 = vperm.slane %v3043, %v3675
  %v3680 = vperm.slane %v3046, %v3675
  %v3681 = vperm.slane %v3049, %v3675
  %v3682 = vperm.slane %v3052, %v3675
  %v3683 = vperm.slane %v3055, %v3675
  %v3684 = vperm.slane %v3058, %v3675
  %v3685 = vperm.slane %v3061, %v3675
  %v3686 = vperm.slane %v3064, %v3675
  %v3687 = vperm.slane %v3067, %v3675
  %v3688 = vperm.slane %v3070, %v3675
  %v3689 = vperm.slane %v3073, %v3675
  %v3690 = vperm.slane %v3076, %v3675
  %v3691 = vperm.slane %v3079, %v3675
  %v3692 = vperm.slane %v3082, %v3675
  %v3693 = vperm.slane %v3085, %v3675
  %v3694 = vperm.slane %v3088, %v3675
  %v3695 = vperm.slane %v3091, %v3675
  %v3696 = vperm.slane %v3094, %v3675
  %v3697 = vperm.slane %v3097, %v3675
  %v3698 = vperm.slane %v3100, %v3675
  %v3699 = vperm.slane %v3103, %v3675
  %v3700 = vperm.slane %v3106, %v3675
  %v3701 = vperm.slane %v3109, %v3675
  %v3702 = vperm.slane %v3112, %v3675
  %v3703 = vperm.slane %v3115, %v3675
  %v3704 = vperm.slane %v3118, %v3675
  %v3705 = vperm.slane %v3121, %v3675
  %v3706 = vperm.slane %v3124, %v3675
  %v3707 = vperm.slane %v3127, %v3675
  %v3708 = vperm.slane %v3130, %v3675
  %v3709 = vperm.slane %v3133, %v3675
  %v3710 = vperm.slane %v3136, %v3675
  %v3711 = vperm.slane %v3139, %v3675
  %v3712 = vperm.slane %v3142, %v3675
  %v3713 = vperm.slane %v3145, %v3675
  %v3714 = vperm.slane %v3148, %v3675
  %v3715 = vperm.slane %v3151, %v3675
  %v3716 = vperm.slane %v3154, %v3675
  %v3717 = vperm.slane %v3157, %v3675
  %v3718 = vperm.slane %v3160, %v3675
  %v3719 = vperm.slane %v3163, %v3675
  %v3720 = vperm.slane %v3166, %v3675
  %v3721 = vperm.slane %v3169, %v3675
  %v3722 = vperm.slane %v3172, %v3675
  %v3723 = vperm.slane %v3175, %v3675
  %v3724 = vsel %vm233, %v3677, %v3676
  %v3725 = vsel %vm235, %v3678, %v3724
  %v3726 = vsel %vm237, %v3679, %v3725
  %v3727 = vsel %vm908, %v3680, %v3726
  %v3728 = vsel %vm910, %v3681, %v3727
  %v3729 = vsel %vm912, %v3682, %v3728
  %v3730 = vsel %vm914, %v3683, %v3729
  %v3731 = vsel %vm233, %v3685, %v3684
  %v3732 = vsel %vm235, %v3686, %v3731
  %v3733 = vsel %vm237, %v3687, %v3732
  %v3734 = vsel %vm908, %v3688, %v3733
  %v3735 = vsel %vm910, %v3689, %v3734
  %v3736 = vsel %vm912, %v3690, %v3735
  %v3737 = vsel %vm914, %v3691, %v3736
  %v3738 = vsel %vm233, %v3693, %v3692
  %v3739 = vsel %vm235, %v3694, %v3738
  %v3740 = vsel %vm237, %v3695, %v3739
  %v3741 = vsel %vm908, %v3696, %v3740
  %v3742 = vsel %vm910, %v3697, %v3741
  %v3743 = vsel %vm912, %v3698, %v3742
  %v3744 = vsel %vm914, %v3699, %v3743
  %v3745 = vsel %vm233, %v3701, %v3700
  %v3746 = vsel %vm235, %v3702, %v3745
  %v3747 = vsel %vm237, %v3703, %v3746
  %v3748 = vsel %vm908, %v3704, %v3747
  %v3749 = vsel %vm910, %v3705, %v3748
  %v3750 = vsel %vm912, %v3706, %v3749
  %v3751 = vsel %vm914, %v3707, %v3750
  %v3752 = vsel %vm233, %v3709, %v3708
  %v3753 = vsel %vm235, %v3710, %v3752
  %v3754 = vsel %vm237, %v3711, %v3753
  %v3755 = vsel %vm908, %v3712, %v3754
  %v3756 = vsel %vm910, %v3713, %v3755
  %v3757 = vsel %vm912, %v3714, %v3756
  %v3758 = vsel %vm914, %v3715, %v3757
  %v3759 = vsel %vm233, %v3717, %v3716
  %v3760 = vsel %vm235, %v3718, %v3759
  %v3761 = vsel %vm237, %v3719, %v3760
  %v3762 = vsel %vm908, %v3720, %v3761
  %v3763 = vsel %vm910, %v3721, %v3762
  %v3764 = vsel %vm912, %v3722, %v3763
  %v3765 = vsel %vm914, %v3723, %v3764
  %v3772 = vsel %vm3656, %v3730, 0.0
  %3773 = vadd.xlane.f32.xlu0 %v3772
  %v3774 = vpop.xlane.xlu0 %3773
  %v3775 = vsel %vm3656, %v3737, 0.0
  %3776 = vadd.xlane.f32.xlu0 %v3775
  %v3777 = vpop.xlane.xlu0 %3776
  %v3778 = vsel %vm3656, %v3744, 0.0
  %3779 = vadd.xlane.f32.xlu0 %v3778
  %v3780 = vpop.xlane.xlu0 %3779
  %v3781 = vsel %vm3656, %v3751, 0.0
  %3782 = vadd.xlane.f32.xlu0 %v3781
  %v3783 = vpop.xlane.xlu0 %3782
  %v3784 = vsel %vm3656, %v3758, 0.0
  %3785 = vadd.xlane.f32.xlu0 %v3784
  %v3786 = vpop.xlane.xlu0 %3785
  %v3787 = vsel %vm3656, %v3765, 0.0
  %3788 = vadd.xlane.f32.xlu0 %v3787
  %v3789 = vpop.xlane.xlu0 %3788
  %v3838 = vperm.slane %v3370, %v224
  %v3839 = vperm.slane %v3373, %v224
  %v3840 = vperm.slane %v3376, %v224
  %v3841 = vperm.slane %v3379, %v224
  %v3842 = vperm.slane %v3382, %v224
  %v3843 = vperm.slane %v3385, %v224
  %v3844 = vperm.slane %v3388, %v224
  %v3845 = vperm.slane %v3391, %v224
  %v3846 = vperm.slane %v3394, %v224
  %v3847 = vperm.slane %v3397, %v224
  %v3848 = vperm.slane %v3400, %v224
  %v3849 = vperm.slane %v3403, %v224
  %v3850 = vperm.slane %v3406, %v224
  %v3851 = vperm.slane %v3409, %v224
  %v3852 = vperm.slane %v3412, %v224
  %v3853 = vperm.slane %v3415, %v224
  %v3854 = vperm.slane %v3418, %v224
  %v3855 = vperm.slane %v3421, %v224
  %v3856 = vperm.slane %v3424, %v224
  %v3857 = vperm.slane %v3427, %v224
  %v3858 = vperm.slane %v3430, %v224
  %v3859 = vperm.slane %v3433, %v224
  %v3860 = vperm.slane %v3436, %v224
  %v3861 = vperm.slane %v3439, %v224
  %v3862 = vperm.slane %v3442, %v224
  %v3863 = vperm.slane %v3445, %v224
  %v3864 = vperm.slane %v3448, %v224
  %v3865 = vperm.slane %v3451, %v224
  %v3866 = vperm.slane %v3454, %v224
  %v3867 = vperm.slane %v3457, %v224
  %v3868 = vperm.slane %v3460, %v224
  %v3869 = vperm.slane %v3463, %v224
  %v3870 = vperm.slane %v3466, %v224
  %v3871 = vperm.slane %v3469, %v224
  %v3872 = vperm.slane %v3472, %v224
  %v3873 = vperm.slane %v3475, %v224
  %v3874 = vperm.slane %v3478, %v224
  %v3875 = vperm.slane %v3481, %v224
  %v3876 = vperm.slane %v3484, %v224
  %v3877 = vperm.slane %v3487, %v224
  %v3878 = vperm.slane %v3490, %v224
  %v3879 = vperm.slane %v3493, %v224
  %v3880 = vperm.slane %v3496, %v224
  %v3881 = vperm.slane %v3499, %v224
  %v3882 = vperm.slane %v3502, %v224
  %v3883 = vperm.slane %v3505, %v224
  %v3884 = vperm.slane %v3508, %v224
  %v3885 = vperm.slane %v3511, %v224
  %v3886 = vsel %vm233, %v3839, %v3838
  %v3887 = vsel %vm235, %v3840, %v3886
  %v3888 = vsel %vm237, %v3841, %v3887
  %v3889 = vsel %vm908, %v3842, %v3888
  %v3890 = vsel %vm910, %v3843, %v3889
  %v3891 = vsel %vm912, %v3844, %v3890
  %v3892 = vsel %vm914, %v3845, %v3891
  %v3893 = vsel %vm233, %v3847, %v3846
  %v3894 = vsel %vm235, %v3848, %v3893
  %v3895 = vsel %vm237, %v3849, %v3894
  %v3896 = vsel %vm908, %v3850, %v3895
  %v3897 = vsel %vm910, %v3851, %v3896
  %v3898 = vsel %vm912, %v3852, %v3897
  %v3899 = vsel %vm914, %v3853, %v3898
  %v3900 = vsel %vm233, %v3855, %v3854
  %v3901 = vsel %vm235, %v3856, %v3900
  %v3902 = vsel %vm237, %v3857, %v3901
  %v3903 = vsel %vm908, %v3858, %v3902
  %v3904 = vsel %vm910, %v3859, %v3903
  %v3905 = vsel %vm912, %v3860, %v3904
  %v3906 = vsel %vm914, %v3861, %v3905
  %v3907 = vsel %vm233, %v3863, %v3862
  %v3908 = vsel %vm235, %v3864, %v3907
  %v3909 = vsel %vm237, %v3865, %v3908
  %v3910 = vsel %vm908, %v3866, %v3909
  %v3911 = vsel %vm910, %v3867, %v3910
  %v3912 = vsel %vm912, %v3868, %v3911
  %v3913 = vsel %vm914, %v3869, %v3912
  %v3914 = vsel %vm233, %v3871, %v3870
  %v3915 = vsel %vm235, %v3872, %v3914
  %v3916 = vsel %vm237, %v3873, %v3915
  %v3917 = vsel %vm908, %v3874, %v3916
  %v3918 = vsel %vm910, %v3875, %v3917
  %v3919 = vsel %vm912, %v3876, %v3918
  %v3920 = vsel %vm914, %v3877, %v3919
  %v3921 = vsel %vm233, %v3879, %v3878
  %v3922 = vsel %vm235, %v3880, %v3921
  %v3923 = vsel %vm237, %v3881, %v3922
  %v3924 = vsel %vm908, %v3882, %v3923
  %v3925 = vsel %vm910, %v3883, %v3924
  %v3926 = vsel %vm912, %v3884, %v3925
  %v3927 = vsel %vm914, %v3885, %v3926
  %v3934 = vsel %vm3656, %v3892, 0.0
  %3935 = vadd.xlane.f32.xlu0 %v3934
  %v3936 = vpop.xlane.xlu0 %3935
  %v3937 = vsel %vm3656, %v3899, 0.0
  %3938 = vadd.xlane.f32.xlu0 %v3937
  %v3939 = vpop.xlane.xlu0 %3938
  %v3940 = vsel %vm3656, %v3906, 0.0
  %3941 = vadd.xlane.f32.xlu0 %v3940
  %v3942 = vpop.xlane.xlu0 %3941
  %v3943 = vsel %vm3656, %v3913, 0.0
  %3944 = vadd.xlane.f32.xlu0 %v3943
  %v3945 = vpop.xlane.xlu0 %3944
  %v3946 = vsel %vm3656, %v3920, 0.0
  %3947 = vadd.xlane.f32.xlu0 %v3946
  %v3948 = vpop.xlane.xlu0 %3947
  %v3949 = vsel %vm3656, %v3927, 0.0
  %3950 = vadd.xlane.f32.xlu0 %v3949
  %v3951 = vpop.xlane.xlu0 %3950
  %v3952 = vperm.slane %v3370, %v3675
  %v3953 = vperm.slane %v3373, %v3675
  %v3954 = vperm.slane %v3376, %v3675
  %v3955 = vperm.slane %v3379, %v3675
  %v3956 = vperm.slane %v3382, %v3675
  %v3957 = vperm.slane %v3385, %v3675
  %v3958 = vperm.slane %v3388, %v3675
  %v3959 = vperm.slane %v3391, %v3675
  %v3960 = vperm.slane %v3394, %v3675
  %v3961 = vperm.slane %v3397, %v3675
  %v3962 = vperm.slane %v3400, %v3675
  %v3963 = vperm.slane %v3403, %v3675
  %v3964 = vperm.slane %v3406, %v3675
  %v3965 = vperm.slane %v3409, %v3675
  %v3966 = vperm.slane %v3412, %v3675
  %v3967 = vperm.slane %v3415, %v3675
  %v3968 = vperm.slane %v3418, %v3675
  %v3969 = vperm.slane %v3421, %v3675
  %v3970 = vperm.slane %v3424, %v3675
  %v3971 = vperm.slane %v3427, %v3675
  %v3972 = vperm.slane %v3430, %v3675
  %v3973 = vperm.slane %v3433, %v3675
  %v3974 = vperm.slane %v3436, %v3675
  %v3975 = vperm.slane %v3439, %v3675
  %v3976 = vperm.slane %v3442, %v3675
  %v3977 = vperm.slane %v3445, %v3675
  %v3978 = vperm.slane %v3448, %v3675
  %v3979 = vperm.slane %v3451, %v3675
  %v3980 = vperm.slane %v3454, %v3675
  %v3981 = vperm.slane %v3457, %v3675
  %v3982 = vperm.slane %v3460, %v3675
  %v3983 = vperm.slane %v3463, %v3675
  %v3984 = vperm.slane %v3466, %v3675
  %v3985 = vperm.slane %v3469, %v3675
  %v3986 = vperm.slane %v3472, %v3675
  %v3987 = vperm.slane %v3475, %v3675
  %v3988 = vperm.slane %v3478, %v3675
  %v3989 = vperm.slane %v3481, %v3675
  %v3990 = vperm.slane %v3484, %v3675
  %v3991 = vperm.slane %v3487, %v3675
  %v3992 = vperm.slane %v3490, %v3675
  %v3993 = vperm.slane %v3493, %v3675
  %v3994 = vperm.slane %v3496, %v3675
  %v3995 = vperm.slane %v3499, %v3675
  %v3996 = vperm.slane %v3502, %v3675
  %v3997 = vperm.slane %v3505, %v3675
  %v3998 = vperm.slane %v3508, %v3675
  %v3999 = vperm.slane %v3511, %v3675
  %v4000 = vsel %vm233, %v3953, %v3952
  %v4001 = vsel %vm235, %v3954, %v4000
  %v4002 = vsel %vm237, %v3955, %v4001
  %v4003 = vsel %vm908, %v3956, %v4002
  %v4004 = vsel %vm910, %v3957, %v4003
  %v4005 = vsel %vm912, %v3958, %v4004
  %v4006 = vsel %vm914, %v3959, %v4005
  %v4007 = vsel %vm233, %v3961, %v3960
  %v4008 = vsel %vm235, %v3962, %v4007
  %v4009 = vsel %vm237, %v3963, %v4008
  %v4010 = vsel %vm908, %v3964, %v4009
  %v4011 = vsel %vm910, %v3965, %v4010
  %v4012 = vsel %vm912, %v3966, %v4011
  %v4013 = vsel %vm914, %v3967, %v4012
  %v4014 = vsel %vm233, %v3969, %v3968
  %v4015 = vsel %vm235, %v3970, %v4014
  %v4016 = vsel %vm237, %v3971, %v4015
  %v4017 = vsel %vm908, %v3972, %v4016
  %v4018 = vsel %vm910, %v3973, %v4017
  %v4019 = vsel %vm912, %v3974, %v4018
  %v4020 = vsel %vm914, %v3975, %v4019
  %v4021 = vsel %vm233, %v3977, %v3976
  %v4022 = vsel %vm235, %v3978, %v4021
  %v4023 = vsel %vm237, %v3979, %v4022
  %v4024 = vsel %vm908, %v3980, %v4023
  %v4025 = vsel %vm910, %v3981, %v4024
  %v4026 = vsel %vm912, %v3982, %v4025
  %v4027 = vsel %vm914, %v3983, %v4026
  %v4028 = vsel %vm233, %v3985, %v3984
  %v4029 = vsel %vm235, %v3986, %v4028
  %v4030 = vsel %vm237, %v3987, %v4029
  %v4031 = vsel %vm908, %v3988, %v4030
  %v4032 = vsel %vm910, %v3989, %v4031
  %v4033 = vsel %vm912, %v3990, %v4032
  %v4034 = vsel %vm914, %v3991, %v4033
  %v4035 = vsel %vm233, %v3993, %v3992
  %v4036 = vsel %vm235, %v3994, %v4035
  %v4037 = vsel %vm237, %v3995, %v4036
  %v4038 = vsel %vm908, %v3996, %v4037
  %v4039 = vsel %vm910, %v3997, %v4038
  %v4040 = vsel %vm912, %v3998, %v4039
  %v4041 = vsel %vm914, %v3999, %v4040
  %v4048 = vsel %vm3656, %v4006, 0.0
  %4049 = vadd.xlane.f32.xlu0 %v4048
  %v4050 = vpop.xlane.xlu0 %4049
  %v4051 = vsel %vm3656, %v4013, 0.0
  %4052 = vadd.xlane.f32.xlu0 %v4051
  %v4053 = vpop.xlane.xlu0 %4052
  %v4054 = vsel %vm3656, %v4020, 0.0
  %4055 = vadd.xlane.f32.xlu0 %v4054
  %v4056 = vpop.xlane.xlu0 %4055
  %v4057 = vsel %vm3656, %v4027, 0.0
  %4058 = vadd.xlane.f32.xlu0 %v4057
  %v4059 = vpop.xlane.xlu0 %4058
  %v4060 = vsel %vm3656, %v4034, 0.0
  %4061 = vadd.xlane.f32.xlu0 %v4060
  %v4062 = vpop.xlane.xlu0 %4061
  %v4063 = vsel %vm3656, %v4041, 0.0
  %4064 = vadd.xlane.f32.xlu0 %v4063
  %v4065 = vpop.xlane.xlu0 %4064
  %v4066 = vadd.f32 %v3659, %v3936
  %v4067 = vadd.f32 %v3662, %v3939
  %v4068 = vadd.f32 %v3665, %v3942
  %v4069 = vadd.f32 %v3668, %v3945
  %v4070 = vadd.f32 %v3671, %v3948
  %v4071 = vadd.f32 %v3674, %v3951
  %v4072 = vadd.f32 %v4066, %v3774
  %v4073 = vadd.f32 %v4067, %v3777
  %v4074 = vadd.f32 %v4068, %v3780
  %v4075 = vadd.f32 %v4069, %v3783
  %v4076 = vadd.f32 %v4070, %v3786
  %v4077 = vadd.f32 %v4071, %v3789
  %v4078 = vadd.f32 %v4072, %v4050
  %v4079 = vadd.f32 %v4073, %v4053
  %v4080 = vadd.f32 %v4074, %v4056
  %v4081 = vadd.f32 %v4075, %v4059
  %v4082 = vadd.f32 %v4076, %v4062
  %v4083 = vadd.f32 %v4077, %v4065
  %v4084 = vmul.f32 %v4078, 0.0625
  %v4085 = vmul.f32 %v4079, 0.0625
  %v4086 = vmul.f32 %v4080, 0.0625
  %v4087 = vmul.f32 %v4081, 0.0625
  %v4088 = vmul.f32 %v4082, 0.0625
  %v4089 = vmul.f32 %v4083, 0.0625
  %v4090 = vmul.f32 %v3659, 0.25
  %v4091 = vmul.f32 %v3662, 0.25
  %v4092 = vmul.f32 %v3665, 0.25
  %v4093 = vmul.f32 %v3668, 0.25
  %v4094 = vmul.f32 %v3671, 0.25
  %v4095 = vmul.f32 %v3674, 0.25
  %v4096 = vmul.f32 %v3936, 0.25
  %v4097 = vmul.f32 %v3939, 0.25
  %v4098 = vmul.f32 %v3942, 0.25
  %v4099 = vmul.f32 %v3945, 0.25
  %v4100 = vmul.f32 %v3948, 0.25
  %v4101 = vmul.f32 %v3951, 0.25
  %v4102 = vmul.f32 %v3774, 0.25
  %v4103 = vmul.f32 %v3777, 0.25
  %v4104 = vmul.f32 %v3780, 0.25
  %v4105 = vmul.f32 %v3783, 0.25
  %v4106 = vmul.f32 %v3786, 0.25
  %v4107 = vmul.f32 %v3789, 0.25
  %v4108 = vmul.f32 %v4050, 0.25
  %v4109 = vmul.f32 %v4053, 0.25
  %v4110 = vmul.f32 %v4056, 0.25
  %v4111 = vmul.f32 %v4059, 0.25
  %v4112 = vmul.f32 %v4062, 0.25
  %v4113 = vmul.f32 %v4065, 0.25
  %v4114 = vld [vmem:[%s9] sm:$0xff]
  %v4115 = vld [vmem:[%s9 + $0x8] sm:$0xff]
  %v4116 = vld [vmem:[%s9 + $0x10] sm:$0xff]
  %v4123 = vperm.slane %v4084, %v224
  %v4124 = vperm.slane %v4085, %v1851
  %v4125 = vsel %vm1853, %v4124, %v4123
  %v4126 = vadd.s32 %v224, 4294967280
  %v4127 = vperm.slane %v4086, %v4126
  %vm4128 = vcmask 195712
  %v4129 = vsel %vm4128, %v4127, %v4125
  %v4130 = vperm.slane %v4087, %v224
  %v4131 = vperm.slane %v4088, %v1851
  %v4132 = vsel %vm1853, %v4131, %v4130
  %v4133 = vperm.slane %v4089, %v4126
  %v4134 = vsel %vm4128, %v4133, %v4132
  %v4135 = vsel %vm233, %v4134, %v4129
  %vm4136 = vcmask 195584
  %v4137 = vsel %vm4136, %v4135, 0
  %4139 = vmatpush.msra.mxu0 0.0
  %4140 = vmatpush.msra.mxu0 0.0
  %4141 = vmatpush.msra.mxu0 0.0
  %4142 = vmatpush.msra.mxu0 0.0
  %4143 = vmatpush.msra.mxu0 0.0
  %4144 = vmatpush.msra.mxu0 0.0
  %4145 = vmatpush.msra.mxu0 0.0
  %4146 = vmatpush.msra.mxu0 0.0
  %4147 = vmatpush.msra.mxu0 0.0
  %4148 = vmatpush.msra.mxu0 0.0
  %4149 = vmatpush.msra.mxu0 0.0
  %4150 = vmatpush.msra.mxu0 0.0
  %4151 = vmatpush.msra.mxu0 0.0
  %4152 = vmatpush.msra.mxu0 %v4116
  %4153 = vmatpush.msra.mxu0 %v4115
  %4154 = vmatpush.msra.mxu0 %v4114
  %4155 = vmatmul.f32.gmra.mxu0 %v4137
  %v4156 = vpop.f32.mrf.mxu0
  %v4157 = vadd.f32 0.0, %v4156
  %4158 = vdwg.mxu0
  %v4159 = vadd.f32 %v2982, %v4157
  %s4160 = scalar_lea.vmem %s9, 24
  %v4161 = vld [vmem:[%s4160] sm:$0xff]
  %v4162 = vld [vmem:[%s4160 + $0x8] sm:$0xff]
  %v4163 = vld [vmem:[%s4160 + $0x10] sm:$0xff]
  %v4170 = vperm.slane %v4090, %v224
  %v4171 = vperm.slane %v4091, %v1851
  %v4172 = vsel %vm1853, %v4171, %v4170
  %v4173 = vperm.slane %v4092, %v4126
  %v4174 = vsel %vm4128, %v4173, %v4172
  %v4175 = vperm.slane %v4093, %v224
  %v4176 = vperm.slane %v4094, %v1851
  %v4177 = vsel %vm1853, %v4176, %v4175
  %v4178 = vperm.slane %v4095, %v4126
  %v4179 = vsel %vm4128, %v4178, %v4177
  %v4180 = vsel %vm233, %v4179, %v4174
  %v4181 = vsel %vm4136, %v4180, 0
  %4183 = vmatpush.msra.mxu0 0.0
  %4184 = vmatpush.msra.mxu0 0.0
  %4185 = vmatpush.msra.mxu0 0.0
  %4186 = vmatpush.msra.mxu0 0.0
  %4187 = vmatpush.msra.mxu0 0.0
  %4188 = vmatpush.msra.mxu0 0.0
  %4189 = vmatpush.msra.mxu0 0.0
  %4190 = vmatpush.msra.mxu0 0.0
  %4191 = vmatpush.msra.mxu0 0.0
  %4192 = vmatpush.msra.mxu0 0.0
  %4193 = vmatpush.msra.mxu0 0.0
  %4194 = vmatpush.msra.mxu0 0.0
  %4195 = vmatpush.msra.mxu0 0.0
  %4196 = vmatpush.msra.mxu0 %v4163
  %4197 = vmatpush.msra.mxu0 %v4162
  %4198 = vmatpush.msra.mxu0 %v4161
  %4199 = vmatmul.f32.gmra.mxu0 %v4181
  %v4200 = vpop.f32.mrf.mxu0
  %v4201 = vadd.f32 0.0, %v4200
  %4202 = vdwg.mxu0
  %v4203 = vadd.f32 %v4159, %v4201
  %s4204 = scalar_lea.vmem %s9, 48
  %v4205 = vld [vmem:[%s4204] sm:$0xff]
  %v4206 = vld [vmem:[%s4204 + $0x8] sm:$0xff]
  %v4207 = vld [vmem:[%s4204 + $0x10] sm:$0xff]
  %v4214 = vperm.slane %v4096, %v224
  %v4215 = vperm.slane %v4097, %v1851
  %v4216 = vsel %vm1853, %v4215, %v4214
  %v4217 = vperm.slane %v4098, %v4126
  %v4218 = vsel %vm4128, %v4217, %v4216
  %v4219 = vperm.slane %v4099, %v224
  %v4220 = vperm.slane %v4100, %v1851
  %v4221 = vsel %vm1853, %v4220, %v4219
  %v4222 = vperm.slane %v4101, %v4126
  %v4223 = vsel %vm4128, %v4222, %v4221
  %v4224 = vsel %vm233, %v4223, %v4218
  %v4225 = vsel %vm4136, %v4224, 0
  %4227 = vmatpush.msra.mxu0 0.0
  %4228 = vmatpush.msra.mxu0 0.0
  %4229 = vmatpush.msra.mxu0 0.0
  %4230 = vmatpush.msra.mxu0 0.0
  %4231 = vmatpush.msra.mxu0 0.0
  %4232 = vmatpush.msra.mxu0 0.0
  %4233 = vmatpush.msra.mxu0 0.0
  %4234 = vmatpush.msra.mxu0 0.0
  %4235 = vmatpush.msra.mxu0 0.0
  %4236 = vmatpush.msra.mxu0 0.0
  %4237 = vmatpush.msra.mxu0 0.0
  %4238 = vmatpush.msra.mxu0 0.0
  %4239 = vmatpush.msra.mxu0 0.0
  %4240 = vmatpush.msra.mxu0 %v4207
  %4241 = vmatpush.msra.mxu0 %v4206
  %4242 = vmatpush.msra.mxu0 %v4205
  %4243 = vmatmul.f32.gmra.mxu0 %v4225
  %v4244 = vpop.f32.mrf.mxu0
  %v4245 = vadd.f32 0.0, %v4244
  %4246 = vdwg.mxu0
  %v4247 = vadd.f32 %v4203, %v4245
  %s4248 = scalar_lea.vmem %s9, 72
  %v4249 = vld [vmem:[%s4248] sm:$0xff]
  %v4250 = vld [vmem:[%s4248 + $0x8] sm:$0xff]
  %v4251 = vld [vmem:[%s4248 + $0x10] sm:$0xff]
  %v4258 = vperm.slane %v4102, %v224
  %v4259 = vperm.slane %v4103, %v1851
  %v4260 = vsel %vm1853, %v4259, %v4258
  %v4261 = vperm.slane %v4104, %v4126
  %v4262 = vsel %vm4128, %v4261, %v4260
  %v4263 = vperm.slane %v4105, %v224
  %v4264 = vperm.slane %v4106, %v1851
  %v4265 = vsel %vm1853, %v4264, %v4263
  %v4266 = vperm.slane %v4107, %v4126
  %v4267 = vsel %vm4128, %v4266, %v4265
  %v4268 = vsel %vm233, %v4267, %v4262
  %v4269 = vsel %vm4136, %v4268, 0
  %4271 = vmatpush.msra.mxu0 0.0
  %4272 = vmatpush.msra.mxu0 0.0
  %4273 = vmatpush.msra.mxu0 0.0
  %4274 = vmatpush.msra.mxu0 0.0
  %4275 = vmatpush.msra.mxu0 0.0
  %4276 = vmatpush.msra.mxu0 0.0
  %4277 = vmatpush.msra.mxu0 0.0
  %4278 = vmatpush.msra.mxu0 0.0
  %4279 = vmatpush.msra.mxu0 0.0
  %4280 = vmatpush.msra.mxu0 0.0
  %4281 = vmatpush.msra.mxu0 0.0
  %4282 = vmatpush.msra.mxu0 0.0
  %4283 = vmatpush.msra.mxu0 0.0
  %4284 = vmatpush.msra.mxu0 %v4251
  %4285 = vmatpush.msra.mxu0 %v4250
  %4286 = vmatpush.msra.mxu0 %v4249
  %4287 = vmatmul.f32.gmra.mxu0 %v4269
  %v4288 = vpop.f32.mrf.mxu0
  %v4289 = vadd.f32 0.0, %v4288
  %4290 = vdwg.mxu0
  %v4291 = vadd.f32 %v4247, %v4289
  %s4292 = scalar_lea.vmem %s9, 96
  %v4293 = vld [vmem:[%s4292] sm:$0xff]
  %v4294 = vld [vmem:[%s4292 + $0x8] sm:$0xff]
  %v4295 = vld [vmem:[%s4292 + $0x10] sm:$0xff]
  %v4302 = vperm.slane %v4108, %v224
  %v4303 = vperm.slane %v4109, %v1851
  %v4304 = vsel %vm1853, %v4303, %v4302
  %v4305 = vperm.slane %v4110, %v4126
  %v4306 = vsel %vm4128, %v4305, %v4304
  %v4307 = vperm.slane %v4111, %v224
  %v4308 = vperm.slane %v4112, %v1851
  %v4309 = vsel %vm1853, %v4308, %v4307
  %v4310 = vperm.slane %v4113, %v4126
  %v4311 = vsel %vm4128, %v4310, %v4309
  %v4312 = vsel %vm233, %v4311, %v4306
  %v4313 = vsel %vm4136, %v4312, 0
  %4315 = vmatpush.msra.mxu0 0.0
  %4316 = vmatpush.msra.mxu0 0.0
  %4317 = vmatpush.msra.mxu0 0.0
  %4318 = vmatpush.msra.mxu0 0.0
  %4319 = vmatpush.msra.mxu0 0.0
  %4320 = vmatpush.msra.mxu0 0.0
  %4321 = vmatpush.msra.mxu0 0.0
  %4322 = vmatpush.msra.mxu0 0.0
  %4323 = vmatpush.msra.mxu0 0.0
  %4324 = vmatpush.msra.mxu0 0.0
  %4325 = vmatpush.msra.mxu0 0.0
  %4326 = vmatpush.msra.mxu0 0.0
  %4327 = vmatpush.msra.mxu0 0.0
  %4328 = vmatpush.msra.mxu0 %v4295
  %4329 = vmatpush.msra.mxu0 %v4294
  %4330 = vmatpush.msra.mxu0 %v4293
  %4331 = vmatmul.f32.gmra.mxu0 %v4313
  %v4332 = vpop.f32.mrf.mxu0
  %v4333 = vadd.f32 0.0, %v4332
  %4334 = vdwg.mxu0
  %v4335 = vadd.f32 %v4291, %v4333
  %v4336 = vld [vmem:[%s10] sm:$0x1]
  %v4338 = vperm.slane %v4336, 0
  %v4340 = vadd.f32 %v4335, %v4338
  %v4341 = vsub.f32 0.0, %v4340
  %v4342 = vmul.f32 %v4341, 1.442695
  %v4343 = vpow.pop %v4342
  %v4344 = vadd.f32 %v4343, 1.0
  %v4345 = vrcp.pop %v4344
  %vm4346 = vcmask 517120
  %4347 = vst.msk [vmem:[%s11] sm:$0x3] %vm4346, %v4345
  // Predicated region
  $region46: #{aca_forward.1} parent=0 // pred_check
    _
  $region47: #{aca_forward.1} parent=0 // pred_check_branch
    %4349 = sbr.rel (0) target = $region49
  $region48: #{aca_forward.1} parent=0 // pred_region
    _
  $region49: #{aca_forward.1} parent=0 // pred_fallthru
    _
  // Predicated region
  $region50: #{aca_forward.1} parent=0 // pred_check
    _
  $region51: #{aca_forward.1} parent=0 // pred_check_branch
    %4351 = sbr.rel (0) target = $region53
  $region52: #{aca_forward.1} parent=0 // pred_region
    _
  $region53: #{aca_forward.1} parent=0 // pred_fallthru
    _

</llo_original>
